<compile_context>
chip_gen: v7x
topology: tpu7x:2x2x1
jax: 0.10.0
libtpu: 0.0.40
codegen_flags: <defaults>
</compile_context>

<pallas_src>
import functools

import jax
import jax.numpy as jnp
import numpy as np
from jax.experimental import pallas as pl
from jax.experimental.pallas import tpu as pltpu


def _cross_attention_kernel(x_ref, ctx_ref, wq_ref, wk_ref, wv_ref, wo_ref, bo_ref,
                            o_ref, *, num_heads):
    # x_ref:   (1, N, Cq)      ctx_ref: (1, M, Ckv)
    # wq_ref:  (H, Cq, Dh)     wk_ref/wv_ref: (H, Ckv, Dh)
    # wo_ref:  (H, Dh, Cp)     bo_ref: (1, Cp)
    # o_ref:   (1, N, Cp)
    H = num_heads
    x = x_ref[0]          # (N, Cq)
    c = ctx_ref[0]        # (M, Ckv)

    # Broadcast activations over the head axis once (cheap vreg copies) so every
    # stage is a single batched matmul with h as the batch dim -> no relayouts.
    xb = jnp.broadcast_to(x[None], (H,) + x.shape)    # (H, N, Cq)
    cb = jnp.broadcast_to(c[None], (H,) + c.shape)    # (H, M, Ckv)

    # Projections (softmax scale is pre-folded into wq on the host).
    q = jnp.einsum('hnc,hcd->hnd', xb, wq_ref[...], preferred_element_type=jnp.float32)
    k = jnp.einsum('hmc,hcd->hmd', cb, wk_ref[...], preferred_element_type=jnp.float32)
    v = jnp.einsum('hmc,hcd->hmd', cb, wv_ref[...], preferred_element_type=jnp.float32)

    # Scaled dot-product attention, softmax over keys (f32, max-subtracted).
    s = jnp.einsum('hnd,hmd->hnm', q, k, preferred_element_type=jnp.float32)
    s = s - jnp.max(s, axis=-1, keepdims=True)
    p = jnp.exp(s)
    p = p * pl.reciprocal(jnp.sum(p, axis=-1, keepdims=True), approx=False)
    # TODO(synk): optional boolean `mask` path (masked_fill with -inf) not implemented.

    o = jnp.einsum('hnm,hmd->hnd', p, v, preferred_element_type=jnp.float32)   # (H, N, Dh)

    # Output projection: per-head partial products + leading-axis sum replaces
    # the concat(heads) @ Wout.T (no in-kernel concat / lane relayout).
    yh = jnp.einsum('hnd,hdc->hnc', o, wo_ref[...], preferred_element_type=jnp.float32)
    y = jnp.sum(yh, axis=0) + bo_ref[...]          # (N, Cp), lane-dense
    o_ref[0] = y.astype(o_ref.dtype)
    # TODO(synk): dropout > 0 in to_out not implemented (module default 0.0 is identity).


def cross_attention(x, w_q, w_k, w_v, w_out, b_out, *, heads, context=None):
    """CrossAttention forward.

    x: (B, N, query_dim); context: (B, M, context_dim) or None (self-attention).
    w_q: (inner, query_dim), w_k/w_v: (inner, context_dim), w_out: (query_dim, inner),
    b_out: (query_dim,)  -- PyTorch nn.Linear weight layouts.
    """
    context = x if context is None else context
    B, N, Cq = x.shape
    _, M, Ckv = context.shape
    inner = w_q.shape[0]
    dim_head = inner // heads
    scale = dim_head ** (-0.5)
    Cout = w_out.shape[0]
    LANES = 128
    Cp = ((Cout + LANES - 1) // LANES) * LANES     # lane-dense (padded) output width

    f32 = jnp.float32
    # Head-split, pre-transposed weights (host side, done once per trace).
    wq_h = (w_q.astype(f32) * scale).T.reshape(Cq, heads, dim_head).transpose(1, 0, 2)
    wk_h = w_k.astype(f32).T.reshape(Ckv, heads, dim_head).transpose(1, 0, 2)
    wv_h = w_v.astype(f32).T.reshape(Ckv, heads, dim_head).transpose(1, 0, 2)
    wo_h = w_out.astype(f32).T.reshape(heads, dim_head, Cout)
    wo_h = jnp.pad(wo_h, ((0, 0), (0, 0), (0, Cp - Cout)))
    bo = jnp.pad(b_out.astype(f32).reshape(1, Cout), ((0, 0), (0, Cp - Cout)))

    kernel = functools.partial(_cross_attention_kernel, num_heads=heads)

    out_padded = pl.pallas_call(
        kernel,
        out_shape=jax.ShapeDtypeStruct((B, N, Cp), x.dtype),
        grid_spec=pltpu.PrefetchScalarGridSpec(
            num_scalar_prefetch=0,
            grid=(B,),
            in_specs=[
                pl.BlockSpec((1, N, Cq), lambda b: (b, 0, 0)),
                pl.BlockSpec((1, M, Ckv), lambda b: (b, 0, 0)),
                pl.BlockSpec((heads, Cq, dim_head), lambda b: (0, 0, 0)),
                pl.BlockSpec((heads, Ckv, dim_head), lambda b: (0, 0, 0)),
                pl.BlockSpec((heads, Ckv, dim_head), lambda b: (0, 0, 0)),
                pl.BlockSpec((heads, dim_head, Cp), lambda b: (0, 0, 0)),
                pl.BlockSpec((1, Cp), lambda b: (0, 0)),
            ],
            out_specs=pl.BlockSpec((1, N, Cp), lambda b: (b, 0, 0)),
        ),
        compiler_params=pltpu.CompilerParams(
            dimension_semantics=("parallel",),   # B=2 -> one batch per TC on v7x
        ),
    )(x, context, wq_h, wk_h, wv_h, wo_h, bo)

    return out_padded[:, :, :Cout]


def _reference(x, w_q, w_k, w_v, w_out, b_out, *, heads, context=None):
    context = x if context is None else context
    B, N, _ = x.shape
    inner = w_q.shape[0]
    dim_head = inner // heads
    scale = dim_head ** (-0.5)
    q = x @ w_q.T
    k = context @ w_k.T
    v = context @ w_v.T

    def split(t):
        b, l, _ = t.shape
        return t.reshape(b, l, heads, dim_head).transpose(0, 2, 1, 3)   # (B,H,L,Dh)

    q, k, v = split(q), split(k), split(v)
    sim = jnp.einsum('bhid,bhjd->bhij', q, k) * scale
    attn = jax.nn.softmax(sim, axis=-1)
    out = jnp.einsum('bhij,bhjd->bhid', attn, v)
    out = out.transpose(0, 2, 1, 3).reshape(B, N, inner)
    return out @ w_out.T + b_out


if __name__ == "__main__":
    # Small shapes consistent with the module.
    B, N, query_dim, heads, dim_head = 2, 16, 64, 8, 8
    inner = heads * dim_head
    M, context_dim = 32, 96

    key = jax.random.PRNGKey(0)
    kx, kc, kq, kk, kv, kw, kb = jax.random.split(key, 7)

    x = jax.random.normal(kx, (B, N, query_dim), dtype=jnp.float32)
    ctx = jax.random.normal(kc, (B, M, context_dim), dtype=jnp.float32)

    def linit(k, out_f, in_f):
        return jax.random.normal(k, (out_f, in_f), dtype=jnp.float32) * (1.0 / np.sqrt(in_f))

    w_q = linit(kq, inner, query_dim)
    w_k_self = linit(kk, inner, query_dim)
    w_v_self = linit(kv, inner, query_dim)
    w_out = linit(kw, query_dim, inner)
    b_out = jax.random.normal(kb, (query_dim,), dtype=jnp.float32) * 0.01

    # 1) self-attention path (context=None -> context = x)
    out = cross_attention(x, w_q, w_k_self, w_v_self, w_out, b_out, heads=heads)
    out = jax.block_until_ready(out)
    ref = _reference(x, w_q, w_k_self, w_v_self, w_out, b_out, heads=heads)
    np.testing.assert_allclose(np.asarray(out), np.asarray(ref), rtol=1e-4, atol=1e-4)

    # 2) cross-attention path with an explicit context of different length/width
    kk2, kv2 = jax.random.split(kk, 2)
    w_k_x = linit(kk2, inner, context_dim)
    w_v_x = linit(kv2, inner, context_dim)
    out2 = cross_attention(x, w_q, w_k_x, w_v_x, w_out, b_out, heads=heads, context=ctx)
    out2 = jax.block_until_ready(out2)
    ref2 = _reference(x, w_q, w_k_x, w_v_x, w_out, b_out, heads=heads, context=ctx)
    np.testing.assert_allclose(np.asarray(out2), np.asarray(ref2), rtol=1e-4, atol=1e-4)

    print("KERNEL_OK")
</pallas_src>

<mosaic_0001>
module attributes {stable_mosaic.version = 11 : i64} {
  func.func @_cross_attention_kernel(%arg0: i32, %arg1: memref<1x16x64xf32, #tpu.memory_space<vmem>>, %arg2: memref<1x16x64xf32, #tpu.memory_space<vmem>>, %arg3: memref<8x64x8xf32, #tpu.memory_space<vmem>>, %arg4: memref<8x64x8xf32, #tpu.memory_space<vmem>>, %arg5: memref<8x64x8xf32, #tpu.memory_space<vmem>>, %arg6: memref<8x8x128xf32, #tpu.memory_space<vmem>>, %arg7: memref<1x128xf32, #tpu.memory_space<vmem>>, %arg8: memref<1x16x128xf32, #tpu.memory_space<vmem>>) attributes {dimension_semantics = [#tpu.dimension_semantics<parallel>], iteration_bounds = array<i64: 2>, scalar_prefetch = 0 : i64, scratch_operands = 0 : i64, tpu.core_type = #tpu.core_type<tc>, window_params = [{transform_indices = @transform_0, window_bounds = array<i64: 1, 16, 64>}, {transform_indices = @transform_1, window_bounds = array<i64: 1, 16, 64>}, {pipeline_mode = #tpu.pipeline_mode<synchronous>, transform_indices = @transform_2, window_bounds = array<i64: 8, 64, 8>}, {pipeline_mode = #tpu.pipeline_mode<synchronous>, transform_indices = @transform_3, window_bounds = array<i64: 8, 64, 8>}, {pipeline_mode = #tpu.pipeline_mode<synchronous>, transform_indices = @transform_4, window_bounds = array<i64: 8, 64, 8>}, {pipeline_mode = #tpu.pipeline_mode<synchronous>, transform_indices = @transform_5, window_bounds = array<i64: 8, 8, 128>}, {pipeline_mode = #tpu.pipeline_mode<synchronous>, transform_indices = @transform_6, window_bounds = array<i64: 1, 128>}, {transform_indices = @transform_7, window_bounds = array<i64: 1, 16, 128>}]} {
    %c0 = arith.constant 0 : index
    %c0_0 = arith.constant 0 : index
    %c0_1 = arith.constant 0 : index
    %0 = vector.load %arg1[%c0, %c0_0, %c0_1] : memref<1x16x64xf32, #tpu.memory_space<vmem>>, vector<1x16x64xf32>
    %1 = vector.shape_cast %0 : vector<1x16x64xf32> to vector<16x64xf32>
    %c0_2 = arith.constant 0 : index
    %c0_3 = arith.constant 0 : index
    %c0_4 = arith.constant 0 : index
    %2 = vector.load %arg2[%c0_2, %c0_3, %c0_4] : memref<1x16x64xf32, #tpu.memory_space<vmem>>, vector<1x16x64xf32>
    %3 = vector.shape_cast %2 : vector<1x16x64xf32> to vector<16x64xf32>
    %4 = vector.shape_cast %1 : vector<16x64xf32> to vector<1x16x64xf32>
    %5 = vector.shape_cast %4 : vector<1x16x64xf32> to vector<1x16x64xf32>
    %6 = vector.broadcast %5 : vector<1x16x64xf32> to vector<8x16x64xf32>
    %7 = vector.shape_cast %3 : vector<16x64xf32> to vector<1x16x64xf32>
    %8 = vector.shape_cast %7 : vector<1x16x64xf32> to vector<1x16x64xf32>
    %9 = vector.broadcast %8 : vector<1x16x64xf32> to vector<8x16x64xf32>
    %c0_5 = arith.constant 0 : index
    %c0_6 = arith.constant 0 : index
    %c0_7 = arith.constant 0 : index
    %10 = vector.load %arg3[%c0_5, %c0_6, %c0_7] : memref<8x64x8xf32, #tpu.memory_space<vmem>>, vector<8x64x8xf32>
    "tpu.trace_start"() <{level = 10 : i32, message = "hnc,hcd->hnd"}> : () -> ()
    %cst = arith.constant dense<0.000000e+00> : vector<8x16x8xf32>
    %11 = tpu.matmul %6, %10, %cst {dimension_numbers = #tpu.dot_dimension_numbers<[2], [1], [1], [2], [0, 0, 0, 1, 1, 2], [0], [0]>} : vector<8x16x64xf32>, vector<8x64x8xf32>, vector<8x16x8xf32> -> vector<8x16x8xf32>
    "tpu.trace_stop"() : () -> ()
    %c0_8 = arith.constant 0 : index
    %c0_9 = arith.constant 0 : index
    %c0_10 = arith.constant 0 : index
    %12 = vector.load %arg4[%c0_8, %c0_9, %c0_10] : memref<8x64x8xf32, #tpu.memory_space<vmem>>, vector<8x64x8xf32>
    "tpu.trace_start"() <{level = 10 : i32, message = "hmc,hcd->hmd"}> : () -> ()
    %cst_11 = arith.constant dense<0.000000e+00> : vector<8x16x8xf32>
    %13 = tpu.matmul %9, %12, %cst_11 {dimension_numbers = #tpu.dot_dimension_numbers<[2], [1], [1], [2], [0, 0, 0, 1, 1, 2], [0], [0]>} : vector<8x16x64xf32>, vector<8x64x8xf32>, vector<8x16x8xf32> -> vector<8x16x8xf32>
    "tpu.trace_stop"() : () -> ()
    %c0_12 = arith.constant 0 : index
    %c0_13 = arith.constant 0 : index
    %c0_14 = arith.constant 0 : index
    %14 = vector.load %arg5[%c0_12, %c0_13, %c0_14] : memref<8x64x8xf32, #tpu.memory_space<vmem>>, vector<8x64x8xf32>
    "tpu.trace_start"() <{level = 10 : i32, message = "hmc,hcd->hmd"}> : () -> ()
    %cst_15 = arith.constant dense<0.000000e+00> : vector<8x16x8xf32>
    %15 = tpu.matmul %9, %14, %cst_15 {dimension_numbers = #tpu.dot_dimension_numbers<[2], [1], [1], [2], [0, 0, 0, 1, 1, 2], [0], [0]>} : vector<8x16x64xf32>, vector<8x64x8xf32>, vector<8x16x8xf32> -> vector<8x16x8xf32>
    "tpu.trace_stop"() : () -> ()
    "tpu.trace_start"() <{level = 10 : i32, message = "hnd,hmd->hnm"}> : () -> ()
    %cst_16 = arith.constant dense<0.000000e+00> : vector<8x16x16xf32>
    %16 = tpu.matmul %11, %13, %cst_16 {dimension_numbers = #tpu.dot_dimension_numbers<[2], [2], [1], [1], [0, 0, 0, 1, 1, 1], [0], [0]>} : vector<8x16x8xf32>, vector<8x16x8xf32>, vector<8x16x16xf32> -> vector<8x16x16xf32>
    "tpu.trace_stop"() : () -> ()
    %cst_17 = arith.constant dense<0xFF800000> : vector<8x16xf32>
    %17 = vector.multi_reduction <maximumf>, %16, %cst_17 [2] : vector<8x16x16xf32> to vector<8x16xf32>
    %18 = vector.shape_cast %17 : vector<8x16xf32> to vector<8x16x1xf32>
    %19 = vector.broadcast %18 : vector<8x16x1xf32> to vector<8x16x16xf32>
    %20 = arith.subf %16, %19 : vector<8x16x16xf32>
    %21 = math.exp %20 : vector<8x16x16xf32>
    %cst_18 = arith.constant dense<0.000000e+00> : vector<8x16xf32>
    %22 = vector.multi_reduction <add>, %21, %cst_18 [2] : vector<8x16x16xf32> to vector<8x16xf32>
    %23 = vector.shape_cast %22 : vector<8x16xf32> to vector<8x16x1xf32>
    %24 = tpu.reciprocal %23 : vector<8x16x1xf32> -> vector<8x16x1xf32>
    %25 = vector.broadcast %24 : vector<8x16x1xf32> to vector<8x16x16xf32>
    %26 = arith.mulf %21, %25 : vector<8x16x16xf32>
    "tpu.trace_start"() <{level = 10 : i32, message = "hnm,hmd->hnd"}> : () -> ()
    %cst_19 = arith.constant dense<0.000000e+00> : vector<8x16x8xf32>
    %27 = tpu.matmul %26, %15, %cst_19 {dimension_numbers = #tpu.dot_dimension_numbers<[2], [1], [1], [2], [0, 0, 0, 1, 1, 2], [0], [0]>} : vector<8x16x16xf32>, vector<8x16x8xf32>, vector<8x16x8xf32> -> vector<8x16x8xf32>
    "tpu.trace_stop"() : () -> ()
    %c0_20 = arith.constant 0 : index
    %c0_21 = arith.constant 0 : index
    %c0_22 = arith.constant 0 : index
    %28 = vector.load %arg6[%c0_20, %c0_21, %c0_22] : memref<8x8x128xf32, #tpu.memory_space<vmem>>, vector<8x8x128xf32>
    "tpu.trace_start"() <{level = 10 : i32, message = "hnd,hdc->hnc"}> : () -> ()
    %cst_23 = arith.constant dense<0.000000e+00> : vector<8x16x128xf32>
    %29 = tpu.matmul %27, %28, %cst_23 {dimension_numbers = #tpu.dot_dimension_numbers<[2], [1], [1], [2], [0, 0, 0, 1, 1, 2], [0], [0]>} : vector<8x16x8xf32>, vector<8x8x128xf32>, vector<8x16x128xf32> -> vector<8x16x128xf32>
    "tpu.trace_stop"() : () -> ()
    %cst_24 = arith.constant dense<0.000000e+00> : vector<16x128xf32>
    %30 = vector.multi_reduction <add>, %29, %cst_24 [0] : vector<8x16x128xf32> to vector<16x128xf32>
    %c0_25 = arith.constant 0 : index
    %c0_26 = arith.constant 0 : index
    %31 = vector.load %arg7[%c0_25, %c0_26] : memref<1x128xf32, #tpu.memory_space<vmem>>, vector<1x128xf32>
    %32 = vector.broadcast %31 : vector<1x128xf32> to vector<16x128xf32>
    %33 = arith.addf %30, %32 : vector<16x128xf32>
    %c0_27 = arith.constant 0 : index
    %c0_28 = arith.constant 0 : index
    %c0_29 = arith.constant 0 : index
    %34 = vector.load %arg8[%c0_27, %c0_28, %c0_29] : memref<1x16x128xf32, #tpu.memory_space<vmem>>, vector<1x16x128xf32>
    %35 = vector.shape_cast %34 : vector<1x16x128xf32> to vector<16x128xf32>
    %36 = vector.shape_cast %33 : vector<16x128xf32> to vector<1x16x128xf32>
    tpu.vector_store %arg8[%c0_27, %c0_28, %c0_29], %36 {strides = array<i32>} : memref<1x16x128xf32, #tpu.memory_space<vmem>>, vector<1x16x128xf32>,
    return
  }
  func.func @transform_0(%arg0: i32) -> (i32, i32, i32) {
    %c0_i32 = arith.constant 0 : i32
    %c0_i32_0 = arith.constant 0 : i32
    %c0_i32_1 = arith.constant 0 : i32
    return %arg0, %c0_i32, %c0_i32_0 : i32, i32, i32
  }
  func.func @transform_1(%arg0: i32) -> (i32, i32, i32) {
    %c0_i32 = arith.constant 0 : i32
    %c0_i32_0 = arith.constant 0 : i32
    %c0_i32_1 = arith.constant 0 : i32
    return %arg0, %c0_i32, %c0_i32_0 : i32, i32, i32
  }
  func.func @transform_2(%arg0: i32) -> (i32, i32, i32) {
    %c0_i32 = arith.constant 0 : i32
    %c0_i32_0 = arith.constant 0 : i32
    %c0_i32_1 = arith.constant 0 : i32
    %c0_i32_2 = arith.constant 0 : i32
    return %c0_i32, %c0_i32_0, %c0_i32_1 : i32, i32, i32
  }
  func.func @transform_3(%arg0: i32) -> (i32, i32, i32) {
    %c0_i32 = arith.constant 0 : i32
    %c0_i32_0 = arith.constant 0 : i32
    %c0_i32_1 = arith.constant 0 : i32
    %c0_i32_2 = arith.constant 0 : i32
    return %c0_i32, %c0_i32_0, %c0_i32_1 : i32, i32, i32
  }
  func.func @transform_4(%arg0: i32) -> (i32, i32, i32) {
    %c0_i32 = arith.constant 0 : i32
    %c0_i32_0 = arith.constant 0 : i32
    %c0_i32_1 = arith.constant 0 : i32
    %c0_i32_2 = arith.constant 0 : i32
    return %c0_i32, %c0_i32_0, %c0_i32_1 : i32, i32, i32
  }
  func.func @transform_5(%arg0: i32) -> (i32, i32, i32) {
    %c0_i32 = arith.constant 0 : i32
    %c0_i32_0 = arith.constant 0 : i32
    %c0_i32_1 = arith.constant 0 : i32
    %c0_i32_2 = arith.constant 0 : i32
    return %c0_i32, %c0_i32_0, %c0_i32_1 : i32, i32, i32
  }
  func.func @transform_6(%arg0: i32) -> (i32, i32) {
    %c0_i32 = arith.constant 0 : i32
    %c0_i32_0 = arith.constant 0 : i32
    %c0_i32_1 = arith.constant 0 : i32
    return %c0_i32, %c0_i32_0 : i32, i32
  }
  func.func @transform_7(%arg0: i32) -> (i32, i32, i32) {
    %c0_i32 = arith.constant 0 : i32
    %c0_i32_0 = arith.constant 0 : i32
    %c0_i32_1 = arith.constant 0 : i32
    return %arg0, %c0_i32, %c0_i32_0 : i32, i32, i32
  }
}

</mosaic_0001>

<llo_original>
// kernel: tpu_custom_call.1
$region0: #{tpu_custom_call.1}
  #allocation0 [shape = 'u32[]', space=smem, size = 0x4, offset = 0x4, fixed_abs, tag = 'smem constant byte address 0x4 - core index']
  #allocation1 [shape = 'u32[144,128]{1,0:T(1,128)}', space=vmem, size = 0x12000, scoped, tag = 'internal scratch']
  %s0 = inlined_call_operand.vmem [shape: f32[2,16,64], index: 0, kind: input, shape index: {}]
  %s1 = inlined_call_operand.vmem [shape: f32[2,16,64], index: 1, kind: input, shape index: {}]
  %s2 = inlined_call_operand.vmem [shape: f32[8,64,8], index: 2, kind: input, shape index: {}]
  %s3 = inlined_call_operand.vmem [shape: f32[8,64,8], index: 3, kind: input, shape index: {}]
  %s4 = inlined_call_operand.vmem [shape: f32[8,64,8], index: 4, kind: input, shape index: {}]
  %s5 = inlined_call_operand.vmem [shape: f32[8,8,128], index: 5, kind: input, shape index: {}]
  %s6 = inlined_call_operand.vmem [shape: f32[1,128], index: 6, kind: input, shape index: {}]
  %s7 = inlined_call_operand.hbm [shape: f32[2,16,128], index: 7, kind: output, shape index: {}]
  %s8 = sld [smem:[#allocation0]]
  $region61: #{tpu_custom_call.1} parent=0
    _
  %s10 = ssub.s32 1, %s8
  %s11 = scalar_select 0, %s10, %s8
  $region1: #{tpu_custom_call.1} parent=0
    #allocation2 [shape = 'u8[16384]{0}', space=vmem, size = 0x4000, scoped, tag = 'output window, operand 0']
    #allocation3 [shape = 's32[2]{0}', space=sflag, size = 0x8, scoped, tag = 'scoped memory for tpu_custom_call.1']
    %12 = vsyncpa [#allocation3], 0
    %s13 = scalar_lea.sflag [#allocation3], 1
    %14 = vsyncpa %s13, 0
    loop: start=0, step=1, limit=4
    $region2: #{tpu_custom_call.1} parent=1 // loop_pre_header
      _
    $region3: #{tpu_custom_call.1} parent=1 // loop_header
      %s16 = sphi 0, %s20
      %p17 = scmp.ge.s32.totalorder %s16, 4
      %s26 = sphi 0, %s28
      %s29 = sphi 0, %s26
      %s30 = sphi 0, %s29
      %s46 = sphi 0, %s30
      %s52 = sphi 0, %s54
      %s55 = sphi 0, %s52
      %s56 = sphi 0, %s55
      %s72 = sphi 0, %s56
      %s76 = sphi 0, %s76
      %s78 = sphi 0, %s76
      %s79 = sphi 0, %s78
      %s93 = sphi 0, %s79
      %s97 = sphi 0, %s97
      %s99 = sphi 0, %s97
      %s100 = sphi 0, %s99
      %s114 = sphi 0, %s100
      %s118 = sphi 0, %s118
      %s120 = sphi 0, %s118
      %s121 = sphi 0, %s120
      %s135 = sphi 0, %s121
      %s139 = sphi 0, %s139
      %s141 = sphi 0, %s139
      %s142 = sphi 0, %s141
      %s156 = sphi 0, %s142
      %s160 = sphi 0, %s160
      %s162 = sphi 0, %s160
      %s163 = sphi 0, %s162
      %s177 = sphi 0, %s163
      %s183 = sphi 0, %s185
      %s186 = sphi 0, %s183
      %s187 = sphi 0, %s186
      %s203 = sphi 0, %s187
    $region4: #{tpu_custom_call.1} parent=1 // loop_header_branch
      %19 = sbr.rel (%p17) target = $region8
    $region5: #{tpu_custom_call.1} parent=1 // loop_body
      %s21 = ssub.s32 %s16, 1
      %s22 = ssub.s32 %s16, 2
      %s23 = sadd.s32 %s16, 1
      %s24 = ssub.s32 %s16, %s23
      %p25 = scmp.eq.s32.totalorder %s24, 0
      %s27 = sadd.s32 %s26, 1
      %s28 = scalar_select %p25, %s26, %s27
      %p31 = pneg %p25
      %p32 = scmp.eq.s32.totalorder %s16, 1
      %p33 = por %p31, %p32
      %p34 = scmp.ne.s32.totalorder %s26, %s29
      %p35 = scmp.eq.s32.totalorder %s16, 0
      %p36 = por %p34, %p35
      %p37 = scmp.ne.s32.totalorder %s26, %s29
      %p38 = scmp.eq.s32.totalorder %s21, 1
      %p39 = por %p37, %p38
      %p40 = scmp.ne.s32.totalorder %s29, %s30
      %p41 = scmp.eq.s32.totalorder %s21, 0
      %p42 = por %p40, %p41
      %p43 = scmp.ne.s32.totalorder %s29, %s30
      %p44 = scmp.eq.s32.totalorder %s22, 1
      %p45 = por %p43, %p44
      %p47 = scmp.ne.s32.totalorder %s30, %s46
      %p48 = scmp.eq.s32.totalorder %s22, 0
      %p49 = por %p47, %p48
      %s50 = ssub.s32 %s16, %s23
      %p51 = scmp.eq.s32.totalorder %s50, 0
      %s53 = sadd.s32 %s52, 1
      %s54 = scalar_select %p51, %s52, %s53
      %p57 = pneg %p51
      %p58 = scmp.eq.s32.totalorder %s16, 1
      %p59 = por %p57, %p58
      %p60 = scmp.ne.s32.totalorder %s52, %s55
      %p61 = scmp.eq.s32.totalorder %s16, 0
      %p62 = por %p60, %p61
      %p63 = scmp.ne.s32.totalorder %s52, %s55
      %p64 = scmp.eq.s32.totalorder %s21, 1
      %p65 = por %p63, %p64
      %p66 = scmp.ne.s32.totalorder %s55, %s56
      %p67 = scmp.eq.s32.totalorder %s21, 0
      %p68 = por %p66, %p67
      %p69 = scmp.ne.s32.totalorder %s55, %s56
      %p70 = scmp.eq.s32.totalorder %s22, 1
      %p71 = por %p69, %p70
      %p73 = scmp.ne.s32.totalorder %s56, %s72
      %p74 = scmp.eq.s32.totalorder %s22, 0
      %p75 = por %p73, %p74
      %s77 = sadd.s32 %s76, 1
      %p80 = scmp.eq.s32.totalorder %s16, 1
      %p81 = scmp.ne.s32.totalorder %s76, %s78
      %p82 = scmp.eq.s32.totalorder %s16, 0
      %p83 = por %p81, %p82
      %p84 = scmp.ne.s32.totalorder %s76, %s78
      %p85 = scmp.eq.s32.totalorder %s21, 1
      %p86 = por %p84, %p85
      %p87 = scmp.ne.s32.totalorder %s78, %s79
      %p88 = scmp.eq.s32.totalorder %s21, 0
      %p89 = por %p87, %p88
      %p90 = scmp.ne.s32.totalorder %s78, %s79
      %p91 = scmp.eq.s32.totalorder %s22, 1
      %p92 = por %p90, %p91
      %p94 = scmp.ne.s32.totalorder %s79, %s93
      %p95 = scmp.eq.s32.totalorder %s22, 0
      %p96 = por %p94, %p95
      %s98 = sadd.s32 %s97, 1
      %p101 = scmp.eq.s32.totalorder %s16, 1
      %p102 = scmp.ne.s32.totalorder %s97, %s99
      %p103 = scmp.eq.s32.totalorder %s16, 0
      %p104 = por %p102, %p103
      %p105 = scmp.ne.s32.totalorder %s97, %s99
      %p106 = scmp.eq.s32.totalorder %s21, 1
      %p107 = por %p105, %p106
      %p108 = scmp.ne.s32.totalorder %s99, %s100
      %p109 = scmp.eq.s32.totalorder %s21, 0
      %p110 = por %p108, %p109
      %p111 = scmp.ne.s32.totalorder %s99, %s100
      %p112 = scmp.eq.s32.totalorder %s22, 1
      %p113 = por %p111, %p112
      %p115 = scmp.ne.s32.totalorder %s100, %s114
      %p116 = scmp.eq.s32.totalorder %s22, 0
      %p117 = por %p115, %p116
      %s119 = sadd.s32 %s118, 1
      %p122 = scmp.eq.s32.totalorder %s16, 1
      %p123 = scmp.ne.s32.totalorder %s118, %s120
      %p124 = scmp.eq.s32.totalorder %s16, 0
      %p125 = por %p123, %p124
      %p126 = scmp.ne.s32.totalorder %s118, %s120
      %p127 = scmp.eq.s32.totalorder %s21, 1
      %p128 = por %p126, %p127
      %p129 = scmp.ne.s32.totalorder %s120, %s121
      %p130 = scmp.eq.s32.totalorder %s21, 0
      %p131 = por %p129, %p130
      %p132 = scmp.ne.s32.totalorder %s120, %s121
      %p133 = scmp.eq.s32.totalorder %s22, 1
      %p134 = por %p132, %p133
      %p136 = scmp.ne.s32.totalorder %s121, %s135
      %p137 = scmp.eq.s32.totalorder %s22, 0
      %p138 = por %p136, %p137
      %s140 = sadd.s32 %s139, 1
      %p143 = scmp.eq.s32.totalorder %s16, 1
      %p144 = scmp.ne.s32.totalorder %s139, %s141
      %p145 = scmp.eq.s32.totalorder %s16, 0
      %p146 = por %p144, %p145
      %p147 = scmp.ne.s32.totalorder %s139, %s141
      %p148 = scmp.eq.s32.totalorder %s21, 1
      %p149 = por %p147, %p148
      %p150 = scmp.ne.s32.totalorder %s141, %s142
      %p151 = scmp.eq.s32.totalorder %s21, 0
      %p152 = por %p150, %p151
      %p153 = scmp.ne.s32.totalorder %s141, %s142
      %p154 = scmp.eq.s32.totalorder %s22, 1
      %p155 = por %p153, %p154
      %p157 = scmp.ne.s32.totalorder %s142, %s156
      %p158 = scmp.eq.s32.totalorder %s22, 0
      %p159 = por %p157, %p158
      %s161 = sadd.s32 %s160, 1
      %p164 = scmp.eq.s32.totalorder %s16, 1
      %p165 = scmp.ne.s32.totalorder %s160, %s162
      %p166 = scmp.eq.s32.totalorder %s16, 0
      %p167 = por %p165, %p166
      %p168 = scmp.ne.s32.totalorder %s160, %s162
      %p169 = scmp.eq.s32.totalorder %s21, 1
      %p170 = por %p168, %p169
      %p171 = scmp.ne.s32.totalorder %s162, %s163
      %p172 = scmp.eq.s32.totalorder %s21, 0
      %p173 = por %p171, %p172
      %p174 = scmp.ne.s32.totalorder %s162, %s163
      %p175 = scmp.eq.s32.totalorder %s22, 1
      %p176 = por %p174, %p175
      %p178 = scmp.ne.s32.totalorder %s163, %s177
      %p179 = scmp.eq.s32.totalorder %s22, 0
      %p180 = por %p178, %p179
      %s181 = ssub.s32 %s16, %s23
      %p182 = scmp.eq.s32.totalorder %s181, 0
      %s184 = sadd.s32 %s183, 1
      %s185 = scalar_select %p182, %s183, %s184
      %p188 = pneg %p182
      %p189 = scmp.eq.s32.totalorder %s16, 1
      %p190 = por %p188, %p189
      %p191 = scmp.ne.s32.totalorder %s183, %s186
      %p192 = scmp.eq.s32.totalorder %s16, 0
      %p193 = por %p191, %p192
      %p194 = scmp.ne.s32.totalorder %s183, %s186
      %p195 = scmp.eq.s32.totalorder %s21, 1
      %p196 = por %p194, %p195
      %p197 = scmp.ne.s32.totalorder %s186, %s187
      %p198 = scmp.eq.s32.totalorder %s21, 0
      %p199 = por %p197, %p198
      %p200 = scmp.ne.s32.totalorder %s186, %s187
      %p201 = scmp.eq.s32.totalorder %s22, 1
      %p202 = por %p200, %p201
      %p204 = scmp.ne.s32.totalorder %s187, %s203
      %p205 = scmp.eq.s32.totalorder %s22, 0
      %p206 = por %p204, %p205
      %p207 = scmp.le.s32.totalorder 1, %s16
      %p208 = scmp.lt.s32.totalorder %s16, 3
      %p209 = pnand %p207, %p208
      %p210 = pneg %p209
      // Predicated region
      $region9: #{tpu_custom_call.1} parent=5 // pred_check
        _
      $region10: #{tpu_custom_call.1} parent=5 // pred_check_branch
        %212 = sbr.rel (%p209) target = $region12
      $region11: #{tpu_custom_call.1} parent=5 // pred_region
        %s213 = ssub.s32 %s16, 1
        // Predicated region
        $region13: #{tpu_custom_call.1} parent=11 // pred_check
          %p214 = pneg %p89
        $region14: #{tpu_custom_call.1} parent=11 // pred_check_branch
          %216 = sbr.rel (%p214) target = $region16
        $region15: #{tpu_custom_call.1} parent=11 // pred_region
          _
        $region16: #{tpu_custom_call.1} parent=11 // pred_fallthru
          _
        // Predicated region
        $region17: #{tpu_custom_call.1} parent=11 // pred_check
          %p217 = pneg %p110
        $region18: #{tpu_custom_call.1} parent=11 // pred_check_branch
          %219 = sbr.rel (%p217) target = $region20
        $region19: #{tpu_custom_call.1} parent=11 // pred_region
          _
        $region20: #{tpu_custom_call.1} parent=11 // pred_fallthru
          _
        // Predicated region
        $region21: #{tpu_custom_call.1} parent=11 // pred_check
          %p220 = pneg %p131
        $region22: #{tpu_custom_call.1} parent=11 // pred_check_branch
          %222 = sbr.rel (%p220) target = $region24
        $region23: #{tpu_custom_call.1} parent=11 // pred_region
          _
        $region24: #{tpu_custom_call.1} parent=11 // pred_fallthru
          _
        // Predicated region
        $region25: #{tpu_custom_call.1} parent=11 // pred_check
          %p223 = pneg %p152
        $region26: #{tpu_custom_call.1} parent=11 // pred_check_branch
          %225 = sbr.rel (%p223) target = $region28
        $region27: #{tpu_custom_call.1} parent=11 // pred_region
          _
        $region28: #{tpu_custom_call.1} parent=11 // pred_fallthru
          _
        // Predicated region
        $region29: #{tpu_custom_call.1} parent=11 // pred_check
          %p226 = pneg %p173
        $region30: #{tpu_custom_call.1} parent=11 // pred_check_branch
          %228 = sbr.rel (%p226) target = $region32
        $region31: #{tpu_custom_call.1} parent=11 // pred_region
          _
        $region32: #{tpu_custom_call.1} parent=11 // pred_fallthru
          _
      $region12: #{tpu_custom_call.1} parent=5 // pred_fallthru
        _
      %p229 = scmp.lt.s32.totalorder %s16, 2
      // Predicated region
      $region33: #{tpu_custom_call.1} parent=5 // pred_check
        %p230 = pneg %p229
      $region34: #{tpu_custom_call.1} parent=5 // pred_check_branch
        %232 = sbr.rel (%p230) target = $region36
      $region35: #{tpu_custom_call.1} parent=5 // pred_region
        // Predicated region
        $region37: #{tpu_custom_call.1} parent=35 // pred_check
          %p233 = pneg %p36
        $region38: #{tpu_custom_call.1} parent=35 // pred_check_branch
          %235 = sbr.rel (%p233) target = $region40
        $region39: #{tpu_custom_call.1} parent=35 // pred_region
          %p236 = scmp.lt.s32.totalorder %s16, 1
          %s237 = scalar_select %p236, %s16, 1
          %s238 = smul.addr %s237, 2
          %s239 = smul.addr %s238, 8
          %s240 = scalar_lea.vmem %s0, %s239
        $region40: #{tpu_custom_call.1} parent=35 // pred_fallthru
          _
        // Predicated region
        $region41: #{tpu_custom_call.1} parent=35 // pred_check
          %p241 = pneg %p62
        $region42: #{tpu_custom_call.1} parent=35 // pred_check_branch
          %243 = sbr.rel (%p241) target = $region44
        $region43: #{tpu_custom_call.1} parent=35 // pred_region
          %p244 = scmp.lt.s32.totalorder %s16, 1
          %s245 = scalar_select %p244, %s16, 1
          %s246 = smul.addr %s245, 2
          %s247 = smul.addr %s246, 8
          %s248 = scalar_lea.vmem %s1, %s247
        $region44: #{tpu_custom_call.1} parent=35 // pred_fallthru
          _
      $region36: #{tpu_custom_call.1} parent=5 // pred_fallthru
        _
      %p249 = scmp.le.s32.totalorder 1, %s16
      %p250 = scmp.lt.s32.totalorder %s16, 3
      %p251 = pnand %p249, %p250
      %p252 = pneg %p251
      // Predicated region
      $region45: #{tpu_custom_call.1} parent=5 // pred_check
        _
      $region46: #{tpu_custom_call.1} parent=5 // pred_check_branch
        %254 = sbr.rel (%p251) target = $region48
      $region47: #{tpu_custom_call.1} parent=5 // pred_region
        %s255 = ssub.s32 %s16, 1
        %p256 = scmp.lt.s32.totalorder %s21, 1
        %s257 = scalar_select %p256, %s21, 1
        %s258 = smul.addr %s257, 2
        %s259 = smul.addr %s258, 8
        %s260 = scalar_lea.vmem %s0, %s259
        %p261 = pneg %p42
        %p262 = pneg %p39
        %p263 = scmp.lt.s32.totalorder %s21, 1
        %s264 = scalar_select %p263, %s21, 1
        %s265 = smul.addr %s264, 2
        %s266 = smul.addr %s265, 8
        %s267 = scalar_lea.vmem %s1, %s266
        %p268 = pneg %p68
        %p269 = pneg %p65
        %p270 = pneg %p89
        %p271 = pneg %p86
        %p272 = pneg %p110
        %p273 = pneg %p107
        %p274 = pneg %p131
        %p275 = pneg %p128
        %p276 = pneg %p152
        %p277 = pneg %p149
        %p278 = pneg %p173
        %p279 = pneg %p170
        %p280 = pneg %p199
        %p281 = pneg %p196
        %s282 = sand.u32 %s186, 1
        %s283 = scalar_lea.sflag [#allocation3], %s282
        %s284 = sand.u32 %s186, 1
        %s285 = smul.addr %s284, 16
        %s286 = scalar_lea.vmem [#allocation2], %s285
        %p287 = scmp.lt.s32.totalorder %s21, 1
        %s288 = scalar_select %p287, %s21, 1
        %s289 = smul.addr %s288, 2
        %s290 = smul.addr %s289, 8
        %s291 = scalar_lea.vmem %s0, %s290
        %p292 = scmp.lt.s32.totalorder %s21, 1
        %s293 = scalar_select %p292, %s21, 1
        %s294 = smul.addr %s293, 2
        %s295 = smul.addr %s294, 8
        %s296 = scalar_lea.vmem %s1, %s295
        %v297 = vld [vmem:[%s291] sm:$0xff]
        %v298 = vld [vmem:[%s291 + $0x8] sm:$0xff]
        %v299 = vld [vmem:[%s296] sm:$0xff]
        %v300 = vld [vmem:[%s296 + $0x8] sm:$0xff]
        %v301 = vld [vmem:[%s2] sm:$0xff]
        %v302 = vld [vmem:[%s2 + $0x8] sm:$0xff]
        %v303 = vld [vmem:[%s2 + $0x10] sm:$0xff]
        %v304 = vld [vmem:[%s2 + $0x18] sm:$0xff]
        %v305 = vld [vmem:[%s2 + $0x20] sm:$0xff]
        %v306 = vld [vmem:[%s2 + $0x28] sm:$0xff]
        %v307 = vld [vmem:[%s2 + $0x30] sm:$0xff]
        %v308 = vld [vmem:[%s2 + $0x38] sm:$0xff]
        %v309 = vld [vmem:[%s2 + $0x40] sm:$0xff]
        %v310 = vld [vmem:[%s2 + $0x48] sm:$0xff]
        %v311 = vld [vmem:[%s2 + $0x50] sm:$0xff]
        %v312 = vld [vmem:[%s2 + $0x58] sm:$0xff]
        %v313 = vld [vmem:[%s2 + $0x60] sm:$0xff]
        %v314 = vld [vmem:[%s2 + $0x68] sm:$0xff]
        %v315 = vld [vmem:[%s2 + $0x70] sm:$0xff]
        %v316 = vld [vmem:[%s2 + $0x78] sm:$0xff]
        %v317 = vld [vmem:[%s2 + $0x80] sm:$0xff]
        %v318 = vld [vmem:[%s2 + $0x88] sm:$0xff]
        %v319 = vld [vmem:[%s2 + $0x90] sm:$0xff]
        %v320 = vld [vmem:[%s2 + $0x98] sm:$0xff]
        %v321 = vld [vmem:[%s2 + $0xa0] sm:$0xff]
        %v322 = vld [vmem:[%s2 + $0xa8] sm:$0xff]
        %v323 = vld [vmem:[%s2 + $0xb0] sm:$0xff]
        %v324 = vld [vmem:[%s2 + $0xb8] sm:$0xff]
        %v325 = vld [vmem:[%s2 + $0xc0] sm:$0xff]
        %v326 = vld [vmem:[%s2 + $0xc8] sm:$0xff]
        %v327 = vld [vmem:[%s2 + $0xd0] sm:$0xff]
        %v328 = vld [vmem:[%s2 + $0xd8] sm:$0xff]
        %v329 = vld [vmem:[%s2 + $0xe0] sm:$0xff]
        %v330 = vld [vmem:[%s2 + $0xe8] sm:$0xff]
        %v331 = vld [vmem:[%s2 + $0xf0] sm:$0xff]
        %v332 = vld [vmem:[%s2 + $0xf8] sm:$0xff]
        %v333 = vld [vmem:[%s2 + $0x100] sm:$0xff]
        %v334 = vld [vmem:[%s2 + $0x108] sm:$0xff]
        %v335 = vld [vmem:[%s2 + $0x110] sm:$0xff]
        %v336 = vld [vmem:[%s2 + $0x118] sm:$0xff]
        %v337 = vld [vmem:[%s2 + $0x120] sm:$0xff]
        %v338 = vld [vmem:[%s2 + $0x128] sm:$0xff]
        %v339 = vld [vmem:[%s2 + $0x130] sm:$0xff]
        %v340 = vld [vmem:[%s2 + $0x138] sm:$0xff]
        %v341 = vld [vmem:[%s2 + $0x140] sm:$0xff]
        %v342 = vld [vmem:[%s2 + $0x148] sm:$0xff]
        %v343 = vld [vmem:[%s2 + $0x150] sm:$0xff]
        %v344 = vld [vmem:[%s2 + $0x158] sm:$0xff]
        %v345 = vld [vmem:[%s2 + $0x160] sm:$0xff]
        %v346 = vld [vmem:[%s2 + $0x168] sm:$0xff]
        %v347 = vld [vmem:[%s2 + $0x170] sm:$0xff]
        %v348 = vld [vmem:[%s2 + $0x178] sm:$0xff]
        %v349 = vld [vmem:[%s2 + $0x180] sm:$0xff]
        %v350 = vld [vmem:[%s2 + $0x188] sm:$0xff]
        %v351 = vld [vmem:[%s2 + $0x190] sm:$0xff]
        %v352 = vld [vmem:[%s2 + $0x198] sm:$0xff]
        %v353 = vld [vmem:[%s2 + $0x1a0] sm:$0xff]
        %v354 = vld [vmem:[%s2 + $0x1a8] sm:$0xff]
        %v355 = vld [vmem:[%s2 + $0x1b0] sm:$0xff]
        %v356 = vld [vmem:[%s2 + $0x1b8] sm:$0xff]
        %v357 = vld [vmem:[%s2 + $0x1c0] sm:$0xff]
        %v358 = vld [vmem:[%s2 + $0x1c8] sm:$0xff]
        %v359 = vld [vmem:[%s2 + $0x1d0] sm:$0xff]
        %v360 = vld [vmem:[%s2 + $0x1d8] sm:$0xff]
        %v361 = vld [vmem:[%s2 + $0x1e0] sm:$0xff]
        %v362 = vld [vmem:[%s2 + $0x1e8] sm:$0xff]
        %v363 = vld [vmem:[%s2 + $0x1f0] sm:$0xff]
        %v364 = vld [vmem:[%s2 + $0x1f8] sm:$0xff]
        %vm365 = vcmask 523264
        %v367 = vsel %vm365, %v297, 0
        %v370 = vsel %vm365, %v298, 0
        %372 = vmatprep.subr.mxu0 0.0
        %373 = vmatpush1.msra.mxu0 %v301
        %374 = vmatprep.subr.mxu0 0.0
        %375 = vmatpush1.msra.mxu0 %v302
        %376 = vmatprep.subr.mxu0 0.0
        %377 = vmatpush1.msra.mxu0 %v303
        %378 = vmatprep.subr.mxu0 0.0
        %379 = vmatpush1.msra.mxu0 %v304
        %380 = vmatprep.subr.mxu0 0.0
        %381 = vmatpush1.msra.mxu0 %v305
        %382 = vmatprep.subr.mxu0 0.0
        %383 = vmatpush1.msra.mxu0 %v306
        %384 = vmatprep.subr.mxu0 0.0
        %385 = vmatpush1.msra.mxu0 %v307
        %386 = vmatprep.subr.mxu0 0.0
        %387 = vmatpush1.msra.mxu0 %v308
        %388 = vmatprep.subr.mxu0 0.0
        %389 = vmatpush1.msra.mxu0 0.0
        %390 = vmatprep.subr.mxu0 0.0
        %391 = vmatpush1.msra.mxu0 0.0
        %392 = vmatprep.subr.mxu0 0.0
        %393 = vmatpush1.msra.mxu0 0.0
        %394 = vmatprep.subr.mxu0 0.0
        %395 = vmatpush1.msra.mxu0 0.0
        %396 = vmatprep.subr.mxu0 0.0
        %397 = vmatpush1.msra.mxu0 0.0
        %398 = vmatprep.subr.mxu0 0.0
        %399 = vmatpush1.msra.mxu0 0.0
        %400 = vmatprep.subr.mxu0 0.0
        %401 = vmatpush1.msra.mxu0 0.0
        %402 = vmatprep.subr.mxu0 0.0
        %403 = vmatpush1.msra.mxu0 0.0
        %404 = vmatprep.subr.mxu0 0.0
        %405 = vmatpush1.msra.mxu0 0.0
        %406 = vmatprep.subr.mxu0 0.0
        %407 = vmatpush1.msra.mxu0 0.0
        %408 = vmatprep.subr.mxu0 0.0
        %409 = vmatpush1.msra.mxu0 0.0
        %410 = vmatprep.subr.mxu0 0.0
        %411 = vmatpush1.msra.mxu0 0.0
        %412 = vmatprep.subr.mxu0 0.0
        %413 = vmatpush1.msra.mxu0 0.0
        %414 = vmatprep.subr.mxu0 0.0
        %415 = vmatpush1.msra.mxu0 0.0
        %416 = vmatprep.subr.mxu0 0.0
        %417 = vmatpush1.msra.mxu0 0.0
        %418 = vmatprep.subr.mxu0 0.0
        %419 = vmatpush1.msra.mxu0 0.0
        %420 = vmatprep.subr.mxu0 0.0
        %421 = vmatpush1.msra.mxu0 0.0
        %422 = vmatprep.subr.mxu0 0.0
        %423 = vmatpush1.msra.mxu0 0.0
        %424 = vmatprep.subr.mxu0 0.0
        %425 = vmatpush1.msra.mxu0 0.0
        %426 = vmatprep.subr.mxu0 0.0
        %427 = vmatpush1.msra.mxu0 0.0
        %428 = vmatprep.subr.mxu0 0.0
        %429 = vmatpush1.msra.mxu0 0.0
        %430 = vmatprep.subr.mxu0 0.0
        %431 = vmatpush1.msra.mxu0 0.0
        %432 = vmatprep.subr.mxu0 0.0
        %433 = vmatpush1.msra.mxu0 0.0
        %434 = vmatprep.subr.mxu0 0.0
        %435 = vmatpush1.msra.mxu0 0.0
        %436 = vmatprep.mubr.f32.mxu0 0.0
        %437 = vmatmul.mubr.f32.gmra.mrb[0].mxu0 %v367
        %v438 = vpop.f32.mrb[0].mxu0
        %v439 = vadd.f32 0.0, %v438
        %v440 = vpop.f32.mrb[0].mxu0
        %441 = vmatprep.mubr.f32.mxu0 0.0
        %442 = vmatmul.mubr.f32.gmra.mrb[0].mxu0 %v370
        %v443 = vpop.f32.mrb[0].mxu0
        %v444 = vadd.f32 0.0, %v443
        %v445 = vpop.f32.mrb[0].mxu0
        %446 = vdwg.mxu0
        %447 = vmatprep.subr.mxu0 0.0
        %448 = vmatpush1.msra.mxu0 %v309
        %449 = vmatprep.subr.mxu0 0.0
        %450 = vmatpush1.msra.mxu0 %v310
        %451 = vmatprep.subr.mxu0 0.0
        %452 = vmatpush1.msra.mxu0 %v311
        %453 = vmatprep.subr.mxu0 0.0
        %454 = vmatpush1.msra.mxu0 %v312
        %455 = vmatprep.subr.mxu0 0.0
        %456 = vmatpush1.msra.mxu0 %v313
        %457 = vmatprep.subr.mxu0 0.0
        %458 = vmatpush1.msra.mxu0 %v314
        %459 = vmatprep.subr.mxu0 0.0
        %460 = vmatpush1.msra.mxu0 %v315
        %461 = vmatprep.subr.mxu0 0.0
        %462 = vmatpush1.msra.mxu0 %v316
        %463 = vmatprep.subr.mxu0 0.0
        %464 = vmatpush1.msra.mxu0 0.0
        %465 = vmatprep.subr.mxu0 0.0
        %466 = vmatpush1.msra.mxu0 0.0
        %467 = vmatprep.subr.mxu0 0.0
        %468 = vmatpush1.msra.mxu0 0.0
        %469 = vmatprep.subr.mxu0 0.0
        %470 = vmatpush1.msra.mxu0 0.0
        %471 = vmatprep.subr.mxu0 0.0
        %472 = vmatpush1.msra.mxu0 0.0
        %473 = vmatprep.subr.mxu0 0.0
        %474 = vmatpush1.msra.mxu0 0.0
        %475 = vmatprep.subr.mxu0 0.0
        %476 = vmatpush1.msra.mxu0 0.0
        %477 = vmatprep.subr.mxu0 0.0
        %478 = vmatpush1.msra.mxu0 0.0
        %479 = vmatprep.subr.mxu0 0.0
        %480 = vmatpush1.msra.mxu0 0.0
        %481 = vmatprep.subr.mxu0 0.0
        %482 = vmatpush1.msra.mxu0 0.0
        %483 = vmatprep.subr.mxu0 0.0
        %484 = vmatpush1.msra.mxu0 0.0
        %485 = vmatprep.subr.mxu0 0.0
        %486 = vmatpush1.msra.mxu0 0.0
        %487 = vmatprep.subr.mxu0 0.0
        %488 = vmatpush1.msra.mxu0 0.0
        %489 = vmatprep.subr.mxu0 0.0
        %490 = vmatpush1.msra.mxu0 0.0
        %491 = vmatprep.subr.mxu0 0.0
        %492 = vmatpush1.msra.mxu0 0.0
        %493 = vmatprep.subr.mxu0 0.0
        %494 = vmatpush1.msra.mxu0 0.0
        %495 = vmatprep.subr.mxu0 0.0
        %496 = vmatpush1.msra.mxu0 0.0
        %497 = vmatprep.subr.mxu0 0.0
        %498 = vmatpush1.msra.mxu0 0.0
        %499 = vmatprep.subr.mxu0 0.0
        %500 = vmatpush1.msra.mxu0 0.0
        %501 = vmatprep.subr.mxu0 0.0
        %502 = vmatpush1.msra.mxu0 0.0
        %503 = vmatprep.subr.mxu0 0.0
        %504 = vmatpush1.msra.mxu0 0.0
        %505 = vmatprep.subr.mxu0 0.0
        %506 = vmatpush1.msra.mxu0 0.0
        %507 = vmatprep.subr.mxu0 0.0
        %508 = vmatpush1.msra.mxu0 0.0
        %509 = vmatprep.subr.mxu0 0.0
        %510 = vmatpush1.msra.mxu0 0.0
        %511 = vmatprep.mubr.f32.mxu0 0.0
        %512 = vmatmul.mubr.f32.gmra.mrb[0].mxu0 %v367
        %v513 = vpop.f32.mrb[0].mxu0
        %v514 = vadd.f32 0.0, %v513
        %v515 = vpop.f32.mrb[0].mxu0
        %516 = vmatprep.mubr.f32.mxu0 0.0
        %517 = vmatmul.mubr.f32.gmra.mrb[0].mxu0 %v370
        %v518 = vpop.f32.mrb[0].mxu0
        %v519 = vadd.f32 0.0, %v518
        %v520 = vpop.f32.mrb[0].mxu0
        %521 = vdwg.mxu0
        %522 = vmatprep.subr.mxu0 0.0
        %523 = vmatpush1.msra.mxu0 %v317
        %524 = vmatprep.subr.mxu0 0.0
        %525 = vmatpush1.msra.mxu0 %v318
        %526 = vmatprep.subr.mxu0 0.0
        %527 = vmatpush1.msra.mxu0 %v319
        %528 = vmatprep.subr.mxu0 0.0
        %529 = vmatpush1.msra.mxu0 %v320
        %530 = vmatprep.subr.mxu0 0.0
        %531 = vmatpush1.msra.mxu0 %v321
        %532 = vmatprep.subr.mxu0 0.0
        %533 = vmatpush1.msra.mxu0 %v322
        %534 = vmatprep.subr.mxu0 0.0
        %535 = vmatpush1.msra.mxu0 %v323
        %536 = vmatprep.subr.mxu0 0.0
        %537 = vmatpush1.msra.mxu0 %v324
        %538 = vmatprep.subr.mxu0 0.0
        %539 = vmatpush1.msra.mxu0 0.0
        %540 = vmatprep.subr.mxu0 0.0
        %541 = vmatpush1.msra.mxu0 0.0
        %542 = vmatprep.subr.mxu0 0.0
        %543 = vmatpush1.msra.mxu0 0.0
        %544 = vmatprep.subr.mxu0 0.0
        %545 = vmatpush1.msra.mxu0 0.0
        %546 = vmatprep.subr.mxu0 0.0
        %547 = vmatpush1.msra.mxu0 0.0
        %548 = vmatprep.subr.mxu0 0.0
        %549 = vmatpush1.msra.mxu0 0.0
        %550 = vmatprep.subr.mxu0 0.0
        %551 = vmatpush1.msra.mxu0 0.0
        %552 = vmatprep.subr.mxu0 0.0
        %553 = vmatpush1.msra.mxu0 0.0
        %554 = vmatprep.subr.mxu0 0.0
        %555 = vmatpush1.msra.mxu0 0.0
        %556 = vmatprep.subr.mxu0 0.0
        %557 = vmatpush1.msra.mxu0 0.0
        %558 = vmatprep.subr.mxu0 0.0
        %559 = vmatpush1.msra.mxu0 0.0
        %560 = vmatprep.subr.mxu0 0.0
        %561 = vmatpush1.msra.mxu0 0.0
        %562 = vmatprep.subr.mxu0 0.0
        %563 = vmatpush1.msra.mxu0 0.0
        %564 = vmatprep.subr.mxu0 0.0
        %565 = vmatpush1.msra.mxu0 0.0
        %566 = vmatprep.subr.mxu0 0.0
        %567 = vmatpush1.msra.mxu0 0.0
        %568 = vmatprep.subr.mxu0 0.0
        %569 = vmatpush1.msra.mxu0 0.0
        %570 = vmatprep.subr.mxu0 0.0
        %571 = vmatpush1.msra.mxu0 0.0
        %572 = vmatprep.subr.mxu0 0.0
        %573 = vmatpush1.msra.mxu0 0.0
        %574 = vmatprep.subr.mxu0 0.0
        %575 = vmatpush1.msra.mxu0 0.0
        %576 = vmatprep.subr.mxu0 0.0
        %577 = vmatpush1.msra.mxu0 0.0
        %578 = vmatprep.subr.mxu0 0.0
        %579 = vmatpush1.msra.mxu0 0.0
        %580 = vmatprep.subr.mxu0 0.0
        %581 = vmatpush1.msra.mxu0 0.0
        %582 = vmatprep.subr.mxu0 0.0
        %583 = vmatpush1.msra.mxu0 0.0
        %584 = vmatprep.subr.mxu0 0.0
        %585 = vmatpush1.msra.mxu0 0.0
        %586 = vmatprep.mubr.f32.mxu0 0.0
        %587 = vmatmul.mubr.f32.gmra.mrb[0].mxu0 %v367
        %v588 = vpop.f32.mrb[0].mxu0
        %v589 = vadd.f32 0.0, %v588
        %v590 = vpop.f32.mrb[0].mxu0
        %591 = vmatprep.mubr.f32.mxu0 0.0
        %592 = vmatmul.mubr.f32.gmra.mrb[0].mxu0 %v370
        %v593 = vpop.f32.mrb[0].mxu0
        %v594 = vadd.f32 0.0, %v593
        %v595 = vpop.f32.mrb[0].mxu0
        %596 = vdwg.mxu0
        %597 = vmatprep.subr.mxu0 0.0
        %598 = vmatpush1.msra.mxu0 %v325
        %599 = vmatprep.subr.mxu0 0.0
        %600 = vmatpush1.msra.mxu0 %v326
        %601 = vmatprep.subr.mxu0 0.0
        %602 = vmatpush1.msra.mxu0 %v327
        %603 = vmatprep.subr.mxu0 0.0
        %604 = vmatpush1.msra.mxu0 %v328
        %605 = vmatprep.subr.mxu0 0.0
        %606 = vmatpush1.msra.mxu0 %v329
        %607 = vmatprep.subr.mxu0 0.0
        %608 = vmatpush1.msra.mxu0 %v330
        %609 = vmatprep.subr.mxu0 0.0
        %610 = vmatpush1.msra.mxu0 %v331
        %611 = vmatprep.subr.mxu0 0.0
        %612 = vmatpush1.msra.mxu0 %v332
        %613 = vmatprep.subr.mxu0 0.0
        %614 = vmatpush1.msra.mxu0 0.0
        %615 = vmatprep.subr.mxu0 0.0
        %616 = vmatpush1.msra.mxu0 0.0
        %617 = vmatprep.subr.mxu0 0.0
        %618 = vmatpush1.msra.mxu0 0.0
        %619 = vmatprep.subr.mxu0 0.0
        %620 = vmatpush1.msra.mxu0 0.0
        %621 = vmatprep.subr.mxu0 0.0
        %622 = vmatpush1.msra.mxu0 0.0
        %623 = vmatprep.subr.mxu0 0.0
        %624 = vmatpush1.msra.mxu0 0.0
        %625 = vmatprep.subr.mxu0 0.0
        %626 = vmatpush1.msra.mxu0 0.0
        %627 = vmatprep.subr.mxu0 0.0
        %628 = vmatpush1.msra.mxu0 0.0
        %629 = vmatprep.subr.mxu0 0.0
        %630 = vmatpush1.msra.mxu0 0.0
        %631 = vmatprep.subr.mxu0 0.0
        %632 = vmatpush1.msra.mxu0 0.0
        %633 = vmatprep.subr.mxu0 0.0
        %634 = vmatpush1.msra.mxu0 0.0
        %635 = vmatprep.subr.mxu0 0.0
        %636 = vmatpush1.msra.mxu0 0.0
        %637 = vmatprep.subr.mxu0 0.0
        %638 = vmatpush1.msra.mxu0 0.0
        %639 = vmatprep.subr.mxu0 0.0
        %640 = vmatpush1.msra.mxu0 0.0
        %641 = vmatprep.subr.mxu0 0.0
        %642 = vmatpush1.msra.mxu0 0.0
        %643 = vmatprep.subr.mxu0 0.0
        %644 = vmatpush1.msra.mxu0 0.0
        %645 = vmatprep.subr.mxu0 0.0
        %646 = vmatpush1.msra.mxu0 0.0
        %647 = vmatprep.subr.mxu0 0.0
        %648 = vmatpush1.msra.mxu0 0.0
        %649 = vmatprep.subr.mxu0 0.0
        %650 = vmatpush1.msra.mxu0 0.0
        %651 = vmatprep.subr.mxu0 0.0
        %652 = vmatpush1.msra.mxu0 0.0
        %653 = vmatprep.subr.mxu0 0.0
        %654 = vmatpush1.msra.mxu0 0.0
        %655 = vmatprep.subr.mxu0 0.0
        %656 = vmatpush1.msra.mxu0 0.0
        %657 = vmatprep.subr.mxu0 0.0
        %658 = vmatpush1.msra.mxu0 0.0
        %659 = vmatprep.subr.mxu0 0.0
        %660 = vmatpush1.msra.mxu0 0.0
        %661 = vmatprep.mubr.f32.mxu0 0.0
        %662 = vmatmul.mubr.f32.gmra.mrb[0].mxu0 %v367
        %v663 = vpop.f32.mrb[0].mxu0
        %v664 = vadd.f32 0.0, %v663
        %v665 = vpop.f32.mrb[0].mxu0
        %666 = vmatprep.mubr.f32.mxu0 0.0
        %667 = vmatmul.mubr.f32.gmra.mrb[0].mxu0 %v370
        %v668 = vpop.f32.mrb[0].mxu0
        %v669 = vadd.f32 0.0, %v668
        %v670 = vpop.f32.mrb[0].mxu0
        %671 = vdwg.mxu0
        %672 = vmatprep.subr.mxu0 0.0
        %673 = vmatpush1.msra.mxu0 %v333
        %674 = vmatprep.subr.mxu0 0.0
        %675 = vmatpush1.msra.mxu0 %v334
        %676 = vmatprep.subr.mxu0 0.0
        %677 = vmatpush1.msra.mxu0 %v335
        %678 = vmatprep.subr.mxu0 0.0
        %679 = vmatpush1.msra.mxu0 %v336
        %680 = vmatprep.subr.mxu0 0.0
        %681 = vmatpush1.msra.mxu0 %v337
        %682 = vmatprep.subr.mxu0 0.0
        %683 = vmatpush1.msra.mxu0 %v338
        %684 = vmatprep.subr.mxu0 0.0
        %685 = vmatpush1.msra.mxu0 %v339
        %686 = vmatprep.subr.mxu0 0.0
        %687 = vmatpush1.msra.mxu0 %v340
        %688 = vmatprep.subr.mxu0 0.0
        %689 = vmatpush1.msra.mxu0 0.0
        %690 = vmatprep.subr.mxu0 0.0
        %691 = vmatpush1.msra.mxu0 0.0
        %692 = vmatprep.subr.mxu0 0.0
        %693 = vmatpush1.msra.mxu0 0.0
        %694 = vmatprep.subr.mxu0 0.0
        %695 = vmatpush1.msra.mxu0 0.0
        %696 = vmatprep.subr.mxu0 0.0
        %697 = vmatpush1.msra.mxu0 0.0
        %698 = vmatprep.subr.mxu0 0.0
        %699 = vmatpush1.msra.mxu0 0.0
        %700 = vmatprep.subr.mxu0 0.0
        %701 = vmatpush1.msra.mxu0 0.0
        %702 = vmatprep.subr.mxu0 0.0
        %703 = vmatpush1.msra.mxu0 0.0
        %704 = vmatprep.subr.mxu0 0.0
        %705 = vmatpush1.msra.mxu0 0.0
        %706 = vmatprep.subr.mxu0 0.0
        %707 = vmatpush1.msra.mxu0 0.0
        %708 = vmatprep.subr.mxu0 0.0
        %709 = vmatpush1.msra.mxu0 0.0
        %710 = vmatprep.subr.mxu0 0.0
        %711 = vmatpush1.msra.mxu0 0.0
        %712 = vmatprep.subr.mxu0 0.0
        %713 = vmatpush1.msra.mxu0 0.0
        %714 = vmatprep.subr.mxu0 0.0
        %715 = vmatpush1.msra.mxu0 0.0
        %716 = vmatprep.subr.mxu0 0.0
        %717 = vmatpush1.msra.mxu0 0.0
        %718 = vmatprep.subr.mxu0 0.0
        %719 = vmatpush1.msra.mxu0 0.0
        %720 = vmatprep.subr.mxu0 0.0
        %721 = vmatpush1.msra.mxu0 0.0
        %722 = vmatprep.subr.mxu0 0.0
        %723 = vmatpush1.msra.mxu0 0.0
        %724 = vmatprep.subr.mxu0 0.0
        %725 = vmatpush1.msra.mxu0 0.0
        %726 = vmatprep.subr.mxu0 0.0
        %727 = vmatpush1.msra.mxu0 0.0
        %728 = vmatprep.subr.mxu0 0.0
        %729 = vmatpush1.msra.mxu0 0.0
        %730 = vmatprep.subr.mxu0 0.0
        %731 = vmatpush1.msra.mxu0 0.0
        %732 = vmatprep.subr.mxu0 0.0
        %733 = vmatpush1.msra.mxu0 0.0
        %734 = vmatprep.subr.mxu0 0.0
        %735 = vmatpush1.msra.mxu0 0.0
        %736 = vmatprep.mubr.f32.mxu0 0.0
        %737 = vmatmul.mubr.f32.gmra.mrb[0].mxu0 %v367
        %v738 = vpop.f32.mrb[0].mxu0
        %v739 = vadd.f32 0.0, %v738
        %v740 = vpop.f32.mrb[0].mxu0
        %741 = vmatprep.mubr.f32.mxu0 0.0
        %742 = vmatmul.mubr.f32.gmra.mrb[0].mxu0 %v370
        %v743 = vpop.f32.mrb[0].mxu0
        %v744 = vadd.f32 0.0, %v743
        %v745 = vpop.f32.mrb[0].mxu0
        %746 = vdwg.mxu0
        %747 = vmatprep.subr.mxu0 0.0
        %748 = vmatpush1.msra.mxu0 %v341
        %749 = vmatprep.subr.mxu0 0.0
        %750 = vmatpush1.msra.mxu0 %v342
        %751 = vmatprep.subr.mxu0 0.0
        %752 = vmatpush1.msra.mxu0 %v343
        %753 = vmatprep.subr.mxu0 0.0
        %754 = vmatpush1.msra.mxu0 %v344
        %755 = vmatprep.subr.mxu0 0.0
        %756 = vmatpush1.msra.mxu0 %v345
        %757 = vmatprep.subr.mxu0 0.0
        %758 = vmatpush1.msra.mxu0 %v346
        %759 = vmatprep.subr.mxu0 0.0
        %760 = vmatpush1.msra.mxu0 %v347
        %761 = vmatprep.subr.mxu0 0.0
        %762 = vmatpush1.msra.mxu0 %v348
        %763 = vmatprep.subr.mxu0 0.0
        %764 = vmatpush1.msra.mxu0 0.0
        %765 = vmatprep.subr.mxu0 0.0
        %766 = vmatpush1.msra.mxu0 0.0
        %767 = vmatprep.subr.mxu0 0.0
        %768 = vmatpush1.msra.mxu0 0.0
        %769 = vmatprep.subr.mxu0 0.0
        %770 = vmatpush1.msra.mxu0 0.0
        %771 = vmatprep.subr.mxu0 0.0
        %772 = vmatpush1.msra.mxu0 0.0
        %773 = vmatprep.subr.mxu0 0.0
        %774 = vmatpush1.msra.mxu0 0.0
        %775 = vmatprep.subr.mxu0 0.0
        %776 = vmatpush1.msra.mxu0 0.0
        %777 = vmatprep.subr.mxu0 0.0
        %778 = vmatpush1.msra.mxu0 0.0
        %779 = vmatprep.subr.mxu0 0.0
        %780 = vmatpush1.msra.mxu0 0.0
        %781 = vmatprep.subr.mxu0 0.0
        %782 = vmatpush1.msra.mxu0 0.0
        %783 = vmatprep.subr.mxu0 0.0
        %784 = vmatpush1.msra.mxu0 0.0
        %785 = vmatprep.subr.mxu0 0.0
        %786 = vmatpush1.msra.mxu0 0.0
        %787 = vmatprep.subr.mxu0 0.0
        %788 = vmatpush1.msra.mxu0 0.0
        %789 = vmatprep.subr.mxu0 0.0
        %790 = vmatpush1.msra.mxu0 0.0
        %791 = vmatprep.subr.mxu0 0.0
        %792 = vmatpush1.msra.mxu0 0.0
        %793 = vmatprep.subr.mxu0 0.0
        %794 = vmatpush1.msra.mxu0 0.0
        %795 = vmatprep.subr.mxu0 0.0
        %796 = vmatpush1.msra.mxu0 0.0
        %797 = vmatprep.subr.mxu0 0.0
        %798 = vmatpush1.msra.mxu0 0.0
        %799 = vmatprep.subr.mxu0 0.0
        %800 = vmatpush1.msra.mxu0 0.0
        %801 = vmatprep.subr.mxu0 0.0
        %802 = vmatpush1.msra.mxu0 0.0
        %803 = vmatprep.subr.mxu0 0.0
        %804 = vmatpush1.msra.mxu0 0.0
        %805 = vmatprep.subr.mxu0 0.0
        %806 = vmatpush1.msra.mxu0 0.0
        %807 = vmatprep.subr.mxu0 0.0
        %808 = vmatpush1.msra.mxu0 0.0
        %809 = vmatprep.subr.mxu0 0.0
        %810 = vmatpush1.msra.mxu0 0.0
        %811 = vmatprep.mubr.f32.mxu0 0.0
        %812 = vmatmul.mubr.f32.gmra.mrb[0].mxu0 %v367
        %v813 = vpop.f32.mrb[0].mxu0
        %v814 = vadd.f32 0.0, %v813
        %v815 = vpop.f32.mrb[0].mxu0
        %816 = vmatprep.mubr.f32.mxu0 0.0
        %817 = vmatmul.mubr.f32.gmra.mrb[0].mxu0 %v370
        %v818 = vpop.f32.mrb[0].mxu0
        %v819 = vadd.f32 0.0, %v818
        %v820 = vpop.f32.mrb[0].mxu0
        %821 = vdwg.mxu0
        %822 = vmatprep.subr.mxu0 0.0
        %823 = vmatpush1.msra.mxu0 %v349
        %824 = vmatprep.subr.mxu0 0.0
        %825 = vmatpush1.msra.mxu0 %v350
        %826 = vmatprep.subr.mxu0 0.0
        %827 = vmatpush1.msra.mxu0 %v351
        %828 = vmatprep.subr.mxu0 0.0
        %829 = vmatpush1.msra.mxu0 %v352
        %830 = vmatprep.subr.mxu0 0.0
        %831 = vmatpush1.msra.mxu0 %v353
        %832 = vmatprep.subr.mxu0 0.0
        %833 = vmatpush1.msra.mxu0 %v354
        %834 = vmatprep.subr.mxu0 0.0
        %835 = vmatpush1.msra.mxu0 %v355
        %836 = vmatprep.subr.mxu0 0.0
        %837 = vmatpush1.msra.mxu0 %v356
        %838 = vmatprep.subr.mxu0 0.0
        %839 = vmatpush1.msra.mxu0 0.0
        %840 = vmatprep.subr.mxu0 0.0
        %841 = vmatpush1.msra.mxu0 0.0
        %842 = vmatprep.subr.mxu0 0.0
        %843 = vmatpush1.msra.mxu0 0.0
        %844 = vmatprep.subr.mxu0 0.0
        %845 = vmatpush1.msra.mxu0 0.0
        %846 = vmatprep.subr.mxu0 0.0
        %847 = vmatpush1.msra.mxu0 0.0
        %848 = vmatprep.subr.mxu0 0.0
        %849 = vmatpush1.msra.mxu0 0.0
        %850 = vmatprep.subr.mxu0 0.0
        %851 = vmatpush1.msra.mxu0 0.0
        %852 = vmatprep.subr.mxu0 0.0
        %853 = vmatpush1.msra.mxu0 0.0
        %854 = vmatprep.subr.mxu0 0.0
        %855 = vmatpush1.msra.mxu0 0.0
        %856 = vmatprep.subr.mxu0 0.0
        %857 = vmatpush1.msra.mxu0 0.0
        %858 = vmatprep.subr.mxu0 0.0
        %859 = vmatpush1.msra.mxu0 0.0
        %860 = vmatprep.subr.mxu0 0.0
        %861 = vmatpush1.msra.mxu0 0.0
        %862 = vmatprep.subr.mxu0 0.0
        %863 = vmatpush1.msra.mxu0 0.0
        %864 = vmatprep.subr.mxu0 0.0
        %865 = vmatpush1.msra.mxu0 0.0
        %866 = vmatprep.subr.mxu0 0.0
        %867 = vmatpush1.msra.mxu0 0.0
        %868 = vmatprep.subr.mxu0 0.0
        %869 = vmatpush1.msra.mxu0 0.0
        %870 = vmatprep.subr.mxu0 0.0
        %871 = vmatpush1.msra.mxu0 0.0
        %872 = vmatprep.subr.mxu0 0.0
        %873 = vmatpush1.msra.mxu0 0.0
        %874 = vmatprep.subr.mxu0 0.0
        %875 = vmatpush1.msra.mxu0 0.0
        %876 = vmatprep.subr.mxu0 0.0
        %877 = vmatpush1.msra.mxu0 0.0
        %878 = vmatprep.subr.mxu0 0.0
        %879 = vmatpush1.msra.mxu0 0.0
        %880 = vmatprep.subr.mxu0 0.0
        %881 = vmatpush1.msra.mxu0 0.0
        %882 = vmatprep.subr.mxu0 0.0
        %883 = vmatpush1.msra.mxu0 0.0
        %884 = vmatprep.subr.mxu0 0.0
        %885 = vmatpush1.msra.mxu0 0.0
        %886 = vmatprep.mubr.f32.mxu0 0.0
        %887 = vmatmul.mubr.f32.gmra.mrb[0].mxu0 %v367
        %v888 = vpop.f32.mrb[0].mxu0
        %v889 = vadd.f32 0.0, %v888
        %v890 = vpop.f32.mrb[0].mxu0
        %891 = vmatprep.mubr.f32.mxu0 0.0
        %892 = vmatmul.mubr.f32.gmra.mrb[0].mxu0 %v370
        %v893 = vpop.f32.mrb[0].mxu0
        %v894 = vadd.f32 0.0, %v893
        %v895 = vpop.f32.mrb[0].mxu0
        %896 = vdwg.mxu0
        %897 = vmatprep.subr.mxu0 0.0
        %898 = vmatpush1.msra.mxu0 %v357
        %899 = vmatprep.subr.mxu0 0.0
        %900 = vmatpush1.msra.mxu0 %v358
        %901 = vmatprep.subr.mxu0 0.0
        %902 = vmatpush1.msra.mxu0 %v359
        %903 = vmatprep.subr.mxu0 0.0
        %904 = vmatpush1.msra.mxu0 %v360
        %905 = vmatprep.subr.mxu0 0.0
        %906 = vmatpush1.msra.mxu0 %v361
        %907 = vmatprep.subr.mxu0 0.0
        %908 = vmatpush1.msra.mxu0 %v362
        %909 = vmatprep.subr.mxu0 0.0
        %910 = vmatpush1.msra.mxu0 %v363
        %911 = vmatprep.subr.mxu0 0.0
        %912 = vmatpush1.msra.mxu0 %v364
        %913 = vmatprep.subr.mxu0 0.0
        %914 = vmatpush1.msra.mxu0 0.0
        %915 = vmatprep.subr.mxu0 0.0
        %916 = vmatpush1.msra.mxu0 0.0
        %917 = vmatprep.subr.mxu0 0.0
        %918 = vmatpush1.msra.mxu0 0.0
        %919 = vmatprep.subr.mxu0 0.0
        %920 = vmatpush1.msra.mxu0 0.0
        %921 = vmatprep.subr.mxu0 0.0
        %922 = vmatpush1.msra.mxu0 0.0
        %923 = vmatprep.subr.mxu0 0.0
        %924 = vmatpush1.msra.mxu0 0.0
        %925 = vmatprep.subr.mxu0 0.0
        %926 = vmatpush1.msra.mxu0 0.0
        %927 = vmatprep.subr.mxu0 0.0
        %928 = vmatpush1.msra.mxu0 0.0
        %929 = vmatprep.subr.mxu0 0.0
        %930 = vmatpush1.msra.mxu0 0.0
        %931 = vmatprep.subr.mxu0 0.0
        %932 = vmatpush1.msra.mxu0 0.0
        %933 = vmatprep.subr.mxu0 0.0
        %934 = vmatpush1.msra.mxu0 0.0
        %935 = vmatprep.subr.mxu0 0.0
        %936 = vmatpush1.msra.mxu0 0.0
        %937 = vmatprep.subr.mxu0 0.0
        %938 = vmatpush1.msra.mxu0 0.0
        %939 = vmatprep.subr.mxu0 0.0
        %940 = vmatpush1.msra.mxu0 0.0
        %941 = vmatprep.subr.mxu0 0.0
        %942 = vmatpush1.msra.mxu0 0.0
        %943 = vmatprep.subr.mxu0 0.0
        %944 = vmatpush1.msra.mxu0 0.0
        %945 = vmatprep.subr.mxu0 0.0
        %946 = vmatpush1.msra.mxu0 0.0
        %947 = vmatprep.subr.mxu0 0.0
        %948 = vmatpush1.msra.mxu0 0.0
        %949 = vmatprep.subr.mxu0 0.0
        %950 = vmatpush1.msra.mxu0 0.0
        %951 = vmatprep.subr.mxu0 0.0
        %952 = vmatpush1.msra.mxu0 0.0
        %953 = vmatprep.subr.mxu0 0.0
        %954 = vmatpush1.msra.mxu0 0.0
        %955 = vmatprep.subr.mxu0 0.0
        %956 = vmatpush1.msra.mxu0 0.0
        %957 = vmatprep.subr.mxu0 0.0
        %958 = vmatpush1.msra.mxu0 0.0
        %959 = vmatprep.subr.mxu0 0.0
        %960 = vmatpush1.msra.mxu0 0.0
        %961 = vmatprep.mubr.f32.mxu0 0.0
        %962 = vmatmul.mubr.f32.gmra.mrb[0].mxu0 %v367
        %v963 = vpop.f32.mrb[0].mxu0
        %v964 = vadd.f32 0.0, %v963
        %v965 = vpop.f32.mrb[0].mxu0
        %966 = vmatprep.mubr.f32.mxu0 0.0
        %967 = vmatmul.mubr.f32.gmra.mrb[0].mxu0 %v370
        %v968 = vpop.f32.mrb[0].mxu0
        %v969 = vadd.f32 0.0, %v968
        %v970 = vpop.f32.mrb[0].mxu0
        %971 = vdwg.mxu0
        %v972 = vld [vmem:[%s3] sm:$0xff]
        %v973 = vld [vmem:[%s3 + $0x8] sm:$0xff]
        %v974 = vld [vmem:[%s3 + $0x10] sm:$0xff]
        %v975 = vld [vmem:[%s3 + $0x18] sm:$0xff]
        %v976 = vld [vmem:[%s3 + $0x20] sm:$0xff]
        %v977 = vld [vmem:[%s3 + $0x28] sm:$0xff]
        %v978 = vld [vmem:[%s3 + $0x30] sm:$0xff]
        %v979 = vld [vmem:[%s3 + $0x38] sm:$0xff]
        %v980 = vld [vmem:[%s3 + $0x40] sm:$0xff]
        %v981 = vld [vmem:[%s3 + $0x48] sm:$0xff]
        %v982 = vld [vmem:[%s3 + $0x50] sm:$0xff]
        %v983 = vld [vmem:[%s3 + $0x58] sm:$0xff]
        %v984 = vld [vmem:[%s3 + $0x60] sm:$0xff]
        %v985 = vld [vmem:[%s3 + $0x68] sm:$0xff]
        %v986 = vld [vmem:[%s3 + $0x70] sm:$0xff]
        %v987 = vld [vmem:[%s3 + $0x78] sm:$0xff]
        %v988 = vld [vmem:[%s3 + $0x80] sm:$0xff]
        %v989 = vld [vmem:[%s3 + $0x88] sm:$0xff]
        %v990 = vld [vmem:[%s3 + $0x90] sm:$0xff]
        %v991 = vld [vmem:[%s3 + $0x98] sm:$0xff]
        %v992 = vld [vmem:[%s3 + $0xa0] sm:$0xff]
        %v993 = vld [vmem:[%s3 + $0xa8] sm:$0xff]
        %v994 = vld [vmem:[%s3 + $0xb0] sm:$0xff]
        %v995 = vld [vmem:[%s3 + $0xb8] sm:$0xff]
        %v996 = vld [vmem:[%s3 + $0xc0] sm:$0xff]
        %v997 = vld [vmem:[%s3 + $0xc8] sm:$0xff]
        %v998 = vld [vmem:[%s3 + $0xd0] sm:$0xff]
        %v999 = vld [vmem:[%s3 + $0xd8] sm:$0xff]
        %v1000 = vld [vmem:[%s3 + $0xe0] sm:$0xff]
        %v1001 = vld [vmem:[%s3 + $0xe8] sm:$0xff]
        %v1002 = vld [vmem:[%s3 + $0xf0] sm:$0xff]
        %v1003 = vld [vmem:[%s3 + $0xf8] sm:$0xff]
        %v1004 = vld [vmem:[%s3 + $0x100] sm:$0xff]
        %v1005 = vld [vmem:[%s3 + $0x108] sm:$0xff]
        %v1006 = vld [vmem:[%s3 + $0x110] sm:$0xff]
        %v1007 = vld [vmem:[%s3 + $0x118] sm:$0xff]
        %v1008 = vld [vmem:[%s3 + $0x120] sm:$0xff]
        %v1009 = vld [vmem:[%s3 + $0x128] sm:$0xff]
        %v1010 = vld [vmem:[%s3 + $0x130] sm:$0xff]
        %v1011 = vld [vmem:[%s3 + $0x138] sm:$0xff]
        %v1012 = vld [vmem:[%s3 + $0x140] sm:$0xff]
        %v1013 = vld [vmem:[%s3 + $0x148] sm:$0xff]
        %v1014 = vld [vmem:[%s3 + $0x150] sm:$0xff]
        %v1015 = vld [vmem:[%s3 + $0x158] sm:$0xff]
        %v1016 = vld [vmem:[%s3 + $0x160] sm:$0xff]
        %v1017 = vld [vmem:[%s3 + $0x168] sm:$0xff]
        %v1018 = vld [vmem:[%s3 + $0x170] sm:$0xff]
        %v1019 = vld [vmem:[%s3 + $0x178] sm:$0xff]
        %v1020 = vld [vmem:[%s3 + $0x180] sm:$0xff]
        %v1021 = vld [vmem:[%s3 + $0x188] sm:$0xff]
        %v1022 = vld [vmem:[%s3 + $0x190] sm:$0xff]
        %v1023 = vld [vmem:[%s3 + $0x198] sm:$0xff]
        %v1024 = vld [vmem:[%s3 + $0x1a0] sm:$0xff]
        %v1025 = vld [vmem:[%s3 + $0x1a8] sm:$0xff]
        %v1026 = vld [vmem:[%s3 + $0x1b0] sm:$0xff]
        %v1027 = vld [vmem:[%s3 + $0x1b8] sm:$0xff]
        %v1028 = vld [vmem:[%s3 + $0x1c0] sm:$0xff]
        %v1029 = vld [vmem:[%s3 + $0x1c8] sm:$0xff]
        %v1030 = vld [vmem:[%s3 + $0x1d0] sm:$0xff]
        %v1031 = vld [vmem:[%s3 + $0x1d8] sm:$0xff]
        %v1032 = vld [vmem:[%s3 + $0x1e0] sm:$0xff]
        %v1033 = vld [vmem:[%s3 + $0x1e8] sm:$0xff]
        %v1034 = vld [vmem:[%s3 + $0x1f0] sm:$0xff]
        %v1035 = vld [vmem:[%s3 + $0x1f8] sm:$0xff]
        %v1037 = vsel %vm365, %v299, 0
        %v1040 = vsel %vm365, %v300, 0
        %1042 = vmatprep.subr.mxu0 0.0
        %1043 = vmatpush1.msra.mxu0 %v972
        %1044 = vmatprep.subr.mxu0 0.0
        %1045 = vmatpush1.msra.mxu0 %v973
        %1046 = vmatprep.subr.mxu0 0.0
        %1047 = vmatpush1.msra.mxu0 %v974
        %1048 = vmatprep.subr.mxu0 0.0
        %1049 = vmatpush1.msra.mxu0 %v975
        %1050 = vmatprep.subr.mxu0 0.0
        %1051 = vmatpush1.msra.mxu0 %v976
        %1052 = vmatprep.subr.mxu0 0.0
        %1053 = vmatpush1.msra.mxu0 %v977
        %1054 = vmatprep.subr.mxu0 0.0
        %1055 = vmatpush1.msra.mxu0 %v978
        %1056 = vmatprep.subr.mxu0 0.0
        %1057 = vmatpush1.msra.mxu0 %v979
        %1058 = vmatprep.subr.mxu0 0.0
        %1059 = vmatpush1.msra.mxu0 0.0
        %1060 = vmatprep.subr.mxu0 0.0
        %1061 = vmatpush1.msra.mxu0 0.0
        %1062 = vmatprep.subr.mxu0 0.0
        %1063 = vmatpush1.msra.mxu0 0.0
        %1064 = vmatprep.subr.mxu0 0.0
        %1065 = vmatpush1.msra.mxu0 0.0
        %1066 = vmatprep.subr.mxu0 0.0
        %1067 = vmatpush1.msra.mxu0 0.0
        %1068 = vmatprep.subr.mxu0 0.0
        %1069 = vmatpush1.msra.mxu0 0.0
        %1070 = vmatprep.subr.mxu0 0.0
        %1071 = vmatpush1.msra.mxu0 0.0
        %1072 = vmatprep.subr.mxu0 0.0
        %1073 = vmatpush1.msra.mxu0 0.0
        %1074 = vmatprep.subr.mxu0 0.0
        %1075 = vmatpush1.msra.mxu0 0.0
        %1076 = vmatprep.subr.mxu0 0.0
        %1077 = vmatpush1.msra.mxu0 0.0
        %1078 = vmatprep.subr.mxu0 0.0
        %1079 = vmatpush1.msra.mxu0 0.0
        %1080 = vmatprep.subr.mxu0 0.0
        %1081 = vmatpush1.msra.mxu0 0.0
        %1082 = vmatprep.subr.mxu0 0.0
        %1083 = vmatpush1.msra.mxu0 0.0
        %1084 = vmatprep.subr.mxu0 0.0
        %1085 = vmatpush1.msra.mxu0 0.0
        %1086 = vmatprep.subr.mxu0 0.0
        %1087 = vmatpush1.msra.mxu0 0.0
        %1088 = vmatprep.subr.mxu0 0.0
        %1089 = vmatpush1.msra.mxu0 0.0
        %1090 = vmatprep.subr.mxu0 0.0
        %1091 = vmatpush1.msra.mxu0 0.0
        %1092 = vmatprep.subr.mxu0 0.0
        %1093 = vmatpush1.msra.mxu0 0.0
        %1094 = vmatprep.subr.mxu0 0.0
        %1095 = vmatpush1.msra.mxu0 0.0
        %1096 = vmatprep.subr.mxu0 0.0
        %1097 = vmatpush1.msra.mxu0 0.0
        %1098 = vmatprep.subr.mxu0 0.0
        %1099 = vmatpush1.msra.mxu0 0.0
        %1100 = vmatprep.subr.mxu0 0.0
        %1101 = vmatpush1.msra.mxu0 0.0
        %1102 = vmatprep.subr.mxu0 0.0
        %1103 = vmatpush1.msra.mxu0 0.0
        %1104 = vmatprep.subr.mxu0 0.0
        %1105 = vmatpush1.msra.mxu0 0.0
        %1106 = vmatprep.mubr.f32.mxu0 0.0
        %1107 = vmatmul.mubr.f32.gmra.mrb[0].mxu0 %v1037
        %v1108 = vpop.f32.mrb[0].mxu0
        %v1109 = vadd.f32 0.0, %v1108
        %v1110 = vpop.f32.mrb[0].mxu0
        %1111 = vmatprep.mubr.f32.mxu0 0.0
        %1112 = vmatmul.mubr.f32.gmra.mrb[0].mxu0 %v1040
        %v1113 = vpop.f32.mrb[0].mxu0
        %v1114 = vadd.f32 0.0, %v1113
        %v1115 = vpop.f32.mrb[0].mxu0
        %1116 = vdwg.mxu0
        %1117 = vmatprep.subr.mxu0 0.0
        %1118 = vmatpush1.msra.mxu0 %v980
        %1119 = vmatprep.subr.mxu0 0.0
        %1120 = vmatpush1.msra.mxu0 %v981
        %1121 = vmatprep.subr.mxu0 0.0
        %1122 = vmatpush1.msra.mxu0 %v982
        %1123 = vmatprep.subr.mxu0 0.0
        %1124 = vmatpush1.msra.mxu0 %v983
        %1125 = vmatprep.subr.mxu0 0.0
        %1126 = vmatpush1.msra.mxu0 %v984
        %1127 = vmatprep.subr.mxu0 0.0
        %1128 = vmatpush1.msra.mxu0 %v985
        %1129 = vmatprep.subr.mxu0 0.0
        %1130 = vmatpush1.msra.mxu0 %v986
        %1131 = vmatprep.subr.mxu0 0.0
        %1132 = vmatpush1.msra.mxu0 %v987
        %1133 = vmatprep.subr.mxu0 0.0
        %1134 = vmatpush1.msra.mxu0 0.0
        %1135 = vmatprep.subr.mxu0 0.0
        %1136 = vmatpush1.msra.mxu0 0.0
        %1137 = vmatprep.subr.mxu0 0.0
        %1138 = vmatpush1.msra.mxu0 0.0
        %1139 = vmatprep.subr.mxu0 0.0
        %1140 = vmatpush1.msra.mxu0 0.0
        %1141 = vmatprep.subr.mxu0 0.0
        %1142 = vmatpush1.msra.mxu0 0.0
        %1143 = vmatprep.subr.mxu0 0.0
        %1144 = vmatpush1.msra.mxu0 0.0
        %1145 = vmatprep.subr.mxu0 0.0
        %1146 = vmatpush1.msra.mxu0 0.0
        %1147 = vmatprep.subr.mxu0 0.0
        %1148 = vmatpush1.msra.mxu0 0.0
        %1149 = vmatprep.subr.mxu0 0.0
        %1150 = vmatpush1.msra.mxu0 0.0
        %1151 = vmatprep.subr.mxu0 0.0
        %1152 = vmatpush1.msra.mxu0 0.0
        %1153 = vmatprep.subr.mxu0 0.0
        %1154 = vmatpush1.msra.mxu0 0.0
        %1155 = vmatprep.subr.mxu0 0.0
        %1156 = vmatpush1.msra.mxu0 0.0
        %1157 = vmatprep.subr.mxu0 0.0
        %1158 = vmatpush1.msra.mxu0 0.0
        %1159 = vmatprep.subr.mxu0 0.0
        %1160 = vmatpush1.msra.mxu0 0.0
        %1161 = vmatprep.subr.mxu0 0.0
        %1162 = vmatpush1.msra.mxu0 0.0
        %1163 = vmatprep.subr.mxu0 0.0
        %1164 = vmatpush1.msra.mxu0 0.0
        %1165 = vmatprep.subr.mxu0 0.0
        %1166 = vmatpush1.msra.mxu0 0.0
        %1167 = vmatprep.subr.mxu0 0.0
        %1168 = vmatpush1.msra.mxu0 0.0
        %1169 = vmatprep.subr.mxu0 0.0
        %1170 = vmatpush1.msra.mxu0 0.0
        %1171 = vmatprep.subr.mxu0 0.0
        %1172 = vmatpush1.msra.mxu0 0.0
        %1173 = vmatprep.subr.mxu0 0.0
        %1174 = vmatpush1.msra.mxu0 0.0
        %1175 = vmatprep.subr.mxu0 0.0
        %1176 = vmatpush1.msra.mxu0 0.0
        %1177 = vmatprep.subr.mxu0 0.0
        %1178 = vmatpush1.msra.mxu0 0.0
        %1179 = vmatprep.subr.mxu0 0.0
        %1180 = vmatpush1.msra.mxu0 0.0
        %1181 = vmatprep.mubr.f32.mxu0 0.0
        %1182 = vmatmul.mubr.f32.gmra.mrb[0].mxu0 %v1037
        %v1183 = vpop.f32.mrb[0].mxu0
        %v1184 = vadd.f32 0.0, %v1183
        %v1185 = vpop.f32.mrb[0].mxu0
        %1186 = vmatprep.mubr.f32.mxu0 0.0
        %1187 = vmatmul.mubr.f32.gmra.mrb[0].mxu0 %v1040
        %v1188 = vpop.f32.mrb[0].mxu0
        %v1189 = vadd.f32 0.0, %v1188
        %v1190 = vpop.f32.mrb[0].mxu0
        %1191 = vdwg.mxu0
        %1192 = vmatprep.subr.mxu0 0.0
        %1193 = vmatpush1.msra.mxu0 %v988
        %1194 = vmatprep.subr.mxu0 0.0
        %1195 = vmatpush1.msra.mxu0 %v989
        %1196 = vmatprep.subr.mxu0 0.0
        %1197 = vmatpush1.msra.mxu0 %v990
        %1198 = vmatprep.subr.mxu0 0.0
        %1199 = vmatpush1.msra.mxu0 %v991
        %1200 = vmatprep.subr.mxu0 0.0
        %1201 = vmatpush1.msra.mxu0 %v992
        %1202 = vmatprep.subr.mxu0 0.0
        %1203 = vmatpush1.msra.mxu0 %v993
        %1204 = vmatprep.subr.mxu0 0.0
        %1205 = vmatpush1.msra.mxu0 %v994
        %1206 = vmatprep.subr.mxu0 0.0
        %1207 = vmatpush1.msra.mxu0 %v995
        %1208 = vmatprep.subr.mxu0 0.0
        %1209 = vmatpush1.msra.mxu0 0.0
        %1210 = vmatprep.subr.mxu0 0.0
        %1211 = vmatpush1.msra.mxu0 0.0
        %1212 = vmatprep.subr.mxu0 0.0
        %1213 = vmatpush1.msra.mxu0 0.0
        %1214 = vmatprep.subr.mxu0 0.0
        %1215 = vmatpush1.msra.mxu0 0.0
        %1216 = vmatprep.subr.mxu0 0.0
        %1217 = vmatpush1.msra.mxu0 0.0
        %1218 = vmatprep.subr.mxu0 0.0
        %1219 = vmatpush1.msra.mxu0 0.0
        %1220 = vmatprep.subr.mxu0 0.0
        %1221 = vmatpush1.msra.mxu0 0.0
        %1222 = vmatprep.subr.mxu0 0.0
        %1223 = vmatpush1.msra.mxu0 0.0
        %1224 = vmatprep.subr.mxu0 0.0
        %1225 = vmatpush1.msra.mxu0 0.0
        %1226 = vmatprep.subr.mxu0 0.0
        %1227 = vmatpush1.msra.mxu0 0.0
        %1228 = vmatprep.subr.mxu0 0.0
        %1229 = vmatpush1.msra.mxu0 0.0
        %1230 = vmatprep.subr.mxu0 0.0
        %1231 = vmatpush1.msra.mxu0 0.0
        %1232 = vmatprep.subr.mxu0 0.0
        %1233 = vmatpush1.msra.mxu0 0.0
        %1234 = vmatprep.subr.mxu0 0.0
        %1235 = vmatpush1.msra.mxu0 0.0
        %1236 = vmatprep.subr.mxu0 0.0
        %1237 = vmatpush1.msra.mxu0 0.0
        %1238 = vmatprep.subr.mxu0 0.0
        %1239 = vmatpush1.msra.mxu0 0.0
        %1240 = vmatprep.subr.mxu0 0.0
        %1241 = vmatpush1.msra.mxu0 0.0
        %1242 = vmatprep.subr.mxu0 0.0
        %1243 = vmatpush1.msra.mxu0 0.0
        %1244 = vmatprep.subr.mxu0 0.0
        %1245 = vmatpush1.msra.mxu0 0.0
        %1246 = vmatprep.subr.mxu0 0.0
        %1247 = vmatpush1.msra.mxu0 0.0
        %1248 = vmatprep.subr.mxu0 0.0
        %1249 = vmatpush1.msra.mxu0 0.0
        %1250 = vmatprep.subr.mxu0 0.0
        %1251 = vmatpush1.msra.mxu0 0.0
        %1252 = vmatprep.subr.mxu0 0.0
        %1253 = vmatpush1.msra.mxu0 0.0
        %1254 = vmatprep.subr.mxu0 0.0
        %1255 = vmatpush1.msra.mxu0 0.0
        %1256 = vmatprep.mubr.f32.mxu0 0.0
        %1257 = vmatmul.mubr.f32.gmra.mrb[0].mxu0 %v1037
        %v1258 = vpop.f32.mrb[0].mxu0
        %v1259 = vadd.f32 0.0, %v1258
        %v1260 = vpop.f32.mrb[0].mxu0
        %1261 = vmatprep.mubr.f32.mxu0 0.0
        %1262 = vmatmul.mubr.f32.gmra.mrb[0].mxu0 %v1040
        %v1263 = vpop.f32.mrb[0].mxu0
        %v1264 = vadd.f32 0.0, %v1263
        %v1265 = vpop.f32.mrb[0].mxu0
        %1266 = vdwg.mxu0
        %1267 = vmatprep.subr.mxu0 0.0
        %1268 = vmatpush1.msra.mxu0 %v996
        %1269 = vmatprep.subr.mxu0 0.0
        %1270 = vmatpush1.msra.mxu0 %v997
        %1271 = vmatprep.subr.mxu0 0.0
        %1272 = vmatpush1.msra.mxu0 %v998
        %1273 = vmatprep.subr.mxu0 0.0
        %1274 = vmatpush1.msra.mxu0 %v999
        %1275 = vmatprep.subr.mxu0 0.0
        %1276 = vmatpush1.msra.mxu0 %v1000
        %1277 = vmatprep.subr.mxu0 0.0
        %1278 = vmatpush1.msra.mxu0 %v1001
        %1279 = vmatprep.subr.mxu0 0.0
        %1280 = vmatpush1.msra.mxu0 %v1002
        %1281 = vmatprep.subr.mxu0 0.0
        %1282 = vmatpush1.msra.mxu0 %v1003
        %1283 = vmatprep.subr.mxu0 0.0
        %1284 = vmatpush1.msra.mxu0 0.0
        %1285 = vmatprep.subr.mxu0 0.0
        %1286 = vmatpush1.msra.mxu0 0.0
        %1287 = vmatprep.subr.mxu0 0.0
        %1288 = vmatpush1.msra.mxu0 0.0
        %1289 = vmatprep.subr.mxu0 0.0
        %1290 = vmatpush1.msra.mxu0 0.0
        %1291 = vmatprep.subr.mxu0 0.0
        %1292 = vmatpush1.msra.mxu0 0.0
        %1293 = vmatprep.subr.mxu0 0.0
        %1294 = vmatpush1.msra.mxu0 0.0
        %1295 = vmatprep.subr.mxu0 0.0
        %1296 = vmatpush1.msra.mxu0 0.0
        %1297 = vmatprep.subr.mxu0 0.0
        %1298 = vmatpush1.msra.mxu0 0.0
        %1299 = vmatprep.subr.mxu0 0.0
        %1300 = vmatpush1.msra.mxu0 0.0
        %1301 = vmatprep.subr.mxu0 0.0
        %1302 = vmatpush1.msra.mxu0 0.0
        %1303 = vmatprep.subr.mxu0 0.0
        %1304 = vmatpush1.msra.mxu0 0.0
        %1305 = vmatprep.subr.mxu0 0.0
        %1306 = vmatpush1.msra.mxu0 0.0
        %1307 = vmatprep.subr.mxu0 0.0
        %1308 = vmatpush1.msra.mxu0 0.0
        %1309 = vmatprep.subr.mxu0 0.0
        %1310 = vmatpush1.msra.mxu0 0.0
        %1311 = vmatprep.subr.mxu0 0.0
        %1312 = vmatpush1.msra.mxu0 0.0
        %1313 = vmatprep.subr.mxu0 0.0
        %1314 = vmatpush1.msra.mxu0 0.0
        %1315 = vmatprep.subr.mxu0 0.0
        %1316 = vmatpush1.msra.mxu0 0.0
        %1317 = vmatprep.subr.mxu0 0.0
        %1318 = vmatpush1.msra.mxu0 0.0
        %1319 = vmatprep.subr.mxu0 0.0
        %1320 = vmatpush1.msra.mxu0 0.0
        %1321 = vmatprep.subr.mxu0 0.0
        %1322 = vmatpush1.msra.mxu0 0.0
        %1323 = vmatprep.subr.mxu0 0.0
        %1324 = vmatpush1.msra.mxu0 0.0
        %1325 = vmatprep.subr.mxu0 0.0
        %1326 = vmatpush1.msra.mxu0 0.0
        %1327 = vmatprep.subr.mxu0 0.0
        %1328 = vmatpush1.msra.mxu0 0.0
        %1329 = vmatprep.subr.mxu0 0.0
        %1330 = vmatpush1.msra.mxu0 0.0
        %1331 = vmatprep.mubr.f32.mxu0 0.0
        %1332 = vmatmul.mubr.f32.gmra.mrb[0].mxu0 %v1037
        %v1333 = vpop.f32.mrb[0].mxu0
        %v1334 = vadd.f32 0.0, %v1333
        %v1335 = vpop.f32.mrb[0].mxu0
        %1336 = vmatprep.mubr.f32.mxu0 0.0
        %1337 = vmatmul.mubr.f32.gmra.mrb[0].mxu0 %v1040
        %v1338 = vpop.f32.mrb[0].mxu0
        %v1339 = vadd.f32 0.0, %v1338
        %v1340 = vpop.f32.mrb[0].mxu0
        %1341 = vdwg.mxu0
        %1342 = vmatprep.subr.mxu0 0.0
        %1343 = vmatpush1.msra.mxu0 %v1004
        %1344 = vmatprep.subr.mxu0 0.0
        %1345 = vmatpush1.msra.mxu0 %v1005
        %1346 = vmatprep.subr.mxu0 0.0
        %1347 = vmatpush1.msra.mxu0 %v1006
        %1348 = vmatprep.subr.mxu0 0.0
        %1349 = vmatpush1.msra.mxu0 %v1007
        %1350 = vmatprep.subr.mxu0 0.0
        %1351 = vmatpush1.msra.mxu0 %v1008
        %1352 = vmatprep.subr.mxu0 0.0
        %1353 = vmatpush1.msra.mxu0 %v1009
        %1354 = vmatprep.subr.mxu0 0.0
        %1355 = vmatpush1.msra.mxu0 %v1010
        %1356 = vmatprep.subr.mxu0 0.0
        %1357 = vmatpush1.msra.mxu0 %v1011
        %1358 = vmatprep.subr.mxu0 0.0
        %1359 = vmatpush1.msra.mxu0 0.0
        %1360 = vmatprep.subr.mxu0 0.0
        %1361 = vmatpush1.msra.mxu0 0.0
        %1362 = vmatprep.subr.mxu0 0.0
        %1363 = vmatpush1.msra.mxu0 0.0
        %1364 = vmatprep.subr.mxu0 0.0
        %1365 = vmatpush1.msra.mxu0 0.0
        %1366 = vmatprep.subr.mxu0 0.0
        %1367 = vmatpush1.msra.mxu0 0.0
        %1368 = vmatprep.subr.mxu0 0.0
        %1369 = vmatpush1.msra.mxu0 0.0
        %1370 = vmatprep.subr.mxu0 0.0
        %1371 = vmatpush1.msra.mxu0 0.0
        %1372 = vmatprep.subr.mxu0 0.0
        %1373 = vmatpush1.msra.mxu0 0.0
        %1374 = vmatprep.subr.mxu0 0.0
        %1375 = vmatpush1.msra.mxu0 0.0
        %1376 = vmatprep.subr.mxu0 0.0
        %1377 = vmatpush1.msra.mxu0 0.0
        %1378 = vmatprep.subr.mxu0 0.0
        %1379 = vmatpush1.msra.mxu0 0.0
        %1380 = vmatprep.subr.mxu0 0.0
        %1381 = vmatpush1.msra.mxu0 0.0
        %1382 = vmatprep.subr.mxu0 0.0
        %1383 = vmatpush1.msra.mxu0 0.0
        %1384 = vmatprep.subr.mxu0 0.0
        %1385 = vmatpush1.msra.mxu0 0.0
        %1386 = vmatprep.subr.mxu0 0.0
        %1387 = vmatpush1.msra.mxu0 0.0
        %1388 = vmatprep.subr.mxu0 0.0
        %1389 = vmatpush1.msra.mxu0 0.0
        %1390 = vmatprep.subr.mxu0 0.0
        %1391 = vmatpush1.msra.mxu0 0.0
        %1392 = vmatprep.subr.mxu0 0.0
        %1393 = vmatpush1.msra.mxu0 0.0
        %1394 = vmatprep.subr.mxu0 0.0
        %1395 = vmatpush1.msra.mxu0 0.0
        %1396 = vmatprep.subr.mxu0 0.0
        %1397 = vmatpush1.msra.mxu0 0.0
        %1398 = vmatprep.subr.mxu0 0.0
        %1399 = vmatpush1.msra.mxu0 0.0
        %1400 = vmatprep.subr.mxu0 0.0
        %1401 = vmatpush1.msra.mxu0 0.0
        %1402 = vmatprep.subr.mxu0 0.0
        %1403 = vmatpush1.msra.mxu0 0.0
        %1404 = vmatprep.subr.mxu0 0.0
        %1405 = vmatpush1.msra.mxu0 0.0
        %1406 = vmatprep.mubr.f32.mxu0 0.0
        %1407 = vmatmul.mubr.f32.gmra.mrb[0].mxu0 %v1037
        %v1408 = vpop.f32.mrb[0].mxu0
        %v1409 = vadd.f32 0.0, %v1408
        %v1410 = vpop.f32.mrb[0].mxu0
        %1411 = vmatprep.mubr.f32.mxu0 0.0
        %1412 = vmatmul.mubr.f32.gmra.mrb[0].mxu0 %v1040
        %v1413 = vpop.f32.mrb[0].mxu0
        %v1414 = vadd.f32 0.0, %v1413
        %v1415 = vpop.f32.mrb[0].mxu0
        %1416 = vdwg.mxu0
        %1417 = vmatprep.subr.mxu0 0.0
        %1418 = vmatpush1.msra.mxu0 %v1012
        %1419 = vmatprep.subr.mxu0 0.0
        %1420 = vmatpush1.msra.mxu0 %v1013
        %1421 = vmatprep.subr.mxu0 0.0
        %1422 = vmatpush1.msra.mxu0 %v1014
        %1423 = vmatprep.subr.mxu0 0.0
        %1424 = vmatpush1.msra.mxu0 %v1015
        %1425 = vmatprep.subr.mxu0 0.0
        %1426 = vmatpush1.msra.mxu0 %v1016
        %1427 = vmatprep.subr.mxu0 0.0
        %1428 = vmatpush1.msra.mxu0 %v1017
        %1429 = vmatprep.subr.mxu0 0.0
        %1430 = vmatpush1.msra.mxu0 %v1018
        %1431 = vmatprep.subr.mxu0 0.0
        %1432 = vmatpush1.msra.mxu0 %v1019
        %1433 = vmatprep.subr.mxu0 0.0
        %1434 = vmatpush1.msra.mxu0 0.0
        %1435 = vmatprep.subr.mxu0 0.0
        %1436 = vmatpush1.msra.mxu0 0.0
        %1437 = vmatprep.subr.mxu0 0.0
        %1438 = vmatpush1.msra.mxu0 0.0
        %1439 = vmatprep.subr.mxu0 0.0
        %1440 = vmatpush1.msra.mxu0 0.0
        %1441 = vmatprep.subr.mxu0 0.0
        %1442 = vmatpush1.msra.mxu0 0.0
        %1443 = vmatprep.subr.mxu0 0.0
        %1444 = vmatpush1.msra.mxu0 0.0
        %1445 = vmatprep.subr.mxu0 0.0
        %1446 = vmatpush1.msra.mxu0 0.0
        %1447 = vmatprep.subr.mxu0 0.0
        %1448 = vmatpush1.msra.mxu0 0.0
        %1449 = vmatprep.subr.mxu0 0.0
        %1450 = vmatpush1.msra.mxu0 0.0
        %1451 = vmatprep.subr.mxu0 0.0
        %1452 = vmatpush1.msra.mxu0 0.0
        %1453 = vmatprep.subr.mxu0 0.0
        %1454 = vmatpush1.msra.mxu0 0.0
        %1455 = vmatprep.subr.mxu0 0.0
        %1456 = vmatpush1.msra.mxu0 0.0
        %1457 = vmatprep.subr.mxu0 0.0
        %1458 = vmatpush1.msra.mxu0 0.0
        %1459 = vmatprep.subr.mxu0 0.0
        %1460 = vmatpush1.msra.mxu0 0.0
        %1461 = vmatprep.subr.mxu0 0.0
        %1462 = vmatpush1.msra.mxu0 0.0
        %1463 = vmatprep.subr.mxu0 0.0
        %1464 = vmatpush1.msra.mxu0 0.0
        %1465 = vmatprep.subr.mxu0 0.0
        %1466 = vmatpush1.msra.mxu0 0.0
        %1467 = vmatprep.subr.mxu0 0.0
        %1468 = vmatpush1.msra.mxu0 0.0
        %1469 = vmatprep.subr.mxu0 0.0
        %1470 = vmatpush1.msra.mxu0 0.0
        %1471 = vmatprep.subr.mxu0 0.0
        %1472 = vmatpush1.msra.mxu0 0.0
        %1473 = vmatprep.subr.mxu0 0.0
        %1474 = vmatpush1.msra.mxu0 0.0
        %1475 = vmatprep.subr.mxu0 0.0
        %1476 = vmatpush1.msra.mxu0 0.0
        %1477 = vmatprep.subr.mxu0 0.0
        %1478 = vmatpush1.msra.mxu0 0.0
        %1479 = vmatprep.subr.mxu0 0.0
        %1480 = vmatpush1.msra.mxu0 0.0
        %1481 = vmatprep.mubr.f32.mxu0 0.0
        %1482 = vmatmul.mubr.f32.gmra.mrb[0].mxu0 %v1037
        %v1483 = vpop.f32.mrb[0].mxu0
        %v1484 = vadd.f32 0.0, %v1483
        %v1485 = vpop.f32.mrb[0].mxu0
        %1486 = vmatprep.mubr.f32.mxu0 0.0
        %1487 = vmatmul.mubr.f32.gmra.mrb[0].mxu0 %v1040
        %v1488 = vpop.f32.mrb[0].mxu0
        %v1489 = vadd.f32 0.0, %v1488
        %v1490 = vpop.f32.mrb[0].mxu0
        %1491 = vdwg.mxu0
        %1492 = vmatprep.subr.mxu0 0.0
        %1493 = vmatpush1.msra.mxu0 %v1020
        %1494 = vmatprep.subr.mxu0 0.0
        %1495 = vmatpush1.msra.mxu0 %v1021
        %1496 = vmatprep.subr.mxu0 0.0
        %1497 = vmatpush1.msra.mxu0 %v1022
        %1498 = vmatprep.subr.mxu0 0.0
        %1499 = vmatpush1.msra.mxu0 %v1023
        %1500 = vmatprep.subr.mxu0 0.0
        %1501 = vmatpush1.msra.mxu0 %v1024
        %1502 = vmatprep.subr.mxu0 0.0
        %1503 = vmatpush1.msra.mxu0 %v1025
        %1504 = vmatprep.subr.mxu0 0.0
        %1505 = vmatpush1.msra.mxu0 %v1026
        %1506 = vmatprep.subr.mxu0 0.0
        %1507 = vmatpush1.msra.mxu0 %v1027
        %1508 = vmatprep.subr.mxu0 0.0
        %1509 = vmatpush1.msra.mxu0 0.0
        %1510 = vmatprep.subr.mxu0 0.0
        %1511 = vmatpush1.msra.mxu0 0.0
        %1512 = vmatprep.subr.mxu0 0.0
        %1513 = vmatpush1.msra.mxu0 0.0
        %1514 = vmatprep.subr.mxu0 0.0
        %1515 = vmatpush1.msra.mxu0 0.0
        %1516 = vmatprep.subr.mxu0 0.0
        %1517 = vmatpush1.msra.mxu0 0.0
        %1518 = vmatprep.subr.mxu0 0.0
        %1519 = vmatpush1.msra.mxu0 0.0
        %1520 = vmatprep.subr.mxu0 0.0
        %1521 = vmatpush1.msra.mxu0 0.0
        %1522 = vmatprep.subr.mxu0 0.0
        %1523 = vmatpush1.msra.mxu0 0.0
        %1524 = vmatprep.subr.mxu0 0.0
        %1525 = vmatpush1.msra.mxu0 0.0
        %1526 = vmatprep.subr.mxu0 0.0
        %1527 = vmatpush1.msra.mxu0 0.0
        %1528 = vmatprep.subr.mxu0 0.0
        %1529 = vmatpush1.msra.mxu0 0.0
        %1530 = vmatprep.subr.mxu0 0.0
        %1531 = vmatpush1.msra.mxu0 0.0
        %1532 = vmatprep.subr.mxu0 0.0
        %1533 = vmatpush1.msra.mxu0 0.0
        %1534 = vmatprep.subr.mxu0 0.0
        %1535 = vmatpush1.msra.mxu0 0.0
        %1536 = vmatprep.subr.mxu0 0.0
        %1537 = vmatpush1.msra.mxu0 0.0
        %1538 = vmatprep.subr.mxu0 0.0
        %1539 = vmatpush1.msra.mxu0 0.0
        %1540 = vmatprep.subr.mxu0 0.0
        %1541 = vmatpush1.msra.mxu0 0.0
        %1542 = vmatprep.subr.mxu0 0.0
        %1543 = vmatpush1.msra.mxu0 0.0
        %1544 = vmatprep.subr.mxu0 0.0
        %1545 = vmatpush1.msra.mxu0 0.0
        %1546 = vmatprep.subr.mxu0 0.0
        %1547 = vmatpush1.msra.mxu0 0.0
        %1548 = vmatprep.subr.mxu0 0.0
        %1549 = vmatpush1.msra.mxu0 0.0
        %1550 = vmatprep.subr.mxu0 0.0
        %1551 = vmatpush1.msra.mxu0 0.0
        %1552 = vmatprep.subr.mxu0 0.0
        %1553 = vmatpush1.msra.mxu0 0.0
        %1554 = vmatprep.subr.mxu0 0.0
        %1555 = vmatpush1.msra.mxu0 0.0
        %1556 = vmatprep.mubr.f32.mxu0 0.0
        %1557 = vmatmul.mubr.f32.gmra.mrb[0].mxu0 %v1037
        %v1558 = vpop.f32.mrb[0].mxu0
        %v1559 = vadd.f32 0.0, %v1558
        %v1560 = vpop.f32.mrb[0].mxu0
        %1561 = vmatprep.mubr.f32.mxu0 0.0
        %1562 = vmatmul.mubr.f32.gmra.mrb[0].mxu0 %v1040
        %v1563 = vpop.f32.mrb[0].mxu0
        %v1564 = vadd.f32 0.0, %v1563
        %v1565 = vpop.f32.mrb[0].mxu0
        %1566 = vdwg.mxu0
        %1567 = vmatprep.subr.mxu0 0.0
        %1568 = vmatpush1.msra.mxu0 %v1028
        %1569 = vmatprep.subr.mxu0 0.0
        %1570 = vmatpush1.msra.mxu0 %v1029
        %1571 = vmatprep.subr.mxu0 0.0
        %1572 = vmatpush1.msra.mxu0 %v1030
        %1573 = vmatprep.subr.mxu0 0.0
        %1574 = vmatpush1.msra.mxu0 %v1031
        %1575 = vmatprep.subr.mxu0 0.0
        %1576 = vmatpush1.msra.mxu0 %v1032
        %1577 = vmatprep.subr.mxu0 0.0
        %1578 = vmatpush1.msra.mxu0 %v1033
        %1579 = vmatprep.subr.mxu0 0.0
        %1580 = vmatpush1.msra.mxu0 %v1034
        %1581 = vmatprep.subr.mxu0 0.0
        %1582 = vmatpush1.msra.mxu0 %v1035
        %1583 = vmatprep.subr.mxu0 0.0
        %1584 = vmatpush1.msra.mxu0 0.0
        %1585 = vmatprep.subr.mxu0 0.0
        %1586 = vmatpush1.msra.mxu0 0.0
        %1587 = vmatprep.subr.mxu0 0.0
        %1588 = vmatpush1.msra.mxu0 0.0
        %1589 = vmatprep.subr.mxu0 0.0
        %1590 = vmatpush1.msra.mxu0 0.0
        %1591 = vmatprep.subr.mxu0 0.0
        %1592 = vmatpush1.msra.mxu0 0.0
        %1593 = vmatprep.subr.mxu0 0.0
        %1594 = vmatpush1.msra.mxu0 0.0
        %1595 = vmatprep.subr.mxu0 0.0
        %1596 = vmatpush1.msra.mxu0 0.0
        %1597 = vmatprep.subr.mxu0 0.0
        %1598 = vmatpush1.msra.mxu0 0.0
        %1599 = vmatprep.subr.mxu0 0.0
        %1600 = vmatpush1.msra.mxu0 0.0
        %1601 = vmatprep.subr.mxu0 0.0
        %1602 = vmatpush1.msra.mxu0 0.0
        %1603 = vmatprep.subr.mxu0 0.0
        %1604 = vmatpush1.msra.mxu0 0.0
        %1605 = vmatprep.subr.mxu0 0.0
        %1606 = vmatpush1.msra.mxu0 0.0
        %1607 = vmatprep.subr.mxu0 0.0
        %1608 = vmatpush1.msra.mxu0 0.0
        %1609 = vmatprep.subr.mxu0 0.0
        %1610 = vmatpush1.msra.mxu0 0.0
        %1611 = vmatprep.subr.mxu0 0.0
        %1612 = vmatpush1.msra.mxu0 0.0
        %1613 = vmatprep.subr.mxu0 0.0
        %1614 = vmatpush1.msra.mxu0 0.0
        %1615 = vmatprep.subr.mxu0 0.0
        %1616 = vmatpush1.msra.mxu0 0.0
        %1617 = vmatprep.subr.mxu0 0.0
        %1618 = vmatpush1.msra.mxu0 0.0
        %1619 = vmatprep.subr.mxu0 0.0
        %1620 = vmatpush1.msra.mxu0 0.0
        %1621 = vmatprep.subr.mxu0 0.0
        %1622 = vmatpush1.msra.mxu0 0.0
        %1623 = vmatprep.subr.mxu0 0.0
        %1624 = vmatpush1.msra.mxu0 0.0
        %1625 = vmatprep.subr.mxu0 0.0
        %1626 = vmatpush1.msra.mxu0 0.0
        %1627 = vmatprep.subr.mxu0 0.0
        %1628 = vmatpush1.msra.mxu0 0.0
        %1629 = vmatprep.subr.mxu0 0.0
        %1630 = vmatpush1.msra.mxu0 0.0
        %1631 = vmatprep.mubr.f32.mxu0 0.0
        %1632 = vmatmul.mubr.f32.gmra.mrb[0].mxu0 %v1037
        %v1633 = vpop.f32.mrb[0].mxu0
        %v1634 = vadd.f32 0.0, %v1633
        %v1635 = vpop.f32.mrb[0].mxu0
        %1636 = vmatprep.mubr.f32.mxu0 0.0
        %1637 = vmatmul.mubr.f32.gmra.mrb[0].mxu0 %v1040
        %v1638 = vpop.f32.mrb[0].mxu0
        %v1639 = vadd.f32 0.0, %v1638
        %v1640 = vpop.f32.mrb[0].mxu0
        %1641 = vdwg.mxu0
        %v1642 = vld [vmem:[%s4] sm:$0xff]
        %v1643 = vld [vmem:[%s4 + $0x8] sm:$0xff]
        %v1644 = vld [vmem:[%s4 + $0x10] sm:$0xff]
        %v1645 = vld [vmem:[%s4 + $0x18] sm:$0xff]
        %v1646 = vld [vmem:[%s4 + $0x20] sm:$0xff]
        %v1647 = vld [vmem:[%s4 + $0x28] sm:$0xff]
        %v1648 = vld [vmem:[%s4 + $0x30] sm:$0xff]
        %v1649 = vld [vmem:[%s4 + $0x38] sm:$0xff]
        %v1650 = vld [vmem:[%s4 + $0x40] sm:$0xff]
        %v1651 = vld [vmem:[%s4 + $0x48] sm:$0xff]
        %v1652 = vld [vmem:[%s4 + $0x50] sm:$0xff]
        %v1653 = vld [vmem:[%s4 + $0x58] sm:$0xff]
        %v1654 = vld [vmem:[%s4 + $0x60] sm:$0xff]
        %v1655 = vld [vmem:[%s4 + $0x68] sm:$0xff]
        %v1656 = vld [vmem:[%s4 + $0x70] sm:$0xff]
        %v1657 = vld [vmem:[%s4 + $0x78] sm:$0xff]
        %v1658 = vld [vmem:[%s4 + $0x80] sm:$0xff]
        %v1659 = vld [vmem:[%s4 + $0x88] sm:$0xff]
        %v1660 = vld [vmem:[%s4 + $0x90] sm:$0xff]
        %v1661 = vld [vmem:[%s4 + $0x98] sm:$0xff]
        %v1662 = vld [vmem:[%s4 + $0xa0] sm:$0xff]
        %v1663 = vld [vmem:[%s4 + $0xa8] sm:$0xff]
        %v1664 = vld [vmem:[%s4 + $0xb0] sm:$0xff]
        %v1665 = vld [vmem:[%s4 + $0xb8] sm:$0xff]
        %v1666 = vld [vmem:[%s4 + $0xc0] sm:$0xff]
        %v1667 = vld [vmem:[%s4 + $0xc8] sm:$0xff]
        %v1668 = vld [vmem:[%s4 + $0xd0] sm:$0xff]
        %v1669 = vld [vmem:[%s4 + $0xd8] sm:$0xff]
        %v1670 = vld [vmem:[%s4 + $0xe0] sm:$0xff]
        %v1671 = vld [vmem:[%s4 + $0xe8] sm:$0xff]
        %v1672 = vld [vmem:[%s4 + $0xf0] sm:$0xff]
        %v1673 = vld [vmem:[%s4 + $0xf8] sm:$0xff]
        %v1674 = vld [vmem:[%s4 + $0x100] sm:$0xff]
        %v1675 = vld [vmem:[%s4 + $0x108] sm:$0xff]
        %v1676 = vld [vmem:[%s4 + $0x110] sm:$0xff]
        %v1677 = vld [vmem:[%s4 + $0x118] sm:$0xff]
        %v1678 = vld [vmem:[%s4 + $0x120] sm:$0xff]
        %v1679 = vld [vmem:[%s4 + $0x128] sm:$0xff]
        %v1680 = vld [vmem:[%s4 + $0x130] sm:$0xff]
        %v1681 = vld [vmem:[%s4 + $0x138] sm:$0xff]
        %v1682 = vld [vmem:[%s4 + $0x140] sm:$0xff]
        %v1683 = vld [vmem:[%s4 + $0x148] sm:$0xff]
        %v1684 = vld [vmem:[%s4 + $0x150] sm:$0xff]
        %v1685 = vld [vmem:[%s4 + $0x158] sm:$0xff]
        %v1686 = vld [vmem:[%s4 + $0x160] sm:$0xff]
        %v1687 = vld [vmem:[%s4 + $0x168] sm:$0xff]
        %v1688 = vld [vmem:[%s4 + $0x170] sm:$0xff]
        %v1689 = vld [vmem:[%s4 + $0x178] sm:$0xff]
        %v1690 = vld [vmem:[%s4 + $0x180] sm:$0xff]
        %v1691 = vld [vmem:[%s4 + $0x188] sm:$0xff]
        %v1692 = vld [vmem:[%s4 + $0x190] sm:$0xff]
        %v1693 = vld [vmem:[%s4 + $0x198] sm:$0xff]
        %v1694 = vld [vmem:[%s4 + $0x1a0] sm:$0xff]
        %v1695 = vld [vmem:[%s4 + $0x1a8] sm:$0xff]
        %v1696 = vld [vmem:[%s4 + $0x1b0] sm:$0xff]
        %v1697 = vld [vmem:[%s4 + $0x1b8] sm:$0xff]
        %v1698 = vld [vmem:[%s4 + $0x1c0] sm:$0xff]
        %v1699 = vld [vmem:[%s4 + $0x1c8] sm:$0xff]
        %v1700 = vld [vmem:[%s4 + $0x1d0] sm:$0xff]
        %v1701 = vld [vmem:[%s4 + $0x1d8] sm:$0xff]
        %v1702 = vld [vmem:[%s4 + $0x1e0] sm:$0xff]
        %v1703 = vld [vmem:[%s4 + $0x1e8] sm:$0xff]
        %v1704 = vld [vmem:[%s4 + $0x1f0] sm:$0xff]
        %v1705 = vld [vmem:[%s4 + $0x1f8] sm:$0xff]
        %1706 = vmatprep.subr.mxu0 0.0
        %1707 = vmatpush1.msra.mxu0 %v1642
        %1708 = vmatprep.subr.mxu0 0.0
        %1709 = vmatpush1.msra.mxu0 %v1643
        %1710 = vmatprep.subr.mxu0 0.0
        %1711 = vmatpush1.msra.mxu0 %v1644
        %1712 = vmatprep.subr.mxu0 0.0
        %1713 = vmatpush1.msra.mxu0 %v1645
        %1714 = vmatprep.subr.mxu0 0.0
        %1715 = vmatpush1.msra.mxu0 %v1646
        %1716 = vmatprep.subr.mxu0 0.0
        %1717 = vmatpush1.msra.mxu0 %v1647
        %1718 = vmatprep.subr.mxu0 0.0
        %1719 = vmatpush1.msra.mxu0 %v1648
        %1720 = vmatprep.subr.mxu0 0.0
        %1721 = vmatpush1.msra.mxu0 %v1649
        %1722 = vmatprep.subr.mxu0 0.0
        %1723 = vmatpush1.msra.mxu0 0.0
        %1724 = vmatprep.subr.mxu0 0.0
        %1725 = vmatpush1.msra.mxu0 0.0
        %1726 = vmatprep.subr.mxu0 0.0
        %1727 = vmatpush1.msra.mxu0 0.0
        %1728 = vmatprep.subr.mxu0 0.0
        %1729 = vmatpush1.msra.mxu0 0.0
        %1730 = vmatprep.subr.mxu0 0.0
        %1731 = vmatpush1.msra.mxu0 0.0
        %1732 = vmatprep.subr.mxu0 0.0
        %1733 = vmatpush1.msra.mxu0 0.0
        %1734 = vmatprep.subr.mxu0 0.0
        %1735 = vmatpush1.msra.mxu0 0.0
        %1736 = vmatprep.subr.mxu0 0.0
        %1737 = vmatpush1.msra.mxu0 0.0
        %1738 = vmatprep.subr.mxu0 0.0
        %1739 = vmatpush1.msra.mxu0 0.0
        %1740 = vmatprep.subr.mxu0 0.0
        %1741 = vmatpush1.msra.mxu0 0.0
        %1742 = vmatprep.subr.mxu0 0.0
        %1743 = vmatpush1.msra.mxu0 0.0
        %1744 = vmatprep.subr.mxu0 0.0
        %1745 = vmatpush1.msra.mxu0 0.0
        %1746 = vmatprep.subr.mxu0 0.0
        %1747 = vmatpush1.msra.mxu0 0.0
        %1748 = vmatprep.subr.mxu0 0.0
        %1749 = vmatpush1.msra.mxu0 0.0
        %1750 = vmatprep.subr.mxu0 0.0
        %1751 = vmatpush1.msra.mxu0 0.0
        %1752 = vmatprep.subr.mxu0 0.0
        %1753 = vmatpush1.msra.mxu0 0.0
        %1754 = vmatprep.subr.mxu0 0.0
        %1755 = vmatpush1.msra.mxu0 0.0
        %1756 = vmatprep.subr.mxu0 0.0
        %1757 = vmatpush1.msra.mxu0 0.0
        %1758 = vmatprep.subr.mxu0 0.0
        %1759 = vmatpush1.msra.mxu0 0.0
        %1760 = vmatprep.subr.mxu0 0.0
        %1761 = vmatpush1.msra.mxu0 0.0
        %1762 = vmatprep.subr.mxu0 0.0
        %1763 = vmatpush1.msra.mxu0 0.0
        %1764 = vmatprep.subr.mxu0 0.0
        %1765 = vmatpush1.msra.mxu0 0.0
        %1766 = vmatprep.subr.mxu0 0.0
        %1767 = vmatpush1.msra.mxu0 0.0
        %1768 = vmatprep.subr.mxu0 0.0
        %1769 = vmatpush1.msra.mxu0 0.0
        %1770 = vmatprep.mubr.f32.mxu0 0.0
        %1771 = vmatmul.mubr.f32.gmra.mrb[0].mxu0 %v1037
        %v1772 = vpop.f32.mrb[0].mxu0
        %v1773 = vadd.f32 0.0, %v1772
        %v1774 = vpop.f32.mrb[0].mxu0
        %1775 = vmatprep.mubr.f32.mxu0 0.0
        %1776 = vmatmul.mubr.f32.gmra.mrb[0].mxu0 %v1040
        %v1777 = vpop.f32.mrb[0].mxu0
        %v1778 = vadd.f32 0.0, %v1777
        %v1779 = vpop.f32.mrb[0].mxu0
        %1780 = vdwg.mxu0
        %1781 = vmatprep.subr.mxu0 0.0
        %1782 = vmatpush1.msra.mxu0 %v1650
        %1783 = vmatprep.subr.mxu0 0.0
        %1784 = vmatpush1.msra.mxu0 %v1651
        %1785 = vmatprep.subr.mxu0 0.0
        %1786 = vmatpush1.msra.mxu0 %v1652
        %1787 = vmatprep.subr.mxu0 0.0
        %1788 = vmatpush1.msra.mxu0 %v1653
        %1789 = vmatprep.subr.mxu0 0.0
        %1790 = vmatpush1.msra.mxu0 %v1654
        %1791 = vmatprep.subr.mxu0 0.0
        %1792 = vmatpush1.msra.mxu0 %v1655
        %1793 = vmatprep.subr.mxu0 0.0
        %1794 = vmatpush1.msra.mxu0 %v1656
        %1795 = vmatprep.subr.mxu0 0.0
        %1796 = vmatpush1.msra.mxu0 %v1657
        %1797 = vmatprep.subr.mxu0 0.0
        %1798 = vmatpush1.msra.mxu0 0.0
        %1799 = vmatprep.subr.mxu0 0.0
        %1800 = vmatpush1.msra.mxu0 0.0
        %1801 = vmatprep.subr.mxu0 0.0
        %1802 = vmatpush1.msra.mxu0 0.0
        %1803 = vmatprep.subr.mxu0 0.0
        %1804 = vmatpush1.msra.mxu0 0.0
        %1805 = vmatprep.subr.mxu0 0.0
        %1806 = vmatpush1.msra.mxu0 0.0
        %1807 = vmatprep.subr.mxu0 0.0
        %1808 = vmatpush1.msra.mxu0 0.0
        %1809 = vmatprep.subr.mxu0 0.0
        %1810 = vmatpush1.msra.mxu0 0.0
        %1811 = vmatprep.subr.mxu0 0.0
        %1812 = vmatpush1.msra.mxu0 0.0
        %1813 = vmatprep.subr.mxu0 0.0
        %1814 = vmatpush1.msra.mxu0 0.0
        %1815 = vmatprep.subr.mxu0 0.0
        %1816 = vmatpush1.msra.mxu0 0.0
        %1817 = vmatprep.subr.mxu0 0.0
        %1818 = vmatpush1.msra.mxu0 0.0
        %1819 = vmatprep.subr.mxu0 0.0
        %1820 = vmatpush1.msra.mxu0 0.0
        %1821 = vmatprep.subr.mxu0 0.0
        %1822 = vmatpush1.msra.mxu0 0.0
        %1823 = vmatprep.subr.mxu0 0.0
        %1824 = vmatpush1.msra.mxu0 0.0
        %1825 = vmatprep.subr.mxu0 0.0
        %1826 = vmatpush1.msra.mxu0 0.0
        %1827 = vmatprep.subr.mxu0 0.0
        %1828 = vmatpush1.msra.mxu0 0.0
        %1829 = vmatprep.subr.mxu0 0.0
        %1830 = vmatpush1.msra.mxu0 0.0
        %1831 = vmatprep.subr.mxu0 0.0
        %1832 = vmatpush1.msra.mxu0 0.0
        %1833 = vmatprep.subr.mxu0 0.0
        %1834 = vmatpush1.msra.mxu0 0.0
        %1835 = vmatprep.subr.mxu0 0.0
        %1836 = vmatpush1.msra.mxu0 0.0
        %1837 = vmatprep.subr.mxu0 0.0
        %1838 = vmatpush1.msra.mxu0 0.0
        %1839 = vmatprep.subr.mxu0 0.0
        %1840 = vmatpush1.msra.mxu0 0.0
        %1841 = vmatprep.subr.mxu0 0.0
        %1842 = vmatpush1.msra.mxu0 0.0
        %1843 = vmatprep.subr.mxu0 0.0
        %1844 = vmatpush1.msra.mxu0 0.0
        %1845 = vmatprep.mubr.f32.mxu0 0.0
        %1846 = vmatmul.mubr.f32.gmra.mrb[0].mxu0 %v1037
        %v1847 = vpop.f32.mrb[0].mxu0
        %v1848 = vadd.f32 0.0, %v1847
        %v1849 = vpop.f32.mrb[0].mxu0
        %1850 = vmatprep.mubr.f32.mxu0 0.0
        %1851 = vmatmul.mubr.f32.gmra.mrb[0].mxu0 %v1040
        %v1852 = vpop.f32.mrb[0].mxu0
        %v1853 = vadd.f32 0.0, %v1852
        %v1854 = vpop.f32.mrb[0].mxu0
        %1855 = vdwg.mxu0
        %1856 = vmatprep.subr.mxu0 0.0
        %1857 = vmatpush1.msra.mxu0 %v1658
        %1858 = vmatprep.subr.mxu0 0.0
        %1859 = vmatpush1.msra.mxu0 %v1659
        %1860 = vmatprep.subr.mxu0 0.0
        %1861 = vmatpush1.msra.mxu0 %v1660
        %1862 = vmatprep.subr.mxu0 0.0
        %1863 = vmatpush1.msra.mxu0 %v1661
        %1864 = vmatprep.subr.mxu0 0.0
        %1865 = vmatpush1.msra.mxu0 %v1662
        %1866 = vmatprep.subr.mxu0 0.0
        %1867 = vmatpush1.msra.mxu0 %v1663
        %1868 = vmatprep.subr.mxu0 0.0
        %1869 = vmatpush1.msra.mxu0 %v1664
        %1870 = vmatprep.subr.mxu0 0.0
        %1871 = vmatpush1.msra.mxu0 %v1665
        %1872 = vmatprep.subr.mxu0 0.0
        %1873 = vmatpush1.msra.mxu0 0.0
        %1874 = vmatprep.subr.mxu0 0.0
        %1875 = vmatpush1.msra.mxu0 0.0
        %1876 = vmatprep.subr.mxu0 0.0
        %1877 = vmatpush1.msra.mxu0 0.0
        %1878 = vmatprep.subr.mxu0 0.0
        %1879 = vmatpush1.msra.mxu0 0.0
        %1880 = vmatprep.subr.mxu0 0.0
        %1881 = vmatpush1.msra.mxu0 0.0
        %1882 = vmatprep.subr.mxu0 0.0
        %1883 = vmatpush1.msra.mxu0 0.0
        %1884 = vmatprep.subr.mxu0 0.0
        %1885 = vmatpush1.msra.mxu0 0.0
        %1886 = vmatprep.subr.mxu0 0.0
        %1887 = vmatpush1.msra.mxu0 0.0
        %1888 = vmatprep.subr.mxu0 0.0
        %1889 = vmatpush1.msra.mxu0 0.0
        %1890 = vmatprep.subr.mxu0 0.0
        %1891 = vmatpush1.msra.mxu0 0.0
        %1892 = vmatprep.subr.mxu0 0.0
        %1893 = vmatpush1.msra.mxu0 0.0
        %1894 = vmatprep.subr.mxu0 0.0
        %1895 = vmatpush1.msra.mxu0 0.0
        %1896 = vmatprep.subr.mxu0 0.0
        %1897 = vmatpush1.msra.mxu0 0.0
        %1898 = vmatprep.subr.mxu0 0.0
        %1899 = vmatpush1.msra.mxu0 0.0
        %1900 = vmatprep.subr.mxu0 0.0
        %1901 = vmatpush1.msra.mxu0 0.0
        %1902 = vmatprep.subr.mxu0 0.0
        %1903 = vmatpush1.msra.mxu0 0.0
        %1904 = vmatprep.subr.mxu0 0.0
        %1905 = vmatpush1.msra.mxu0 0.0
        %1906 = vmatprep.subr.mxu0 0.0
        %1907 = vmatpush1.msra.mxu0 0.0
        %1908 = vmatprep.subr.mxu0 0.0
        %1909 = vmatpush1.msra.mxu0 0.0
        %1910 = vmatprep.subr.mxu0 0.0
        %1911 = vmatpush1.msra.mxu0 0.0
        %1912 = vmatprep.subr.mxu0 0.0
        %1913 = vmatpush1.msra.mxu0 0.0
        %1914 = vmatprep.subr.mxu0 0.0
        %1915 = vmatpush1.msra.mxu0 0.0
        %1916 = vmatprep.subr.mxu0 0.0
        %1917 = vmatpush1.msra.mxu0 0.0
        %1918 = vmatprep.subr.mxu0 0.0
        %1919 = vmatpush1.msra.mxu0 0.0
        %1920 = vmatprep.mubr.f32.mxu0 0.0
        %1921 = vmatmul.mubr.f32.gmra.mrb[0].mxu0 %v1037
        %v1922 = vpop.f32.mrb[0].mxu0
        %v1923 = vadd.f32 0.0, %v1922
        %v1924 = vpop.f32.mrb[0].mxu0
        %1925 = vmatprep.mubr.f32.mxu0 0.0
        %1926 = vmatmul.mubr.f32.gmra.mrb[0].mxu0 %v1040
        %v1927 = vpop.f32.mrb[0].mxu0
        %v1928 = vadd.f32 0.0, %v1927
        %v1929 = vpop.f32.mrb[0].mxu0
        %1930 = vdwg.mxu0
        %1931 = vmatprep.subr.mxu0 0.0
        %1932 = vmatpush1.msra.mxu0 %v1666
        %1933 = vmatprep.subr.mxu0 0.0
        %1934 = vmatpush1.msra.mxu0 %v1667
        %1935 = vmatprep.subr.mxu0 0.0
        %1936 = vmatpush1.msra.mxu0 %v1668
        %1937 = vmatprep.subr.mxu0 0.0
        %1938 = vmatpush1.msra.mxu0 %v1669
        %1939 = vmatprep.subr.mxu0 0.0
        %1940 = vmatpush1.msra.mxu0 %v1670
        %1941 = vmatprep.subr.mxu0 0.0
        %1942 = vmatpush1.msra.mxu0 %v1671
        %1943 = vmatprep.subr.mxu0 0.0
        %1944 = vmatpush1.msra.mxu0 %v1672
        %1945 = vmatprep.subr.mxu0 0.0
        %1946 = vmatpush1.msra.mxu0 %v1673
        %1947 = vmatprep.subr.mxu0 0.0
        %1948 = vmatpush1.msra.mxu0 0.0
        %1949 = vmatprep.subr.mxu0 0.0
        %1950 = vmatpush1.msra.mxu0 0.0
        %1951 = vmatprep.subr.mxu0 0.0
        %1952 = vmatpush1.msra.mxu0 0.0
        %1953 = vmatprep.subr.mxu0 0.0
        %1954 = vmatpush1.msra.mxu0 0.0
        %1955 = vmatprep.subr.mxu0 0.0
        %1956 = vmatpush1.msra.mxu0 0.0
        %1957 = vmatprep.subr.mxu0 0.0
        %1958 = vmatpush1.msra.mxu0 0.0
        %1959 = vmatprep.subr.mxu0 0.0
        %1960 = vmatpush1.msra.mxu0 0.0
        %1961 = vmatprep.subr.mxu0 0.0
        %1962 = vmatpush1.msra.mxu0 0.0
        %1963 = vmatprep.subr.mxu0 0.0
        %1964 = vmatpush1.msra.mxu0 0.0
        %1965 = vmatprep.subr.mxu0 0.0
        %1966 = vmatpush1.msra.mxu0 0.0
        %1967 = vmatprep.subr.mxu0 0.0
        %1968 = vmatpush1.msra.mxu0 0.0
        %1969 = vmatprep.subr.mxu0 0.0
        %1970 = vmatpush1.msra.mxu0 0.0
        %1971 = vmatprep.subr.mxu0 0.0
        %1972 = vmatpush1.msra.mxu0 0.0
        %1973 = vmatprep.subr.mxu0 0.0
        %1974 = vmatpush1.msra.mxu0 0.0
        %1975 = vmatprep.subr.mxu0 0.0
        %1976 = vmatpush1.msra.mxu0 0.0
        %1977 = vmatprep.subr.mxu0 0.0
        %1978 = vmatpush1.msra.mxu0 0.0
        %1979 = vmatprep.subr.mxu0 0.0
        %1980 = vmatpush1.msra.mxu0 0.0
        %1981 = vmatprep.subr.mxu0 0.0
        %1982 = vmatpush1.msra.mxu0 0.0
        %1983 = vmatprep.subr.mxu0 0.0
        %1984 = vmatpush1.msra.mxu0 0.0
        %1985 = vmatprep.subr.mxu0 0.0
        %1986 = vmatpush1.msra.mxu0 0.0
        %1987 = vmatprep.subr.mxu0 0.0
        %1988 = vmatpush1.msra.mxu0 0.0
        %1989 = vmatprep.subr.mxu0 0.0
        %1990 = vmatpush1.msra.mxu0 0.0
        %1991 = vmatprep.subr.mxu0 0.0
        %1992 = vmatpush1.msra.mxu0 0.0
        %1993 = vmatprep.subr.mxu0 0.0
        %1994 = vmatpush1.msra.mxu0 0.0
        %1995 = vmatprep.mubr.f32.mxu0 0.0
        %1996 = vmatmul.mubr.f32.gmra.mrb[0].mxu0 %v1037
        %v1997 = vpop.f32.mrb[0].mxu0
        %v1998 = vadd.f32 0.0, %v1997
        %v1999 = vpop.f32.mrb[0].mxu0
        %2000 = vmatprep.mubr.f32.mxu0 0.0
        %2001 = vmatmul.mubr.f32.gmra.mrb[0].mxu0 %v1040
        %v2002 = vpop.f32.mrb[0].mxu0
        %v2003 = vadd.f32 0.0, %v2002
        %v2004 = vpop.f32.mrb[0].mxu0
        %2005 = vdwg.mxu0
        %2006 = vmatprep.subr.mxu0 0.0
        %2007 = vmatpush1.msra.mxu0 %v1674
        %2008 = vmatprep.subr.mxu0 0.0
        %2009 = vmatpush1.msra.mxu0 %v1675
        %2010 = vmatprep.subr.mxu0 0.0
        %2011 = vmatpush1.msra.mxu0 %v1676
        %2012 = vmatprep.subr.mxu0 0.0
        %2013 = vmatpush1.msra.mxu0 %v1677
        %2014 = vmatprep.subr.mxu0 0.0
        %2015 = vmatpush1.msra.mxu0 %v1678
        %2016 = vmatprep.subr.mxu0 0.0
        %2017 = vmatpush1.msra.mxu0 %v1679
        %2018 = vmatprep.subr.mxu0 0.0
        %2019 = vmatpush1.msra.mxu0 %v1680
        %2020 = vmatprep.subr.mxu0 0.0
        %2021 = vmatpush1.msra.mxu0 %v1681
        %2022 = vmatprep.subr.mxu0 0.0
        %2023 = vmatpush1.msra.mxu0 0.0
        %2024 = vmatprep.subr.mxu0 0.0
        %2025 = vmatpush1.msra.mxu0 0.0
        %2026 = vmatprep.subr.mxu0 0.0
        %2027 = vmatpush1.msra.mxu0 0.0
        %2028 = vmatprep.subr.mxu0 0.0
        %2029 = vmatpush1.msra.mxu0 0.0
        %2030 = vmatprep.subr.mxu0 0.0
        %2031 = vmatpush1.msra.mxu0 0.0
        %2032 = vmatprep.subr.mxu0 0.0
        %2033 = vmatpush1.msra.mxu0 0.0
        %2034 = vmatprep.subr.mxu0 0.0
        %2035 = vmatpush1.msra.mxu0 0.0
        %2036 = vmatprep.subr.mxu0 0.0
        %2037 = vmatpush1.msra.mxu0 0.0
        %2038 = vmatprep.subr.mxu0 0.0
        %2039 = vmatpush1.msra.mxu0 0.0
        %2040 = vmatprep.subr.mxu0 0.0
        %2041 = vmatpush1.msra.mxu0 0.0
        %2042 = vmatprep.subr.mxu0 0.0
        %2043 = vmatpush1.msra.mxu0 0.0
        %2044 = vmatprep.subr.mxu0 0.0
        %2045 = vmatpush1.msra.mxu0 0.0
        %2046 = vmatprep.subr.mxu0 0.0
        %2047 = vmatpush1.msra.mxu0 0.0
        %2048 = vmatprep.subr.mxu0 0.0
        %2049 = vmatpush1.msra.mxu0 0.0
        %2050 = vmatprep.subr.mxu0 0.0
        %2051 = vmatpush1.msra.mxu0 0.0
        %2052 = vmatprep.subr.mxu0 0.0
        %2053 = vmatpush1.msra.mxu0 0.0
        %2054 = vmatprep.subr.mxu0 0.0
        %2055 = vmatpush1.msra.mxu0 0.0
        %2056 = vmatprep.subr.mxu0 0.0
        %2057 = vmatpush1.msra.mxu0 0.0
        %2058 = vmatprep.subr.mxu0 0.0
        %2059 = vmatpush1.msra.mxu0 0.0
        %2060 = vmatprep.subr.mxu0 0.0
        %2061 = vmatpush1.msra.mxu0 0.0
        %2062 = vmatprep.subr.mxu0 0.0
        %2063 = vmatpush1.msra.mxu0 0.0
        %2064 = vmatprep.subr.mxu0 0.0
        %2065 = vmatpush1.msra.mxu0 0.0
        %2066 = vmatprep.subr.mxu0 0.0
        %2067 = vmatpush1.msra.mxu0 0.0
        %2068 = vmatprep.subr.mxu0 0.0
        %2069 = vmatpush1.msra.mxu0 0.0
        %2070 = vmatprep.mubr.f32.mxu0 0.0
        %2071 = vmatmul.mubr.f32.gmra.mrb[0].mxu0 %v1037
        %v2072 = vpop.f32.mrb[0].mxu0
        %v2073 = vadd.f32 0.0, %v2072
        %v2074 = vpop.f32.mrb[0].mxu0
        %2075 = vmatprep.mubr.f32.mxu0 0.0
        %2076 = vmatmul.mubr.f32.gmra.mrb[0].mxu0 %v1040
        %v2077 = vpop.f32.mrb[0].mxu0
        %v2078 = vadd.f32 0.0, %v2077
        %v2079 = vpop.f32.mrb[0].mxu0
        %2080 = vdwg.mxu0
        %2081 = vmatprep.subr.mxu0 0.0
        %2082 = vmatpush1.msra.mxu0 %v1682
        %2083 = vmatprep.subr.mxu0 0.0
        %2084 = vmatpush1.msra.mxu0 %v1683
        %2085 = vmatprep.subr.mxu0 0.0
        %2086 = vmatpush1.msra.mxu0 %v1684
        %2087 = vmatprep.subr.mxu0 0.0
        %2088 = vmatpush1.msra.mxu0 %v1685
        %2089 = vmatprep.subr.mxu0 0.0
        %2090 = vmatpush1.msra.mxu0 %v1686
        %2091 = vmatprep.subr.mxu0 0.0
        %2092 = vmatpush1.msra.mxu0 %v1687
        %2093 = vmatprep.subr.mxu0 0.0
        %2094 = vmatpush1.msra.mxu0 %v1688
        %2095 = vmatprep.subr.mxu0 0.0
        %2096 = vmatpush1.msra.mxu0 %v1689
        %2097 = vmatprep.subr.mxu0 0.0
        %2098 = vmatpush1.msra.mxu0 0.0
        %2099 = vmatprep.subr.mxu0 0.0
        %2100 = vmatpush1.msra.mxu0 0.0
        %2101 = vmatprep.subr.mxu0 0.0
        %2102 = vmatpush1.msra.mxu0 0.0
        %2103 = vmatprep.subr.mxu0 0.0
        %2104 = vmatpush1.msra.mxu0 0.0
        %2105 = vmatprep.subr.mxu0 0.0
        %2106 = vmatpush1.msra.mxu0 0.0
        %2107 = vmatprep.subr.mxu0 0.0
        %2108 = vmatpush1.msra.mxu0 0.0
        %2109 = vmatprep.subr.mxu0 0.0
        %2110 = vmatpush1.msra.mxu0 0.0
        %2111 = vmatprep.subr.mxu0 0.0
        %2112 = vmatpush1.msra.mxu0 0.0
        %2113 = vmatprep.subr.mxu0 0.0
        %2114 = vmatpush1.msra.mxu0 0.0
        %2115 = vmatprep.subr.mxu0 0.0
        %2116 = vmatpush1.msra.mxu0 0.0
        %2117 = vmatprep.subr.mxu0 0.0
        %2118 = vmatpush1.msra.mxu0 0.0
        %2119 = vmatprep.subr.mxu0 0.0
        %2120 = vmatpush1.msra.mxu0 0.0
        %2121 = vmatprep.subr.mxu0 0.0
        %2122 = vmatpush1.msra.mxu0 0.0
        %2123 = vmatprep.subr.mxu0 0.0
        %2124 = vmatpush1.msra.mxu0 0.0
        %2125 = vmatprep.subr.mxu0 0.0
        %2126 = vmatpush1.msra.mxu0 0.0
        %2127 = vmatprep.subr.mxu0 0.0
        %2128 = vmatpush1.msra.mxu0 0.0
        %2129 = vmatprep.subr.mxu0 0.0
        %2130 = vmatpush1.msra.mxu0 0.0
        %2131 = vmatprep.subr.mxu0 0.0
        %2132 = vmatpush1.msra.mxu0 0.0
        %2133 = vmatprep.subr.mxu0 0.0
        %2134 = vmatpush1.msra.mxu0 0.0
        %2135 = vmatprep.subr.mxu0 0.0
        %2136 = vmatpush1.msra.mxu0 0.0
        %2137 = vmatprep.subr.mxu0 0.0
        %2138 = vmatpush1.msra.mxu0 0.0
        %2139 = vmatprep.subr.mxu0 0.0
        %2140 = vmatpush1.msra.mxu0 0.0
        %2141 = vmatprep.subr.mxu0 0.0
        %2142 = vmatpush1.msra.mxu0 0.0
        %2143 = vmatprep.subr.mxu0 0.0
        %2144 = vmatpush1.msra.mxu0 0.0
        %2145 = vmatprep.mubr.f32.mxu0 0.0
        %2146 = vmatmul.mubr.f32.gmra.mrb[0].mxu0 %v1037
        %v2147 = vpop.f32.mrb[0].mxu0
        %v2148 = vadd.f32 0.0, %v2147
        %v2149 = vpop.f32.mrb[0].mxu0
        %2150 = vmatprep.mubr.f32.mxu0 0.0
        %2151 = vmatmul.mubr.f32.gmra.mrb[0].mxu0 %v1040
        %v2152 = vpop.f32.mrb[0].mxu0
        %v2153 = vadd.f32 0.0, %v2152
        %v2154 = vpop.f32.mrb[0].mxu0
        %2155 = vdwg.mxu0
        %2156 = vmatprep.subr.mxu0 0.0
        %2157 = vmatpush1.msra.mxu0 %v1690
        %2158 = vmatprep.subr.mxu0 0.0
        %2159 = vmatpush1.msra.mxu0 %v1691
        %2160 = vmatprep.subr.mxu0 0.0
        %2161 = vmatpush1.msra.mxu0 %v1692
        %2162 = vmatprep.subr.mxu0 0.0
        %2163 = vmatpush1.msra.mxu0 %v1693
        %2164 = vmatprep.subr.mxu0 0.0
        %2165 = vmatpush1.msra.mxu0 %v1694
        %2166 = vmatprep.subr.mxu0 0.0
        %2167 = vmatpush1.msra.mxu0 %v1695
        %2168 = vmatprep.subr.mxu0 0.0
        %2169 = vmatpush1.msra.mxu0 %v1696
        %2170 = vmatprep.subr.mxu0 0.0
        %2171 = vmatpush1.msra.mxu0 %v1697
        %2172 = vmatprep.subr.mxu0 0.0
        %2173 = vmatpush1.msra.mxu0 0.0
        %2174 = vmatprep.subr.mxu0 0.0
        %2175 = vmatpush1.msra.mxu0 0.0
        %2176 = vmatprep.subr.mxu0 0.0
        %2177 = vmatpush1.msra.mxu0 0.0
        %2178 = vmatprep.subr.mxu0 0.0
        %2179 = vmatpush1.msra.mxu0 0.0
        %2180 = vmatprep.subr.mxu0 0.0
        %2181 = vmatpush1.msra.mxu0 0.0
        %2182 = vmatprep.subr.mxu0 0.0
        %2183 = vmatpush1.msra.mxu0 0.0
        %2184 = vmatprep.subr.mxu0 0.0
        %2185 = vmatpush1.msra.mxu0 0.0
        %2186 = vmatprep.subr.mxu0 0.0
        %2187 = vmatpush1.msra.mxu0 0.0
        %2188 = vmatprep.subr.mxu0 0.0
        %2189 = vmatpush1.msra.mxu0 0.0
        %2190 = vmatprep.subr.mxu0 0.0
        %2191 = vmatpush1.msra.mxu0 0.0
        %2192 = vmatprep.subr.mxu0 0.0
        %2193 = vmatpush1.msra.mxu0 0.0
        %2194 = vmatprep.subr.mxu0 0.0
        %2195 = vmatpush1.msra.mxu0 0.0
        %2196 = vmatprep.subr.mxu0 0.0
        %2197 = vmatpush1.msra.mxu0 0.0
        %2198 = vmatprep.subr.mxu0 0.0
        %2199 = vmatpush1.msra.mxu0 0.0
        %2200 = vmatprep.subr.mxu0 0.0
        %2201 = vmatpush1.msra.mxu0 0.0
        %2202 = vmatprep.subr.mxu0 0.0
        %2203 = vmatpush1.msra.mxu0 0.0
        %2204 = vmatprep.subr.mxu0 0.0
        %2205 = vmatpush1.msra.mxu0 0.0
        %2206 = vmatprep.subr.mxu0 0.0
        %2207 = vmatpush1.msra.mxu0 0.0
        %2208 = vmatprep.subr.mxu0 0.0
        %2209 = vmatpush1.msra.mxu0 0.0
        %2210 = vmatprep.subr.mxu0 0.0
        %2211 = vmatpush1.msra.mxu0 0.0
        %2212 = vmatprep.subr.mxu0 0.0
        %2213 = vmatpush1.msra.mxu0 0.0
        %2214 = vmatprep.subr.mxu0 0.0
        %2215 = vmatpush1.msra.mxu0 0.0
        %2216 = vmatprep.subr.mxu0 0.0
        %2217 = vmatpush1.msra.mxu0 0.0
        %2218 = vmatprep.subr.mxu0 0.0
        %2219 = vmatpush1.msra.mxu0 0.0
        %2220 = vmatprep.mubr.f32.mxu0 0.0
        %2221 = vmatmul.mubr.f32.gmra.mrb[0].mxu0 %v1037
        %v2222 = vpop.f32.mrb[0].mxu0
        %v2223 = vadd.f32 0.0, %v2222
        %v2224 = vpop.f32.mrb[0].mxu0
        %2225 = vmatprep.mubr.f32.mxu0 0.0
        %2226 = vmatmul.mubr.f32.gmra.mrb[0].mxu0 %v1040
        %v2227 = vpop.f32.mrb[0].mxu0
        %v2228 = vadd.f32 0.0, %v2227
        %v2229 = vpop.f32.mrb[0].mxu0
        %2230 = vdwg.mxu0
        %2231 = vmatprep.subr.mxu0 0.0
        %2232 = vmatpush1.msra.mxu0 %v1698
        %2233 = vmatprep.subr.mxu0 0.0
        %2234 = vmatpush1.msra.mxu0 %v1699
        %2235 = vmatprep.subr.mxu0 0.0
        %2236 = vmatpush1.msra.mxu0 %v1700
        %2237 = vmatprep.subr.mxu0 0.0
        %2238 = vmatpush1.msra.mxu0 %v1701
        %2239 = vmatprep.subr.mxu0 0.0
        %2240 = vmatpush1.msra.mxu0 %v1702
        %2241 = vmatprep.subr.mxu0 0.0
        %2242 = vmatpush1.msra.mxu0 %v1703
        %2243 = vmatprep.subr.mxu0 0.0
        %2244 = vmatpush1.msra.mxu0 %v1704
        %2245 = vmatprep.subr.mxu0 0.0
        %2246 = vmatpush1.msra.mxu0 %v1705
        %2247 = vmatprep.subr.mxu0 0.0
        %2248 = vmatpush1.msra.mxu0 0.0
        %2249 = vmatprep.subr.mxu0 0.0
        %2250 = vmatpush1.msra.mxu0 0.0
        %2251 = vmatprep.subr.mxu0 0.0
        %2252 = vmatpush1.msra.mxu0 0.0
        %2253 = vmatprep.subr.mxu0 0.0
        %2254 = vmatpush1.msra.mxu0 0.0
        %2255 = vmatprep.subr.mxu0 0.0
        %2256 = vmatpush1.msra.mxu0 0.0
        %2257 = vmatprep.subr.mxu0 0.0
        %2258 = vmatpush1.msra.mxu0 0.0
        %2259 = vmatprep.subr.mxu0 0.0
        %2260 = vmatpush1.msra.mxu0 0.0
        %2261 = vmatprep.subr.mxu0 0.0
        %2262 = vmatpush1.msra.mxu0 0.0
        %2263 = vmatprep.subr.mxu0 0.0
        %2264 = vmatpush1.msra.mxu0 0.0
        %2265 = vmatprep.subr.mxu0 0.0
        %2266 = vmatpush1.msra.mxu0 0.0
        %2267 = vmatprep.subr.mxu0 0.0
        %2268 = vmatpush1.msra.mxu0 0.0
        %2269 = vmatprep.subr.mxu0 0.0
        %2270 = vmatpush1.msra.mxu0 0.0
        %2271 = vmatprep.subr.mxu0 0.0
        %2272 = vmatpush1.msra.mxu0 0.0
        %2273 = vmatprep.subr.mxu0 0.0
        %2274 = vmatpush1.msra.mxu0 0.0
        %2275 = vmatprep.subr.mxu0 0.0
        %2276 = vmatpush1.msra.mxu0 0.0
        %2277 = vmatprep.subr.mxu0 0.0
        %2278 = vmatpush1.msra.mxu0 0.0
        %2279 = vmatprep.subr.mxu0 0.0
        %2280 = vmatpush1.msra.mxu0 0.0
        %2281 = vmatprep.subr.mxu0 0.0
        %2282 = vmatpush1.msra.mxu0 0.0
        %2283 = vmatprep.subr.mxu0 0.0
        %2284 = vmatpush1.msra.mxu0 0.0
        %2285 = vmatprep.subr.mxu0 0.0
        %2286 = vmatpush1.msra.mxu0 0.0
        %2287 = vmatprep.subr.mxu0 0.0
        %2288 = vmatpush1.msra.mxu0 0.0
        %2289 = vmatprep.subr.mxu0 0.0
        %2290 = vmatpush1.msra.mxu0 0.0
        %2291 = vmatprep.subr.mxu0 0.0
        %2292 = vmatpush1.msra.mxu0 0.0
        %2293 = vmatprep.subr.mxu0 0.0
        %2294 = vmatpush1.msra.mxu0 0.0
        %2295 = vmatprep.mubr.f32.mxu0 0.0
        %2296 = vmatmul.mubr.f32.gmra.mrb[0].mxu0 %v1037
        %v2297 = vpop.f32.mrb[0].mxu0
        %v2298 = vadd.f32 0.0, %v2297
        %v2299 = vpop.f32.mrb[0].mxu0
        %2300 = vmatprep.mubr.f32.mxu0 0.0
        %2301 = vmatmul.mubr.f32.gmra.mrb[0].mxu0 %v1040
        %v2302 = vpop.f32.mrb[0].mxu0
        %v2303 = vadd.f32 0.0, %v2302
        %v2304 = vpop.f32.mrb[0].mxu0
        %2305 = vdwg.mxu0
        %vm2306 = vcmask 64512
        %v2308 = vsel %vm2306, %v439, 0
        %v2311 = vsel %vm2306, %v444, 0
        %v2314 = vsel %vm2306, %v1109, 0
        %v2317 = vsel %vm2306, %v1114, 0
        %2319 = vmatprep.subr.mxu0 0.0
        %2320 = vmatpush1.xpose.msra.mxu0 %v2314
        %2321 = vmatprep.subr.mxu0 0.0
        %2322 = vmatpush1.xpose.msra.mxu0 %v2317
        %2323 = vmatprep.subr.mxu0 0.0
        %2324 = vmatpush1.xpose.msra.mxu0 0.0
        %2325 = vmatprep.subr.mxu0 0.0
        %2326 = vmatpush1.xpose.msra.mxu0 0.0
        %2327 = vmatprep.subr.mxu0 0.0
        %2328 = vmatpush1.xpose.msra.mxu0 0.0
        %2329 = vmatprep.subr.mxu0 0.0
        %2330 = vmatpush1.xpose.msra.mxu0 0.0
        %2331 = vmatprep.subr.mxu0 0.0
        %2332 = vmatpush1.xpose.msra.mxu0 0.0
        %2333 = vmatprep.subr.mxu0 0.0
        %2334 = vmatpush1.xpose.msra.mxu0 0.0
        %2335 = vmatprep.subr.mxu0 0.0
        %2336 = vmatpush1.xpose.msra.mxu0 0.0
        %2337 = vmatprep.subr.mxu0 0.0
        %2338 = vmatpush1.xpose.msra.mxu0 0.0
        %2339 = vmatprep.subr.mxu0 0.0
        %2340 = vmatpush1.xpose.msra.mxu0 0.0
        %2341 = vmatprep.subr.mxu0 0.0
        %2342 = vmatpush1.xpose.msra.mxu0 0.0
        %2343 = vmatprep.subr.mxu0 0.0
        %2344 = vmatpush1.xpose.msra.mxu0 0.0
        %2345 = vmatprep.subr.mxu0 0.0
        %2346 = vmatpush1.xpose.msra.mxu0 0.0
        %2347 = vmatprep.subr.mxu0 0.0
        %2348 = vmatpush1.xpose.msra.mxu0 0.0
        %2349 = vmatprep.subr.mxu0 0.0
        %2350 = vmatpush1.xpose.msra.mxu0 0.0
        %2351 = vmatprep.subr.mxu0 0.0
        %2352 = vmatpush1.xpose.msra.mxu0 0.0
        %2353 = vmatprep.subr.mxu0 0.0
        %2354 = vmatpush1.xpose.msra.mxu0 0.0
        %2355 = vmatprep.subr.mxu0 0.0
        %2356 = vmatpush1.xpose.msra.mxu0 0.0
        %2357 = vmatprep.subr.mxu0 0.0
        %2358 = vmatpush1.xpose.msra.mxu0 0.0
        %2359 = vmatprep.subr.mxu0 0.0
        %2360 = vmatpush1.xpose.msra.mxu0 0.0
        %2361 = vmatprep.subr.mxu0 0.0
        %2362 = vmatpush1.xpose.msra.mxu0 0.0
        %2363 = vmatprep.subr.mxu0 0.0
        %2364 = vmatpush1.xpose.msra.mxu0 0.0
        %2365 = vmatprep.subr.mxu0 0.0
        %2366 = vmatpush1.xpose.msra.mxu0 0.0
        %2367 = vmatprep.subr.mxu0 0.0
        %2368 = vmatpush1.xpose.msra.mxu0 0.0
        %2369 = vmatprep.subr.mxu0 0.0
        %2370 = vmatpush1.xpose.msra.mxu0 0.0
        %2371 = vmatprep.subr.mxu0 0.0
        %2372 = vmatpush1.xpose.msra.mxu0 0.0
        %2373 = vmatprep.subr.mxu0 0.0
        %2374 = vmatpush1.xpose.msra.mxu0 0.0
        %2375 = vmatprep.subr.mxu0 0.0
        %2376 = vmatpush1.xpose.msra.mxu0 0.0
        %2377 = vmatprep.subr.mxu0 0.0
        %2378 = vmatpush1.xpose.msra.mxu0 0.0
        %2379 = vmatprep.subr.mxu0 0.0
        %2380 = vmatpush1.xpose.msra.mxu0 0.0
        %2381 = vmatprep.subr.mxu0 0.0
        %2382 = vmatpush1.xpose.msra.mxu0 0.0
        %2383 = vmatprep.mubr.f32.mxu0 0.0
        %2384 = vmatmul.mubr.f32.gmra.mrb[0].mxu0 %v2308
        %v2385 = vpop.f32.mrb[0].mxu0
        %v2386 = vadd.f32 0.0, %v2385
        %v2387 = vpop.f32.mrb[0].mxu0
        %2388 = vmatprep.mubr.f32.mxu0 0.0
        %2389 = vmatmul.mubr.f32.gmra.mrb[0].mxu0 %v2311
        %v2390 = vpop.f32.mrb[0].mxu0
        %v2391 = vadd.f32 0.0, %v2390
        %v2392 = vpop.f32.mrb[0].mxu0
        %2393 = vdwg.mxu0
        %v2395 = vsel %vm2306, %v514, 0
        %v2398 = vsel %vm2306, %v519, 0
        %v2401 = vsel %vm2306, %v1184, 0
        %v2404 = vsel %vm2306, %v1189, 0
        %2406 = vmatprep.subr.mxu0 0.0
        %2407 = vmatpush1.xpose.msra.mxu0 %v2401
        %2408 = vmatprep.subr.mxu0 0.0
        %2409 = vmatpush1.xpose.msra.mxu0 %v2404
        %2410 = vmatprep.subr.mxu0 0.0
        %2411 = vmatpush1.xpose.msra.mxu0 0.0
        %2412 = vmatprep.subr.mxu0 0.0
        %2413 = vmatpush1.xpose.msra.mxu0 0.0
        %2414 = vmatprep.subr.mxu0 0.0
        %2415 = vmatpush1.xpose.msra.mxu0 0.0
        %2416 = vmatprep.subr.mxu0 0.0
        %2417 = vmatpush1.xpose.msra.mxu0 0.0
        %2418 = vmatprep.subr.mxu0 0.0
        %2419 = vmatpush1.xpose.msra.mxu0 0.0
        %2420 = vmatprep.subr.mxu0 0.0
        %2421 = vmatpush1.xpose.msra.mxu0 0.0
        %2422 = vmatprep.subr.mxu0 0.0
        %2423 = vmatpush1.xpose.msra.mxu0 0.0
        %2424 = vmatprep.subr.mxu0 0.0
        %2425 = vmatpush1.xpose.msra.mxu0 0.0
        %2426 = vmatprep.subr.mxu0 0.0
        %2427 = vmatpush1.xpose.msra.mxu0 0.0
        %2428 = vmatprep.subr.mxu0 0.0
        %2429 = vmatpush1.xpose.msra.mxu0 0.0
        %2430 = vmatprep.subr.mxu0 0.0
        %2431 = vmatpush1.xpose.msra.mxu0 0.0
        %2432 = vmatprep.subr.mxu0 0.0
        %2433 = vmatpush1.xpose.msra.mxu0 0.0
        %2434 = vmatprep.subr.mxu0 0.0
        %2435 = vmatpush1.xpose.msra.mxu0 0.0
        %2436 = vmatprep.subr.mxu0 0.0
        %2437 = vmatpush1.xpose.msra.mxu0 0.0
        %2438 = vmatprep.subr.mxu0 0.0
        %2439 = vmatpush1.xpose.msra.mxu0 0.0
        %2440 = vmatprep.subr.mxu0 0.0
        %2441 = vmatpush1.xpose.msra.mxu0 0.0
        %2442 = vmatprep.subr.mxu0 0.0
        %2443 = vmatpush1.xpose.msra.mxu0 0.0
        %2444 = vmatprep.subr.mxu0 0.0
        %2445 = vmatpush1.xpose.msra.mxu0 0.0
        %2446 = vmatprep.subr.mxu0 0.0
        %2447 = vmatpush1.xpose.msra.mxu0 0.0
        %2448 = vmatprep.subr.mxu0 0.0
        %2449 = vmatpush1.xpose.msra.mxu0 0.0
        %2450 = vmatprep.subr.mxu0 0.0
        %2451 = vmatpush1.xpose.msra.mxu0 0.0
        %2452 = vmatprep.subr.mxu0 0.0
        %2453 = vmatpush1.xpose.msra.mxu0 0.0
        %2454 = vmatprep.subr.mxu0 0.0
        %2455 = vmatpush1.xpose.msra.mxu0 0.0
        %2456 = vmatprep.subr.mxu0 0.0
        %2457 = vmatpush1.xpose.msra.mxu0 0.0
        %2458 = vmatprep.subr.mxu0 0.0
        %2459 = vmatpush1.xpose.msra.mxu0 0.0
        %2460 = vmatprep.subr.mxu0 0.0
        %2461 = vmatpush1.xpose.msra.mxu0 0.0
        %2462 = vmatprep.subr.mxu0 0.0
        %2463 = vmatpush1.xpose.msra.mxu0 0.0
        %2464 = vmatprep.subr.mxu0 0.0
        %2465 = vmatpush1.xpose.msra.mxu0 0.0
        %2466 = vmatprep.subr.mxu0 0.0
        %2467 = vmatpush1.xpose.msra.mxu0 0.0
        %2468 = vmatprep.subr.mxu0 0.0
        %2469 = vmatpush1.xpose.msra.mxu0 0.0
        %2470 = vmatprep.mubr.f32.mxu0 0.0
        %2471 = vmatmul.mubr.f32.gmra.mrb[0].mxu0 %v2395
        %v2472 = vpop.f32.mrb[0].mxu0
        %v2473 = vadd.f32 0.0, %v2472
        %v2474 = vpop.f32.mrb[0].mxu0
        %2475 = vmatprep.mubr.f32.mxu0 0.0
        %2476 = vmatmul.mubr.f32.gmra.mrb[0].mxu0 %v2398
        %v2477 = vpop.f32.mrb[0].mxu0
        %v2478 = vadd.f32 0.0, %v2477
        %v2479 = vpop.f32.mrb[0].mxu0
        %2480 = vdwg.mxu0
        %v2482 = vsel %vm2306, %v589, 0
        %v2485 = vsel %vm2306, %v594, 0
        %v2488 = vsel %vm2306, %v1259, 0
        %v2491 = vsel %vm2306, %v1264, 0
        %2493 = vmatprep.subr.mxu0 0.0
        %2494 = vmatpush1.xpose.msra.mxu0 %v2488
        %2495 = vmatprep.subr.mxu0 0.0
        %2496 = vmatpush1.xpose.msra.mxu0 %v2491
        %2497 = vmatprep.subr.mxu0 0.0
        %2498 = vmatpush1.xpose.msra.mxu0 0.0
        %2499 = vmatprep.subr.mxu0 0.0
        %2500 = vmatpush1.xpose.msra.mxu0 0.0
        %2501 = vmatprep.subr.mxu0 0.0
        %2502 = vmatpush1.xpose.msra.mxu0 0.0
        %2503 = vmatprep.subr.mxu0 0.0
        %2504 = vmatpush1.xpose.msra.mxu0 0.0
        %2505 = vmatprep.subr.mxu0 0.0
        %2506 = vmatpush1.xpose.msra.mxu0 0.0
        %2507 = vmatprep.subr.mxu0 0.0
        %2508 = vmatpush1.xpose.msra.mxu0 0.0
        %2509 = vmatprep.subr.mxu0 0.0
        %2510 = vmatpush1.xpose.msra.mxu0 0.0
        %2511 = vmatprep.subr.mxu0 0.0
        %2512 = vmatpush1.xpose.msra.mxu0 0.0
        %2513 = vmatprep.subr.mxu0 0.0
        %2514 = vmatpush1.xpose.msra.mxu0 0.0
        %2515 = vmatprep.subr.mxu0 0.0
        %2516 = vmatpush1.xpose.msra.mxu0 0.0
        %2517 = vmatprep.subr.mxu0 0.0
        %2518 = vmatpush1.xpose.msra.mxu0 0.0
        %2519 = vmatprep.subr.mxu0 0.0
        %2520 = vmatpush1.xpose.msra.mxu0 0.0
        %2521 = vmatprep.subr.mxu0 0.0
        %2522 = vmatpush1.xpose.msra.mxu0 0.0
        %2523 = vmatprep.subr.mxu0 0.0
        %2524 = vmatpush1.xpose.msra.mxu0 0.0
        %2525 = vmatprep.subr.mxu0 0.0
        %2526 = vmatpush1.xpose.msra.mxu0 0.0
        %2527 = vmatprep.subr.mxu0 0.0
        %2528 = vmatpush1.xpose.msra.mxu0 0.0
        %2529 = vmatprep.subr.mxu0 0.0
        %2530 = vmatpush1.xpose.msra.mxu0 0.0
        %2531 = vmatprep.subr.mxu0 0.0
        %2532 = vmatpush1.xpose.msra.mxu0 0.0
        %2533 = vmatprep.subr.mxu0 0.0
        %2534 = vmatpush1.xpose.msra.mxu0 0.0
        %2535 = vmatprep.subr.mxu0 0.0
        %2536 = vmatpush1.xpose.msra.mxu0 0.0
        %2537 = vmatprep.subr.mxu0 0.0
        %2538 = vmatpush1.xpose.msra.mxu0 0.0
        %2539 = vmatprep.subr.mxu0 0.0
        %2540 = vmatpush1.xpose.msra.mxu0 0.0
        %2541 = vmatprep.subr.mxu0 0.0
        %2542 = vmatpush1.xpose.msra.mxu0 0.0
        %2543 = vmatprep.subr.mxu0 0.0
        %2544 = vmatpush1.xpose.msra.mxu0 0.0
        %2545 = vmatprep.subr.mxu0 0.0
        %2546 = vmatpush1.xpose.msra.mxu0 0.0
        %2547 = vmatprep.subr.mxu0 0.0
        %2548 = vmatpush1.xpose.msra.mxu0 0.0
        %2549 = vmatprep.subr.mxu0 0.0
        %2550 = vmatpush1.xpose.msra.mxu0 0.0
        %2551 = vmatprep.subr.mxu0 0.0
        %2552 = vmatpush1.xpose.msra.mxu0 0.0
        %2553 = vmatprep.subr.mxu0 0.0
        %2554 = vmatpush1.xpose.msra.mxu0 0.0
        %2555 = vmatprep.subr.mxu0 0.0
        %2556 = vmatpush1.xpose.msra.mxu0 0.0
        %2557 = vmatprep.mubr.f32.mxu0 0.0
        %2558 = vmatmul.mubr.f32.gmra.mrb[0].mxu0 %v2482
        %v2559 = vpop.f32.mrb[0].mxu0
        %v2560 = vadd.f32 0.0, %v2559
        %v2561 = vpop.f32.mrb[0].mxu0
        %2562 = vmatprep.mubr.f32.mxu0 0.0
        %2563 = vmatmul.mubr.f32.gmra.mrb[0].mxu0 %v2485
        %v2564 = vpop.f32.mrb[0].mxu0
        %v2565 = vadd.f32 0.0, %v2564
        %v2566 = vpop.f32.mrb[0].mxu0
        %2567 = vdwg.mxu0
        %v2569 = vsel %vm2306, %v664, 0
        %v2572 = vsel %vm2306, %v669, 0
        %v2575 = vsel %vm2306, %v1334, 0
        %v2578 = vsel %vm2306, %v1339, 0
        %2580 = vmatprep.subr.mxu0 0.0
        %2581 = vmatpush1.xpose.msra.mxu0 %v2575
        %2582 = vmatprep.subr.mxu0 0.0
        %2583 = vmatpush1.xpose.msra.mxu0 %v2578
        %2584 = vmatprep.subr.mxu0 0.0
        %2585 = vmatpush1.xpose.msra.mxu0 0.0
        %2586 = vmatprep.subr.mxu0 0.0
        %2587 = vmatpush1.xpose.msra.mxu0 0.0
        %2588 = vmatprep.subr.mxu0 0.0
        %2589 = vmatpush1.xpose.msra.mxu0 0.0
        %2590 = vmatprep.subr.mxu0 0.0
        %2591 = vmatpush1.xpose.msra.mxu0 0.0
        %2592 = vmatprep.subr.mxu0 0.0
        %2593 = vmatpush1.xpose.msra.mxu0 0.0
        %2594 = vmatprep.subr.mxu0 0.0
        %2595 = vmatpush1.xpose.msra.mxu0 0.0
        %2596 = vmatprep.subr.mxu0 0.0
        %2597 = vmatpush1.xpose.msra.mxu0 0.0
        %2598 = vmatprep.subr.mxu0 0.0
        %2599 = vmatpush1.xpose.msra.mxu0 0.0
        %2600 = vmatprep.subr.mxu0 0.0
        %2601 = vmatpush1.xpose.msra.mxu0 0.0
        %2602 = vmatprep.subr.mxu0 0.0
        %2603 = vmatpush1.xpose.msra.mxu0 0.0
        %2604 = vmatprep.subr.mxu0 0.0
        %2605 = vmatpush1.xpose.msra.mxu0 0.0
        %2606 = vmatprep.subr.mxu0 0.0
        %2607 = vmatpush1.xpose.msra.mxu0 0.0
        %2608 = vmatprep.subr.mxu0 0.0
        %2609 = vmatpush1.xpose.msra.mxu0 0.0
        %2610 = vmatprep.subr.mxu0 0.0
        %2611 = vmatpush1.xpose.msra.mxu0 0.0
        %2612 = vmatprep.subr.mxu0 0.0
        %2613 = vmatpush1.xpose.msra.mxu0 0.0
        %2614 = vmatprep.subr.mxu0 0.0
        %2615 = vmatpush1.xpose.msra.mxu0 0.0
        %2616 = vmatprep.subr.mxu0 0.0
        %2617 = vmatpush1.xpose.msra.mxu0 0.0
        %2618 = vmatprep.subr.mxu0 0.0
        %2619 = vmatpush1.xpose.msra.mxu0 0.0
        %2620 = vmatprep.subr.mxu0 0.0
        %2621 = vmatpush1.xpose.msra.mxu0 0.0
        %2622 = vmatprep.subr.mxu0 0.0
        %2623 = vmatpush1.xpose.msra.mxu0 0.0
        %2624 = vmatprep.subr.mxu0 0.0
        %2625 = vmatpush1.xpose.msra.mxu0 0.0
        %2626 = vmatprep.subr.mxu0 0.0
        %2627 = vmatpush1.xpose.msra.mxu0 0.0
        %2628 = vmatprep.subr.mxu0 0.0
        %2629 = vmatpush1.xpose.msra.mxu0 0.0
        %2630 = vmatprep.subr.mxu0 0.0
        %2631 = vmatpush1.xpose.msra.mxu0 0.0
        %2632 = vmatprep.subr.mxu0 0.0
        %2633 = vmatpush1.xpose.msra.mxu0 0.0
        %2634 = vmatprep.subr.mxu0 0.0
        %2635 = vmatpush1.xpose.msra.mxu0 0.0
        %2636 = vmatprep.subr.mxu0 0.0
        %2637 = vmatpush1.xpose.msra.mxu0 0.0
        %2638 = vmatprep.subr.mxu0 0.0
        %2639 = vmatpush1.xpose.msra.mxu0 0.0
        %2640 = vmatprep.subr.mxu0 0.0
        %2641 = vmatpush1.xpose.msra.mxu0 0.0
        %2642 = vmatprep.subr.mxu0 0.0
        %2643 = vmatpush1.xpose.msra.mxu0 0.0
        %2644 = vmatprep.mubr.f32.mxu0 0.0
        %2645 = vmatmul.mubr.f32.gmra.mrb[0].mxu0 %v2569
        %v2646 = vpop.f32.mrb[0].mxu0
        %v2647 = vadd.f32 0.0, %v2646
        %v2648 = vpop.f32.mrb[0].mxu0
        %2649 = vmatprep.mubr.f32.mxu0 0.0
        %2650 = vmatmul.mubr.f32.gmra.mrb[0].mxu0 %v2572
        %v2651 = vpop.f32.mrb[0].mxu0
        %v2652 = vadd.f32 0.0, %v2651
        %v2653 = vpop.f32.mrb[0].mxu0
        %2654 = vdwg.mxu0
        %v2656 = vsel %vm2306, %v739, 0
        %v2659 = vsel %vm2306, %v744, 0
        %v2662 = vsel %vm2306, %v1409, 0
        %v2665 = vsel %vm2306, %v1414, 0
        %2667 = vmatprep.subr.mxu0 0.0
        %2668 = vmatpush1.xpose.msra.mxu0 %v2662
        %2669 = vmatprep.subr.mxu0 0.0
        %2670 = vmatpush1.xpose.msra.mxu0 %v2665
        %2671 = vmatprep.subr.mxu0 0.0
        %2672 = vmatpush1.xpose.msra.mxu0 0.0
        %2673 = vmatprep.subr.mxu0 0.0
        %2674 = vmatpush1.xpose.msra.mxu0 0.0
        %2675 = vmatprep.subr.mxu0 0.0
        %2676 = vmatpush1.xpose.msra.mxu0 0.0
        %2677 = vmatprep.subr.mxu0 0.0
        %2678 = vmatpush1.xpose.msra.mxu0 0.0
        %2679 = vmatprep.subr.mxu0 0.0
        %2680 = vmatpush1.xpose.msra.mxu0 0.0
        %2681 = vmatprep.subr.mxu0 0.0
        %2682 = vmatpush1.xpose.msra.mxu0 0.0
        %2683 = vmatprep.subr.mxu0 0.0
        %2684 = vmatpush1.xpose.msra.mxu0 0.0
        %2685 = vmatprep.subr.mxu0 0.0
        %2686 = vmatpush1.xpose.msra.mxu0 0.0
        %2687 = vmatprep.subr.mxu0 0.0
        %2688 = vmatpush1.xpose.msra.mxu0 0.0
        %2689 = vmatprep.subr.mxu0 0.0
        %2690 = vmatpush1.xpose.msra.mxu0 0.0
        %2691 = vmatprep.subr.mxu0 0.0
        %2692 = vmatpush1.xpose.msra.mxu0 0.0
        %2693 = vmatprep.subr.mxu0 0.0
        %2694 = vmatpush1.xpose.msra.mxu0 0.0
        %2695 = vmatprep.subr.mxu0 0.0
        %2696 = vmatpush1.xpose.msra.mxu0 0.0
        %2697 = vmatprep.subr.mxu0 0.0
        %2698 = vmatpush1.xpose.msra.mxu0 0.0
        %2699 = vmatprep.subr.mxu0 0.0
        %2700 = vmatpush1.xpose.msra.mxu0 0.0
        %2701 = vmatprep.subr.mxu0 0.0
        %2702 = vmatpush1.xpose.msra.mxu0 0.0
        %2703 = vmatprep.subr.mxu0 0.0
        %2704 = vmatpush1.xpose.msra.mxu0 0.0
        %2705 = vmatprep.subr.mxu0 0.0
        %2706 = vmatpush1.xpose.msra.mxu0 0.0
        %2707 = vmatprep.subr.mxu0 0.0
        %2708 = vmatpush1.xpose.msra.mxu0 0.0
        %2709 = vmatprep.subr.mxu0 0.0
        %2710 = vmatpush1.xpose.msra.mxu0 0.0
        %2711 = vmatprep.subr.mxu0 0.0
        %2712 = vmatpush1.xpose.msra.mxu0 0.0
        %2713 = vmatprep.subr.mxu0 0.0
        %2714 = vmatpush1.xpose.msra.mxu0 0.0
        %2715 = vmatprep.subr.mxu0 0.0
        %2716 = vmatpush1.xpose.msra.mxu0 0.0
        %2717 = vmatprep.subr.mxu0 0.0
        %2718 = vmatpush1.xpose.msra.mxu0 0.0
        %2719 = vmatprep.subr.mxu0 0.0
        %2720 = vmatpush1.xpose.msra.mxu0 0.0
        %2721 = vmatprep.subr.mxu0 0.0
        %2722 = vmatpush1.xpose.msra.mxu0 0.0
        %2723 = vmatprep.subr.mxu0 0.0
        %2724 = vmatpush1.xpose.msra.mxu0 0.0
        %2725 = vmatprep.subr.mxu0 0.0
        %2726 = vmatpush1.xpose.msra.mxu0 0.0
        %2727 = vmatprep.subr.mxu0 0.0
        %2728 = vmatpush1.xpose.msra.mxu0 0.0
        %2729 = vmatprep.subr.mxu0 0.0
        %2730 = vmatpush1.xpose.msra.mxu0 0.0
        %2731 = vmatprep.mubr.f32.mxu0 0.0
        %2732 = vmatmul.mubr.f32.gmra.mrb[0].mxu0 %v2656
        %v2733 = vpop.f32.mrb[0].mxu0
        %v2734 = vadd.f32 0.0, %v2733
        %v2735 = vpop.f32.mrb[0].mxu0
        %2736 = vmatprep.mubr.f32.mxu0 0.0
        %2737 = vmatmul.mubr.f32.gmra.mrb[0].mxu0 %v2659
        %v2738 = vpop.f32.mrb[0].mxu0
        %v2739 = vadd.f32 0.0, %v2738
        %v2740 = vpop.f32.mrb[0].mxu0
        %2741 = vdwg.mxu0
        %v2743 = vsel %vm2306, %v814, 0
        %v2746 = vsel %vm2306, %v819, 0
        %v2749 = vsel %vm2306, %v1484, 0
        %v2752 = vsel %vm2306, %v1489, 0
        %2754 = vmatprep.subr.mxu0 0.0
        %2755 = vmatpush1.xpose.msra.mxu0 %v2749
        %2756 = vmatprep.subr.mxu0 0.0
        %2757 = vmatpush1.xpose.msra.mxu0 %v2752
        %2758 = vmatprep.subr.mxu0 0.0
        %2759 = vmatpush1.xpose.msra.mxu0 0.0
        %2760 = vmatprep.subr.mxu0 0.0
        %2761 = vmatpush1.xpose.msra.mxu0 0.0
        %2762 = vmatprep.subr.mxu0 0.0
        %2763 = vmatpush1.xpose.msra.mxu0 0.0
        %2764 = vmatprep.subr.mxu0 0.0
        %2765 = vmatpush1.xpose.msra.mxu0 0.0
        %2766 = vmatprep.subr.mxu0 0.0
        %2767 = vmatpush1.xpose.msra.mxu0 0.0
        %2768 = vmatprep.subr.mxu0 0.0
        %2769 = vmatpush1.xpose.msra.mxu0 0.0
        %2770 = vmatprep.subr.mxu0 0.0
        %2771 = vmatpush1.xpose.msra.mxu0 0.0
        %2772 = vmatprep.subr.mxu0 0.0
        %2773 = vmatpush1.xpose.msra.mxu0 0.0
        %2774 = vmatprep.subr.mxu0 0.0
        %2775 = vmatpush1.xpose.msra.mxu0 0.0
        %2776 = vmatprep.subr.mxu0 0.0
        %2777 = vmatpush1.xpose.msra.mxu0 0.0
        %2778 = vmatprep.subr.mxu0 0.0
        %2779 = vmatpush1.xpose.msra.mxu0 0.0
        %2780 = vmatprep.subr.mxu0 0.0
        %2781 = vmatpush1.xpose.msra.mxu0 0.0
        %2782 = vmatprep.subr.mxu0 0.0
        %2783 = vmatpush1.xpose.msra.mxu0 0.0
        %2784 = vmatprep.subr.mxu0 0.0
        %2785 = vmatpush1.xpose.msra.mxu0 0.0
        %2786 = vmatprep.subr.mxu0 0.0
        %2787 = vmatpush1.xpose.msra.mxu0 0.0
        %2788 = vmatprep.subr.mxu0 0.0
        %2789 = vmatpush1.xpose.msra.mxu0 0.0
        %2790 = vmatprep.subr.mxu0 0.0
        %2791 = vmatpush1.xpose.msra.mxu0 0.0
        %2792 = vmatprep.subr.mxu0 0.0
        %2793 = vmatpush1.xpose.msra.mxu0 0.0
        %2794 = vmatprep.subr.mxu0 0.0
        %2795 = vmatpush1.xpose.msra.mxu0 0.0
        %2796 = vmatprep.subr.mxu0 0.0
        %2797 = vmatpush1.xpose.msra.mxu0 0.0
        %2798 = vmatprep.subr.mxu0 0.0
        %2799 = vmatpush1.xpose.msra.mxu0 0.0
        %2800 = vmatprep.subr.mxu0 0.0
        %2801 = vmatpush1.xpose.msra.mxu0 0.0
        %2802 = vmatprep.subr.mxu0 0.0
        %2803 = vmatpush1.xpose.msra.mxu0 0.0
        %2804 = vmatprep.subr.mxu0 0.0
        %2805 = vmatpush1.xpose.msra.mxu0 0.0
        %2806 = vmatprep.subr.mxu0 0.0
        %2807 = vmatpush1.xpose.msra.mxu0 0.0
        %2808 = vmatprep.subr.mxu0 0.0
        %2809 = vmatpush1.xpose.msra.mxu0 0.0
        %2810 = vmatprep.subr.mxu0 0.0
        %2811 = vmatpush1.xpose.msra.mxu0 0.0
        %2812 = vmatprep.subr.mxu0 0.0
        %2813 = vmatpush1.xpose.msra.mxu0 0.0
        %2814 = vmatprep.subr.mxu0 0.0
        %2815 = vmatpush1.xpose.msra.mxu0 0.0
        %2816 = vmatprep.subr.mxu0 0.0
        %2817 = vmatpush1.xpose.msra.mxu0 0.0
        %2818 = vmatprep.mubr.f32.mxu0 0.0
        %2819 = vmatmul.mubr.f32.gmra.mrb[0].mxu0 %v2743
        %v2820 = vpop.f32.mrb[0].mxu0
        %v2821 = vadd.f32 0.0, %v2820
        %v2822 = vpop.f32.mrb[0].mxu0
        %2823 = vmatprep.mubr.f32.mxu0 0.0
        %2824 = vmatmul.mubr.f32.gmra.mrb[0].mxu0 %v2746
        %v2825 = vpop.f32.mrb[0].mxu0
        %v2826 = vadd.f32 0.0, %v2825
        %v2827 = vpop.f32.mrb[0].mxu0
        %2828 = vdwg.mxu0
        %v2830 = vsel %vm2306, %v889, 0
        %v2833 = vsel %vm2306, %v894, 0
        %v2836 = vsel %vm2306, %v1559, 0
        %v2839 = vsel %vm2306, %v1564, 0
        %2841 = vmatprep.subr.mxu0 0.0
        %2842 = vmatpush1.xpose.msra.mxu0 %v2836
        %2843 = vmatprep.subr.mxu0 0.0
        %2844 = vmatpush1.xpose.msra.mxu0 %v2839
        %2845 = vmatprep.subr.mxu0 0.0
        %2846 = vmatpush1.xpose.msra.mxu0 0.0
        %2847 = vmatprep.subr.mxu0 0.0
        %2848 = vmatpush1.xpose.msra.mxu0 0.0
        %2849 = vmatprep.subr.mxu0 0.0
        %2850 = vmatpush1.xpose.msra.mxu0 0.0
        %2851 = vmatprep.subr.mxu0 0.0
        %2852 = vmatpush1.xpose.msra.mxu0 0.0
        %2853 = vmatprep.subr.mxu0 0.0
        %2854 = vmatpush1.xpose.msra.mxu0 0.0
        %2855 = vmatprep.subr.mxu0 0.0
        %2856 = vmatpush1.xpose.msra.mxu0 0.0
        %2857 = vmatprep.subr.mxu0 0.0
        %2858 = vmatpush1.xpose.msra.mxu0 0.0
        %2859 = vmatprep.subr.mxu0 0.0
        %2860 = vmatpush1.xpose.msra.mxu0 0.0
        %2861 = vmatprep.subr.mxu0 0.0
        %2862 = vmatpush1.xpose.msra.mxu0 0.0
        %2863 = vmatprep.subr.mxu0 0.0
        %2864 = vmatpush1.xpose.msra.mxu0 0.0
        %2865 = vmatprep.subr.mxu0 0.0
        %2866 = vmatpush1.xpose.msra.mxu0 0.0
        %2867 = vmatprep.subr.mxu0 0.0
        %2868 = vmatpush1.xpose.msra.mxu0 0.0
        %2869 = vmatprep.subr.mxu0 0.0
        %2870 = vmatpush1.xpose.msra.mxu0 0.0
        %2871 = vmatprep.subr.mxu0 0.0
        %2872 = vmatpush1.xpose.msra.mxu0 0.0
        %2873 = vmatprep.subr.mxu0 0.0
        %2874 = vmatpush1.xpose.msra.mxu0 0.0
        %2875 = vmatprep.subr.mxu0 0.0
        %2876 = vmatpush1.xpose.msra.mxu0 0.0
        %2877 = vmatprep.subr.mxu0 0.0
        %2878 = vmatpush1.xpose.msra.mxu0 0.0
        %2879 = vmatprep.subr.mxu0 0.0
        %2880 = vmatpush1.xpose.msra.mxu0 0.0
        %2881 = vmatprep.subr.mxu0 0.0
        %2882 = vmatpush1.xpose.msra.mxu0 0.0
        %2883 = vmatprep.subr.mxu0 0.0
        %2884 = vmatpush1.xpose.msra.mxu0 0.0
        %2885 = vmatprep.subr.mxu0 0.0
        %2886 = vmatpush1.xpose.msra.mxu0 0.0
        %2887 = vmatprep.subr.mxu0 0.0
        %2888 = vmatpush1.xpose.msra.mxu0 0.0
        %2889 = vmatprep.subr.mxu0 0.0
        %2890 = vmatpush1.xpose.msra.mxu0 0.0
        %2891 = vmatprep.subr.mxu0 0.0
        %2892 = vmatpush1.xpose.msra.mxu0 0.0
        %2893 = vmatprep.subr.mxu0 0.0
        %2894 = vmatpush1.xpose.msra.mxu0 0.0
        %2895 = vmatprep.subr.mxu0 0.0
        %2896 = vmatpush1.xpose.msra.mxu0 0.0
        %2897 = vmatprep.subr.mxu0 0.0
        %2898 = vmatpush1.xpose.msra.mxu0 0.0
        %2899 = vmatprep.subr.mxu0 0.0
        %2900 = vmatpush1.xpose.msra.mxu0 0.0
        %2901 = vmatprep.subr.mxu0 0.0
        %2902 = vmatpush1.xpose.msra.mxu0 0.0
        %2903 = vmatprep.subr.mxu0 0.0
        %2904 = vmatpush1.xpose.msra.mxu0 0.0
        %2905 = vmatprep.mubr.f32.mxu0 0.0
        %2906 = vmatmul.mubr.f32.gmra.mrb[0].mxu0 %v2830
        %v2907 = vpop.f32.mrb[0].mxu0
        %v2908 = vadd.f32 0.0, %v2907
        %v2909 = vpop.f32.mrb[0].mxu0
        %2910 = vmatprep.mubr.f32.mxu0 0.0
        %2911 = vmatmul.mubr.f32.gmra.mrb[0].mxu0 %v2833
        %v2912 = vpop.f32.mrb[0].mxu0
        %v2913 = vadd.f32 0.0, %v2912
        %v2914 = vpop.f32.mrb[0].mxu0
        %2915 = vdwg.mxu0
        %v2917 = vsel %vm2306, %v964, 0
        %v2920 = vsel %vm2306, %v969, 0
        %v2923 = vsel %vm2306, %v1634, 0
        %v2926 = vsel %vm2306, %v1639, 0
        %2928 = vmatprep.subr.mxu0 0.0
        %2929 = vmatpush1.xpose.msra.mxu0 %v2923
        %2930 = vmatprep.subr.mxu0 0.0
        %2931 = vmatpush1.xpose.msra.mxu0 %v2926
        %2932 = vmatprep.subr.mxu0 0.0
        %2933 = vmatpush1.xpose.msra.mxu0 0.0
        %2934 = vmatprep.subr.mxu0 0.0
        %2935 = vmatpush1.xpose.msra.mxu0 0.0
        %2936 = vmatprep.subr.mxu0 0.0
        %2937 = vmatpush1.xpose.msra.mxu0 0.0
        %2938 = vmatprep.subr.mxu0 0.0
        %2939 = vmatpush1.xpose.msra.mxu0 0.0
        %2940 = vmatprep.subr.mxu0 0.0
        %2941 = vmatpush1.xpose.msra.mxu0 0.0
        %2942 = vmatprep.subr.mxu0 0.0
        %2943 = vmatpush1.xpose.msra.mxu0 0.0
        %2944 = vmatprep.subr.mxu0 0.0
        %2945 = vmatpush1.xpose.msra.mxu0 0.0
        %2946 = vmatprep.subr.mxu0 0.0
        %2947 = vmatpush1.xpose.msra.mxu0 0.0
        %2948 = vmatprep.subr.mxu0 0.0
        %2949 = vmatpush1.xpose.msra.mxu0 0.0
        %2950 = vmatprep.subr.mxu0 0.0
        %2951 = vmatpush1.xpose.msra.mxu0 0.0
        %2952 = vmatprep.subr.mxu0 0.0
        %2953 = vmatpush1.xpose.msra.mxu0 0.0
        %2954 = vmatprep.subr.mxu0 0.0
        %2955 = vmatpush1.xpose.msra.mxu0 0.0
        %2956 = vmatprep.subr.mxu0 0.0
        %2957 = vmatpush1.xpose.msra.mxu0 0.0
        %2958 = vmatprep.subr.mxu0 0.0
        %2959 = vmatpush1.xpose.msra.mxu0 0.0
        %2960 = vmatprep.subr.mxu0 0.0
        %2961 = vmatpush1.xpose.msra.mxu0 0.0
        %2962 = vmatprep.subr.mxu0 0.0
        %2963 = vmatpush1.xpose.msra.mxu0 0.0
        %2964 = vmatprep.subr.mxu0 0.0
        %2965 = vmatpush1.xpose.msra.mxu0 0.0
        %2966 = vmatprep.subr.mxu0 0.0
        %2967 = vmatpush1.xpose.msra.mxu0 0.0
        %2968 = vmatprep.subr.mxu0 0.0
        %2969 = vmatpush1.xpose.msra.mxu0 0.0
        %2970 = vmatprep.subr.mxu0 0.0
        %2971 = vmatpush1.xpose.msra.mxu0 0.0
        %2972 = vmatprep.subr.mxu0 0.0
        %2973 = vmatpush1.xpose.msra.mxu0 0.0
        %2974 = vmatprep.subr.mxu0 0.0
        %2975 = vmatpush1.xpose.msra.mxu0 0.0
        %2976 = vmatprep.subr.mxu0 0.0
        %2977 = vmatpush1.xpose.msra.mxu0 0.0
        %2978 = vmatprep.subr.mxu0 0.0
        %2979 = vmatpush1.xpose.msra.mxu0 0.0
        %2980 = vmatprep.subr.mxu0 0.0
        %2981 = vmatpush1.xpose.msra.mxu0 0.0
        %2982 = vmatprep.subr.mxu0 0.0
        %2983 = vmatpush1.xpose.msra.mxu0 0.0
        %2984 = vmatprep.subr.mxu0 0.0
        %2985 = vmatpush1.xpose.msra.mxu0 0.0
        %2986 = vmatprep.subr.mxu0 0.0
        %2987 = vmatpush1.xpose.msra.mxu0 0.0
        %2988 = vmatprep.subr.mxu0 0.0
        %2989 = vmatpush1.xpose.msra.mxu0 0.0
        %2990 = vmatprep.subr.mxu0 0.0
        %2991 = vmatpush1.xpose.msra.mxu0 0.0
        %2992 = vmatprep.mubr.f32.mxu0 0.0
        %2993 = vmatmul.mubr.f32.gmra.mrb[0].mxu0 %v2917
        %v2994 = vpop.f32.mrb[0].mxu0
        %v2995 = vadd.f32 0.0, %v2994
        %v2996 = vpop.f32.mrb[0].mxu0
        %2997 = vmatprep.mubr.f32.mxu0 0.0
        %2998 = vmatmul.mubr.f32.gmra.mrb[0].mxu0 %v2920
        %v2999 = vpop.f32.mrb[0].mxu0
        %v3000 = vadd.f32 0.0, %v2999
        %v3001 = vpop.f32.mrb[0].mxu0
        %3002 = vdwg.mxu0
        %vm3003 = vcmask 130048
        %v3004 = vsel %vm3003, %v2386, -inf
        %3005 = vmax.xlane.f32.xlu0 %v3004
        %v3006 = vpop.xlane.xlu0 %3005
        %v3007 = vsel %vm3003, %v2391, -inf
        %3008 = vmax.xlane.f32.xlu0 %v3007
        %v3009 = vpop.xlane.xlu0 %3008
        %v3010 = vsel %vm3003, %v2473, -inf
        %3011 = vmax.xlane.f32.xlu0 %v3010
        %v3012 = vpop.xlane.xlu0 %3011
        %v3013 = vsel %vm3003, %v2478, -inf
        %3014 = vmax.xlane.f32.xlu0 %v3013
        %v3015 = vpop.xlane.xlu0 %3014
        %v3016 = vsel %vm3003, %v2560, -inf
        %3017 = vmax.xlane.f32.xlu0 %v3016
        %v3018 = vpop.xlane.xlu0 %3017
        %v3019 = vsel %vm3003, %v2565, -inf
        %3020 = vmax.xlane.f32.xlu0 %v3019
        %v3021 = vpop.xlane.xlu0 %3020
        %v3022 = vsel %vm3003, %v2647, -inf
        %3023 = vmax.xlane.f32.xlu0 %v3022
        %v3024 = vpop.xlane.xlu0 %3023
        %v3025 = vsel %vm3003, %v2652, -inf
        %3026 = vmax.xlane.f32.xlu0 %v3025
        %v3027 = vpop.xlane.xlu0 %3026
        %v3028 = vsel %vm3003, %v2734, -inf
        %3029 = vmax.xlane.f32.xlu0 %v3028
        %v3030 = vpop.xlane.xlu0 %3029
        %v3031 = vsel %vm3003, %v2739, -inf
        %3032 = vmax.xlane.f32.xlu0 %v3031
        %v3033 = vpop.xlane.xlu0 %3032
        %v3034 = vsel %vm3003, %v2821, -inf
        %3035 = vmax.xlane.f32.xlu0 %v3034
        %v3036 = vpop.xlane.xlu0 %3035
        %v3037 = vsel %vm3003, %v2826, -inf
        %3038 = vmax.xlane.f32.xlu0 %v3037
        %v3039 = vpop.xlane.xlu0 %3038
        %v3040 = vsel %vm3003, %v2908, -inf
        %3041 = vmax.xlane.f32.xlu0 %v3040
        %v3042 = vpop.xlane.xlu0 %3041
        %v3043 = vsel %vm3003, %v2913, -inf
        %3044 = vmax.xlane.f32.xlu0 %v3043
        %v3045 = vpop.xlane.xlu0 %3044
        %v3046 = vsel %vm3003, %v2995, -inf
        %3047 = vmax.xlane.f32.xlu0 %v3046
        %v3048 = vpop.xlane.xlu0 %3047
        %v3049 = vsel %vm3003, %v3000, -inf
        %3050 = vmax.xlane.f32.xlu0 %v3049
        %v3051 = vpop.xlane.xlu0 %3050
        %v3052 = vsub.f32 %v2386, %v3006
        %v3053 = vsub.f32 %v2391, %v3009
        %v3054 = vsub.f32 %v2473, %v3012
        %v3055 = vsub.f32 %v2478, %v3015
        %v3056 = vsub.f32 %v2560, %v3018
        %v3057 = vsub.f32 %v2565, %v3021
        %v3058 = vsub.f32 %v2647, %v3024
        %v3059 = vsub.f32 %v2652, %v3027
        %v3060 = vsub.f32 %v2734, %v3030
        %v3061 = vsub.f32 %v2739, %v3033
        %v3062 = vsub.f32 %v2821, %v3036
        %v3063 = vsub.f32 %v2826, %v3039
        %v3064 = vsub.f32 %v2908, %v3042
        %v3065 = vsub.f32 %v2913, %v3045
        %v3066 = vsub.f32 %v2995, %v3048
        %v3067 = vsub.f32 %v3000, %v3051
        %v3068 = vmul.f32 %v3052, 1.442695
        %v3069 = vpow.pop %v3068
        %v3070 = vmul.f32 %v3053, 1.442695
        %v3071 = vpow.pop %v3070
        %v3072 = vmul.f32 %v3054, 1.442695
        %v3073 = vpow.pop %v3072
        %v3074 = vmul.f32 %v3055, 1.442695
        %v3075 = vpow.pop %v3074
        %v3076 = vmul.f32 %v3056, 1.442695
        %v3077 = vpow.pop %v3076
        %v3078 = vmul.f32 %v3057, 1.442695
        %v3079 = vpow.pop %v3078
        %v3080 = vmul.f32 %v3058, 1.442695
        %v3081 = vpow.pop %v3080
        %v3082 = vmul.f32 %v3059, 1.442695
        %v3083 = vpow.pop %v3082
        %v3084 = vmul.f32 %v3060, 1.442695
        %v3085 = vpow.pop %v3084
        %v3086 = vmul.f32 %v3061, 1.442695
        %v3087 = vpow.pop %v3086
        %v3088 = vmul.f32 %v3062, 1.442695
        %v3089 = vpow.pop %v3088
        %v3090 = vmul.f32 %v3063, 1.442695
        %v3091 = vpow.pop %v3090
        %v3092 = vmul.f32 %v3064, 1.442695
        %v3093 = vpow.pop %v3092
        %v3094 = vmul.f32 %v3065, 1.442695
        %v3095 = vpow.pop %v3094
        %v3096 = vmul.f32 %v3066, 1.442695
        %v3097 = vpow.pop %v3096
        %v3098 = vmul.f32 %v3067, 1.442695
        %v3099 = vpow.pop %v3098
        %v3100 = vsel %vm3003, %v3069, 0.0
        %3101 = vadd.xlane.f32.xlu0 %v3100
        %v3102 = vpop.xlane.xlu0 %3101
        %v3103 = vsel %vm3003, %v3071, 0.0
        %3104 = vadd.xlane.f32.xlu0 %v3103
        %v3105 = vpop.xlane.xlu0 %3104
        %v3106 = vsel %vm3003, %v3073, 0.0
        %3107 = vadd.xlane.f32.xlu0 %v3106
        %v3108 = vpop.xlane.xlu0 %3107
        %v3109 = vsel %vm3003, %v3075, 0.0
        %3110 = vadd.xlane.f32.xlu0 %v3109
        %v3111 = vpop.xlane.xlu0 %3110
        %v3112 = vsel %vm3003, %v3077, 0.0
        %3113 = vadd.xlane.f32.xlu0 %v3112
        %v3114 = vpop.xlane.xlu0 %3113
        %v3115 = vsel %vm3003, %v3079, 0.0
        %3116 = vadd.xlane.f32.xlu0 %v3115
        %v3117 = vpop.xlane.xlu0 %3116
        %v3118 = vsel %vm3003, %v3081, 0.0
        %3119 = vadd.xlane.f32.xlu0 %v3118
        %v3120 = vpop.xlane.xlu0 %3119
        %v3121 = vsel %vm3003, %v3083, 0.0
        %3122 = vadd.xlane.f32.xlu0 %v3121
        %v3123 = vpop.xlane.xlu0 %3122
        %v3124 = vsel %vm3003, %v3085, 0.0
        %3125 = vadd.xlane.f32.xlu0 %v3124
        %v3126 = vpop.xlane.xlu0 %3125
        %v3127 = vsel %vm3003, %v3087, 0.0
        %3128 = vadd.xlane.f32.xlu0 %v3127
        %v3129 = vpop.xlane.xlu0 %3128
        %v3130 = vsel %vm3003, %v3089, 0.0
        %3131 = vadd.xlane.f32.xlu0 %v3130
        %v3132 = vpop.xlane.xlu0 %3131
        %v3133 = vsel %vm3003, %v3091, 0.0
        %3134 = vadd.xlane.f32.xlu0 %v3133
        %v3135 = vpop.xlane.xlu0 %3134
        %v3136 = vsel %vm3003, %v3093, 0.0
        %3137 = vadd.xlane.f32.xlu0 %v3136
        %v3138 = vpop.xlane.xlu0 %3137
        %v3139 = vsel %vm3003, %v3095, 0.0
        %3140 = vadd.xlane.f32.xlu0 %v3139
        %v3141 = vpop.xlane.xlu0 %3140
        %v3142 = vsel %vm3003, %v3097, 0.0
        %3143 = vadd.xlane.f32.xlu0 %v3142
        %v3144 = vpop.xlane.xlu0 %3143
        %v3145 = vsel %vm3003, %v3099, 0.0
        %3146 = vadd.xlane.f32.xlu0 %v3145
        %v3147 = vpop.xlane.xlu0 %3146
        %v3148 = vrcp.pop %v3102
        %v3149 = vrcp.pop %v3105
        %v3150 = vrcp.pop %v3108
        %v3151 = vrcp.pop %v3111
        %v3152 = vrcp.pop %v3114
        %v3153 = vrcp.pop %v3117
        %v3154 = vrcp.pop %v3120
        %v3155 = vrcp.pop %v3123
        %v3156 = vrcp.pop %v3126
        %v3157 = vrcp.pop %v3129
        %v3158 = vrcp.pop %v3132
        %v3159 = vrcp.pop %v3135
        %v3160 = vrcp.pop %v3138
        %v3161 = vrcp.pop %v3141
        %v3162 = vrcp.pop %v3144
        %v3163 = vrcp.pop %v3147
        %v3164 = vmul.f32 %v3069, %v3148
        %v3165 = vmul.f32 %v3071, %v3149
        %v3166 = vmul.f32 %v3073, %v3150
        %v3167 = vmul.f32 %v3075, %v3151
        %v3168 = vmul.f32 %v3077, %v3152
        %v3169 = vmul.f32 %v3079, %v3153
        %v3170 = vmul.f32 %v3081, %v3154
        %v3171 = vmul.f32 %v3083, %v3155
        %v3172 = vmul.f32 %v3085, %v3156
        %v3173 = vmul.f32 %v3087, %v3157
        %v3174 = vmul.f32 %v3089, %v3158
        %v3175 = vmul.f32 %v3091, %v3159
        %v3176 = vmul.f32 %v3093, %v3160
        %v3177 = vmul.f32 %v3095, %v3161
        %v3178 = vmul.f32 %v3097, %v3162
        %v3179 = vmul.f32 %v3099, %v3163
        %v3181 = vsel %vm3003, %v3164, 0
        %v3184 = vsel %vm3003, %v3165, 0
        %3186 = vmatprep.subr.mxu0 0.0
        %3187 = vmatpush1.msra.mxu0 %v1773
        %3188 = vmatprep.subr.mxu0 0.0
        %3189 = vmatpush1.msra.mxu0 %v1778
        %3190 = vmatprep.subr.mxu0 0.0
        %3191 = vmatpush1.msra.mxu0 0.0
        %3192 = vmatprep.subr.mxu0 0.0
        %3193 = vmatpush1.msra.mxu0 0.0
        %3194 = vmatprep.subr.mxu0 0.0
        %3195 = vmatpush1.msra.mxu0 0.0
        %3196 = vmatprep.subr.mxu0 0.0
        %3197 = vmatpush1.msra.mxu0 0.0
        %3198 = vmatprep.subr.mxu0 0.0
        %3199 = vmatpush1.msra.mxu0 0.0
        %3200 = vmatprep.subr.mxu0 0.0
        %3201 = vmatpush1.msra.mxu0 0.0
        %3202 = vmatprep.subr.mxu0 0.0
        %3203 = vmatpush1.msra.mxu0 0.0
        %3204 = vmatprep.subr.mxu0 0.0
        %3205 = vmatpush1.msra.mxu0 0.0
        %3206 = vmatprep.subr.mxu0 0.0
        %3207 = vmatpush1.msra.mxu0 0.0
        %3208 = vmatprep.subr.mxu0 0.0
        %3209 = vmatpush1.msra.mxu0 0.0
        %3210 = vmatprep.subr.mxu0 0.0
        %3211 = vmatpush1.msra.mxu0 0.0
        %3212 = vmatprep.subr.mxu0 0.0
        %3213 = vmatpush1.msra.mxu0 0.0
        %3214 = vmatprep.subr.mxu0 0.0
        %3215 = vmatpush1.msra.mxu0 0.0
        %3216 = vmatprep.subr.mxu0 0.0
        %3217 = vmatpush1.msra.mxu0 0.0
        %3218 = vmatprep.subr.mxu0 0.0
        %3219 = vmatpush1.msra.mxu0 0.0
        %3220 = vmatprep.subr.mxu0 0.0
        %3221 = vmatpush1.msra.mxu0 0.0
        %3222 = vmatprep.subr.mxu0 0.0
        %3223 = vmatpush1.msra.mxu0 0.0
        %3224 = vmatprep.subr.mxu0 0.0
        %3225 = vmatpush1.msra.mxu0 0.0
        %3226 = vmatprep.subr.mxu0 0.0
        %3227 = vmatpush1.msra.mxu0 0.0
        %3228 = vmatprep.subr.mxu0 0.0
        %3229 = vmatpush1.msra.mxu0 0.0
        %3230 = vmatprep.subr.mxu0 0.0
        %3231 = vmatpush1.msra.mxu0 0.0
        %3232 = vmatprep.subr.mxu0 0.0
        %3233 = vmatpush1.msra.mxu0 0.0
        %3234 = vmatprep.subr.mxu0 0.0
        %3235 = vmatpush1.msra.mxu0 0.0
        %3236 = vmatprep.subr.mxu0 0.0
        %3237 = vmatpush1.msra.mxu0 0.0
        %3238 = vmatprep.subr.mxu0 0.0
        %3239 = vmatpush1.msra.mxu0 0.0
        %3240 = vmatprep.subr.mxu0 0.0
        %3241 = vmatpush1.msra.mxu0 0.0
        %3242 = vmatprep.subr.mxu0 0.0
        %3243 = vmatpush1.msra.mxu0 0.0
        %3244 = vmatprep.subr.mxu0 0.0
        %3245 = vmatpush1.msra.mxu0 0.0
        %3246 = vmatprep.subr.mxu0 0.0
        %3247 = vmatpush1.msra.mxu0 0.0
        %3248 = vmatprep.subr.mxu0 0.0
        %3249 = vmatpush1.msra.mxu0 0.0
        %3250 = vmatprep.mubr.f32.mxu0 0.0
        %3251 = vmatmul.mubr.f32.gmra.mrb[0].mxu0 %v3181
        %v3252 = vpop.f32.mrb[0].mxu0
        %v3253 = vadd.f32 0.0, %v3252
        %v3254 = vpop.f32.mrb[0].mxu0
        %3255 = vmatprep.mubr.f32.mxu0 0.0
        %3256 = vmatmul.mubr.f32.gmra.mrb[0].mxu0 %v3184
        %v3257 = vpop.f32.mrb[0].mxu0
        %v3258 = vadd.f32 0.0, %v3257
        %v3259 = vpop.f32.mrb[0].mxu0
        %3260 = vdwg.mxu0
        %v3262 = vsel %vm3003, %v3166, 0
        %v3265 = vsel %vm3003, %v3167, 0
        %3267 = vmatprep.subr.mxu0 0.0
        %3268 = vmatpush1.msra.mxu0 %v1848
        %3269 = vmatprep.subr.mxu0 0.0
        %3270 = vmatpush1.msra.mxu0 %v1853
        %3271 = vmatprep.subr.mxu0 0.0
        %3272 = vmatpush1.msra.mxu0 0.0
        %3273 = vmatprep.subr.mxu0 0.0
        %3274 = vmatpush1.msra.mxu0 0.0
        %3275 = vmatprep.subr.mxu0 0.0
        %3276 = vmatpush1.msra.mxu0 0.0
        %3277 = vmatprep.subr.mxu0 0.0
        %3278 = vmatpush1.msra.mxu0 0.0
        %3279 = vmatprep.subr.mxu0 0.0
        %3280 = vmatpush1.msra.mxu0 0.0
        %3281 = vmatprep.subr.mxu0 0.0
        %3282 = vmatpush1.msra.mxu0 0.0
        %3283 = vmatprep.subr.mxu0 0.0
        %3284 = vmatpush1.msra.mxu0 0.0
        %3285 = vmatprep.subr.mxu0 0.0
        %3286 = vmatpush1.msra.mxu0 0.0
        %3287 = vmatprep.subr.mxu0 0.0
        %3288 = vmatpush1.msra.mxu0 0.0
        %3289 = vmatprep.subr.mxu0 0.0
        %3290 = vmatpush1.msra.mxu0 0.0
        %3291 = vmatprep.subr.mxu0 0.0
        %3292 = vmatpush1.msra.mxu0 0.0
        %3293 = vmatprep.subr.mxu0 0.0
        %3294 = vmatpush1.msra.mxu0 0.0
        %3295 = vmatprep.subr.mxu0 0.0
        %3296 = vmatpush1.msra.mxu0 0.0
        %3297 = vmatprep.subr.mxu0 0.0
        %3298 = vmatpush1.msra.mxu0 0.0
        %3299 = vmatprep.subr.mxu0 0.0
        %3300 = vmatpush1.msra.mxu0 0.0
        %3301 = vmatprep.subr.mxu0 0.0
        %3302 = vmatpush1.msra.mxu0 0.0
        %3303 = vmatprep.subr.mxu0 0.0
        %3304 = vmatpush1.msra.mxu0 0.0
        %3305 = vmatprep.subr.mxu0 0.0
        %3306 = vmatpush1.msra.mxu0 0.0
        %3307 = vmatprep.subr.mxu0 0.0
        %3308 = vmatpush1.msra.mxu0 0.0
        %3309 = vmatprep.subr.mxu0 0.0
        %3310 = vmatpush1.msra.mxu0 0.0
        %3311 = vmatprep.subr.mxu0 0.0
        %3312 = vmatpush1.msra.mxu0 0.0
        %3313 = vmatprep.subr.mxu0 0.0
        %3314 = vmatpush1.msra.mxu0 0.0
        %3315 = vmatprep.subr.mxu0 0.0
        %3316 = vmatpush1.msra.mxu0 0.0
        %3317 = vmatprep.subr.mxu0 0.0
        %3318 = vmatpush1.msra.mxu0 0.0
        %3319 = vmatprep.subr.mxu0 0.0
        %3320 = vmatpush1.msra.mxu0 0.0
        %3321 = vmatprep.subr.mxu0 0.0
        %3322 = vmatpush1.msra.mxu0 0.0
        %3323 = vmatprep.subr.mxu0 0.0
        %3324 = vmatpush1.msra.mxu0 0.0
        %3325 = vmatprep.subr.mxu0 0.0
        %3326 = vmatpush1.msra.mxu0 0.0
        %3327 = vmatprep.subr.mxu0 0.0
        %3328 = vmatpush1.msra.mxu0 0.0
        %3329 = vmatprep.subr.mxu0 0.0
        %3330 = vmatpush1.msra.mxu0 0.0
        %3331 = vmatprep.mubr.f32.mxu0 0.0
        %3332 = vmatmul.mubr.f32.gmra.mrb[0].mxu0 %v3262
        %v3333 = vpop.f32.mrb[0].mxu0
        %v3334 = vadd.f32 0.0, %v3333
        %v3335 = vpop.f32.mrb[0].mxu0
        %3336 = vmatprep.mubr.f32.mxu0 0.0
        %3337 = vmatmul.mubr.f32.gmra.mrb[0].mxu0 %v3265
        %v3338 = vpop.f32.mrb[0].mxu0
        %v3339 = vadd.f32 0.0, %v3338
        %v3340 = vpop.f32.mrb[0].mxu0
        %3341 = vdwg.mxu0
        %v3343 = vsel %vm3003, %v3168, 0
        %v3346 = vsel %vm3003, %v3169, 0
        %3348 = vmatprep.subr.mxu0 0.0
        %3349 = vmatpush1.msra.mxu0 %v1923
        %3350 = vmatprep.subr.mxu0 0.0
        %3351 = vmatpush1.msra.mxu0 %v1928
        %3352 = vmatprep.subr.mxu0 0.0
        %3353 = vmatpush1.msra.mxu0 0.0
        %3354 = vmatprep.subr.mxu0 0.0
        %3355 = vmatpush1.msra.mxu0 0.0
        %3356 = vmatprep.subr.mxu0 0.0
        %3357 = vmatpush1.msra.mxu0 0.0
        %3358 = vmatprep.subr.mxu0 0.0
        %3359 = vmatpush1.msra.mxu0 0.0
        %3360 = vmatprep.subr.mxu0 0.0
        %3361 = vmatpush1.msra.mxu0 0.0
        %3362 = vmatprep.subr.mxu0 0.0
        %3363 = vmatpush1.msra.mxu0 0.0
        %3364 = vmatprep.subr.mxu0 0.0
        %3365 = vmatpush1.msra.mxu0 0.0
        %3366 = vmatprep.subr.mxu0 0.0
        %3367 = vmatpush1.msra.mxu0 0.0
        %3368 = vmatprep.subr.mxu0 0.0
        %3369 = vmatpush1.msra.mxu0 0.0
        %3370 = vmatprep.subr.mxu0 0.0
        %3371 = vmatpush1.msra.mxu0 0.0
        %3372 = vmatprep.subr.mxu0 0.0
        %3373 = vmatpush1.msra.mxu0 0.0
        %3374 = vmatprep.subr.mxu0 0.0
        %3375 = vmatpush1.msra.mxu0 0.0
        %3376 = vmatprep.subr.mxu0 0.0
        %3377 = vmatpush1.msra.mxu0 0.0
        %3378 = vmatprep.subr.mxu0 0.0
        %3379 = vmatpush1.msra.mxu0 0.0
        %3380 = vmatprep.subr.mxu0 0.0
        %3381 = vmatpush1.msra.mxu0 0.0
        %3382 = vmatprep.subr.mxu0 0.0
        %3383 = vmatpush1.msra.mxu0 0.0
        %3384 = vmatprep.subr.mxu0 0.0
        %3385 = vmatpush1.msra.mxu0 0.0
        %3386 = vmatprep.subr.mxu0 0.0
        %3387 = vmatpush1.msra.mxu0 0.0
        %3388 = vmatprep.subr.mxu0 0.0
        %3389 = vmatpush1.msra.mxu0 0.0
        %3390 = vmatprep.subr.mxu0 0.0
        %3391 = vmatpush1.msra.mxu0 0.0
        %3392 = vmatprep.subr.mxu0 0.0
        %3393 = vmatpush1.msra.mxu0 0.0
        %3394 = vmatprep.subr.mxu0 0.0
        %3395 = vmatpush1.msra.mxu0 0.0
        %3396 = vmatprep.subr.mxu0 0.0
        %3397 = vmatpush1.msra.mxu0 0.0
        %3398 = vmatprep.subr.mxu0 0.0
        %3399 = vmatpush1.msra.mxu0 0.0
        %3400 = vmatprep.subr.mxu0 0.0
        %3401 = vmatpush1.msra.mxu0 0.0
        %3402 = vmatprep.subr.mxu0 0.0
        %3403 = vmatpush1.msra.mxu0 0.0
        %3404 = vmatprep.subr.mxu0 0.0
        %3405 = vmatpush1.msra.mxu0 0.0
        %3406 = vmatprep.subr.mxu0 0.0
        %3407 = vmatpush1.msra.mxu0 0.0
        %3408 = vmatprep.subr.mxu0 0.0
        %3409 = vmatpush1.msra.mxu0 0.0
        %3410 = vmatprep.subr.mxu0 0.0
        %3411 = vmatpush1.msra.mxu0 0.0
        %3412 = vmatprep.mubr.f32.mxu0 0.0
        %3413 = vmatmul.mubr.f32.gmra.mrb[0].mxu0 %v3343
        %v3414 = vpop.f32.mrb[0].mxu0
        %v3415 = vadd.f32 0.0, %v3414
        %v3416 = vpop.f32.mrb[0].mxu0
        %3417 = vmatprep.mubr.f32.mxu0 0.0
        %3418 = vmatmul.mubr.f32.gmra.mrb[0].mxu0 %v3346
        %v3419 = vpop.f32.mrb[0].mxu0
        %v3420 = vadd.f32 0.0, %v3419
        %v3421 = vpop.f32.mrb[0].mxu0
        %3422 = vdwg.mxu0
        %v3424 = vsel %vm3003, %v3170, 0
        %v3427 = vsel %vm3003, %v3171, 0
        %3429 = vmatprep.subr.mxu0 0.0
        %3430 = vmatpush1.msra.mxu0 %v1998
        %3431 = vmatprep.subr.mxu0 0.0
        %3432 = vmatpush1.msra.mxu0 %v2003
        %3433 = vmatprep.subr.mxu0 0.0
        %3434 = vmatpush1.msra.mxu0 0.0
        %3435 = vmatprep.subr.mxu0 0.0
        %3436 = vmatpush1.msra.mxu0 0.0
        %3437 = vmatprep.subr.mxu0 0.0
        %3438 = vmatpush1.msra.mxu0 0.0
        %3439 = vmatprep.subr.mxu0 0.0
        %3440 = vmatpush1.msra.mxu0 0.0
        %3441 = vmatprep.subr.mxu0 0.0
        %3442 = vmatpush1.msra.mxu0 0.0
        %3443 = vmatprep.subr.mxu0 0.0
        %3444 = vmatpush1.msra.mxu0 0.0
        %3445 = vmatprep.subr.mxu0 0.0
        %3446 = vmatpush1.msra.mxu0 0.0
        %3447 = vmatprep.subr.mxu0 0.0
        %3448 = vmatpush1.msra.mxu0 0.0
        %3449 = vmatprep.subr.mxu0 0.0
        %3450 = vmatpush1.msra.mxu0 0.0
        %3451 = vmatprep.subr.mxu0 0.0
        %3452 = vmatpush1.msra.mxu0 0.0
        %3453 = vmatprep.subr.mxu0 0.0
        %3454 = vmatpush1.msra.mxu0 0.0
        %3455 = vmatprep.subr.mxu0 0.0
        %3456 = vmatpush1.msra.mxu0 0.0
        %3457 = vmatprep.subr.mxu0 0.0
        %3458 = vmatpush1.msra.mxu0 0.0
        %3459 = vmatprep.subr.mxu0 0.0
        %3460 = vmatpush1.msra.mxu0 0.0
        %3461 = vmatprep.subr.mxu0 0.0
        %3462 = vmatpush1.msra.mxu0 0.0
        %3463 = vmatprep.subr.mxu0 0.0
        %3464 = vmatpush1.msra.mxu0 0.0
        %3465 = vmatprep.subr.mxu0 0.0
        %3466 = vmatpush1.msra.mxu0 0.0
        %3467 = vmatprep.subr.mxu0 0.0
        %3468 = vmatpush1.msra.mxu0 0.0
        %3469 = vmatprep.subr.mxu0 0.0
        %3470 = vmatpush1.msra.mxu0 0.0
        %3471 = vmatprep.subr.mxu0 0.0
        %3472 = vmatpush1.msra.mxu0 0.0
        %3473 = vmatprep.subr.mxu0 0.0
        %3474 = vmatpush1.msra.mxu0 0.0
        %3475 = vmatprep.subr.mxu0 0.0
        %3476 = vmatpush1.msra.mxu0 0.0
        %3477 = vmatprep.subr.mxu0 0.0
        %3478 = vmatpush1.msra.mxu0 0.0
        %3479 = vmatprep.subr.mxu0 0.0
        %3480 = vmatpush1.msra.mxu0 0.0
        %3481 = vmatprep.subr.mxu0 0.0
        %3482 = vmatpush1.msra.mxu0 0.0
        %3483 = vmatprep.subr.mxu0 0.0
        %3484 = vmatpush1.msra.mxu0 0.0
        %3485 = vmatprep.subr.mxu0 0.0
        %3486 = vmatpush1.msra.mxu0 0.0
        %3487 = vmatprep.subr.mxu0 0.0
        %3488 = vmatpush1.msra.mxu0 0.0
        %3489 = vmatprep.subr.mxu0 0.0
        %3490 = vmatpush1.msra.mxu0 0.0
        %3491 = vmatprep.subr.mxu0 0.0
        %3492 = vmatpush1.msra.mxu0 0.0
        %3493 = vmatprep.mubr.f32.mxu0 0.0
        %3494 = vmatmul.mubr.f32.gmra.mrb[0].mxu0 %v3424
        %v3495 = vpop.f32.mrb[0].mxu0
        %v3496 = vadd.f32 0.0, %v3495
        %v3497 = vpop.f32.mrb[0].mxu0
        %3498 = vmatprep.mubr.f32.mxu0 0.0
        %3499 = vmatmul.mubr.f32.gmra.mrb[0].mxu0 %v3427
        %v3500 = vpop.f32.mrb[0].mxu0
        %v3501 = vadd.f32 0.0, %v3500
        %v3502 = vpop.f32.mrb[0].mxu0
        %3503 = vdwg.mxu0
        %v3505 = vsel %vm3003, %v3172, 0
        %v3508 = vsel %vm3003, %v3173, 0
        %3510 = vmatprep.subr.mxu0 0.0
        %3511 = vmatpush1.msra.mxu0 %v2073
        %3512 = vmatprep.subr.mxu0 0.0
        %3513 = vmatpush1.msra.mxu0 %v2078
        %3514 = vmatprep.subr.mxu0 0.0
        %3515 = vmatpush1.msra.mxu0 0.0
        %3516 = vmatprep.subr.mxu0 0.0
        %3517 = vmatpush1.msra.mxu0 0.0
        %3518 = vmatprep.subr.mxu0 0.0
        %3519 = vmatpush1.msra.mxu0 0.0
        %3520 = vmatprep.subr.mxu0 0.0
        %3521 = vmatpush1.msra.mxu0 0.0
        %3522 = vmatprep.subr.mxu0 0.0
        %3523 = vmatpush1.msra.mxu0 0.0
        %3524 = vmatprep.subr.mxu0 0.0
        %3525 = vmatpush1.msra.mxu0 0.0
        %3526 = vmatprep.subr.mxu0 0.0
        %3527 = vmatpush1.msra.mxu0 0.0
        %3528 = vmatprep.subr.mxu0 0.0
        %3529 = vmatpush1.msra.mxu0 0.0
        %3530 = vmatprep.subr.mxu0 0.0
        %3531 = vmatpush1.msra.mxu0 0.0
        %3532 = vmatprep.subr.mxu0 0.0
        %3533 = vmatpush1.msra.mxu0 0.0
        %3534 = vmatprep.subr.mxu0 0.0
        %3535 = vmatpush1.msra.mxu0 0.0
        %3536 = vmatprep.subr.mxu0 0.0
        %3537 = vmatpush1.msra.mxu0 0.0
        %3538 = vmatprep.subr.mxu0 0.0
        %3539 = vmatpush1.msra.mxu0 0.0
        %3540 = vmatprep.subr.mxu0 0.0
        %3541 = vmatpush1.msra.mxu0 0.0
        %3542 = vmatprep.subr.mxu0 0.0
        %3543 = vmatpush1.msra.mxu0 0.0
        %3544 = vmatprep.subr.mxu0 0.0
        %3545 = vmatpush1.msra.mxu0 0.0
        %3546 = vmatprep.subr.mxu0 0.0
        %3547 = vmatpush1.msra.mxu0 0.0
        %3548 = vmatprep.subr.mxu0 0.0
        %3549 = vmatpush1.msra.mxu0 0.0
        %3550 = vmatprep.subr.mxu0 0.0
        %3551 = vmatpush1.msra.mxu0 0.0
        %3552 = vmatprep.subr.mxu0 0.0
        %3553 = vmatpush1.msra.mxu0 0.0
        %3554 = vmatprep.subr.mxu0 0.0
        %3555 = vmatpush1.msra.mxu0 0.0
        %3556 = vmatprep.subr.mxu0 0.0
        %3557 = vmatpush1.msra.mxu0 0.0
        %3558 = vmatprep.subr.mxu0 0.0
        %3559 = vmatpush1.msra.mxu0 0.0
        %3560 = vmatprep.subr.mxu0 0.0
        %3561 = vmatpush1.msra.mxu0 0.0
        %3562 = vmatprep.subr.mxu0 0.0
        %3563 = vmatpush1.msra.mxu0 0.0
        %3564 = vmatprep.subr.mxu0 0.0
        %3565 = vmatpush1.msra.mxu0 0.0
        %3566 = vmatprep.subr.mxu0 0.0
        %3567 = vmatpush1.msra.mxu0 0.0
        %3568 = vmatprep.subr.mxu0 0.0
        %3569 = vmatpush1.msra.mxu0 0.0
        %3570 = vmatprep.subr.mxu0 0.0
        %3571 = vmatpush1.msra.mxu0 0.0
        %3572 = vmatprep.subr.mxu0 0.0
        %3573 = vmatpush1.msra.mxu0 0.0
        %3574 = vmatprep.mubr.f32.mxu0 0.0
        %3575 = vmatmul.mubr.f32.gmra.mrb[0].mxu0 %v3505
        %v3576 = vpop.f32.mrb[0].mxu0
        %v3577 = vadd.f32 0.0, %v3576
        %v3578 = vpop.f32.mrb[0].mxu0
        %3579 = vmatprep.mubr.f32.mxu0 0.0
        %3580 = vmatmul.mubr.f32.gmra.mrb[0].mxu0 %v3508
        %v3581 = vpop.f32.mrb[0].mxu0
        %v3582 = vadd.f32 0.0, %v3581
        %v3583 = vpop.f32.mrb[0].mxu0
        %3584 = vdwg.mxu0
        %v3586 = vsel %vm3003, %v3174, 0
        %v3589 = vsel %vm3003, %v3175, 0
        %3591 = vmatprep.subr.mxu0 0.0
        %3592 = vmatpush1.msra.mxu0 %v2148
        %3593 = vmatprep.subr.mxu0 0.0
        %3594 = vmatpush1.msra.mxu0 %v2153
        %3595 = vmatprep.subr.mxu0 0.0
        %3596 = vmatpush1.msra.mxu0 0.0
        %3597 = vmatprep.subr.mxu0 0.0
        %3598 = vmatpush1.msra.mxu0 0.0
        %3599 = vmatprep.subr.mxu0 0.0
        %3600 = vmatpush1.msra.mxu0 0.0
        %3601 = vmatprep.subr.mxu0 0.0
        %3602 = vmatpush1.msra.mxu0 0.0
        %3603 = vmatprep.subr.mxu0 0.0
        %3604 = vmatpush1.msra.mxu0 0.0
        %3605 = vmatprep.subr.mxu0 0.0
        %3606 = vmatpush1.msra.mxu0 0.0
        %3607 = vmatprep.subr.mxu0 0.0
        %3608 = vmatpush1.msra.mxu0 0.0
        %3609 = vmatprep.subr.mxu0 0.0
        %3610 = vmatpush1.msra.mxu0 0.0
        %3611 = vmatprep.subr.mxu0 0.0
        %3612 = vmatpush1.msra.mxu0 0.0
        %3613 = vmatprep.subr.mxu0 0.0
        %3614 = vmatpush1.msra.mxu0 0.0
        %3615 = vmatprep.subr.mxu0 0.0
        %3616 = vmatpush1.msra.mxu0 0.0
        %3617 = vmatprep.subr.mxu0 0.0
        %3618 = vmatpush1.msra.mxu0 0.0
        %3619 = vmatprep.subr.mxu0 0.0
        %3620 = vmatpush1.msra.mxu0 0.0
        %3621 = vmatprep.subr.mxu0 0.0
        %3622 = vmatpush1.msra.mxu0 0.0
        %3623 = vmatprep.subr.mxu0 0.0
        %3624 = vmatpush1.msra.mxu0 0.0
        %3625 = vmatprep.subr.mxu0 0.0
        %3626 = vmatpush1.msra.mxu0 0.0
        %3627 = vmatprep.subr.mxu0 0.0
        %3628 = vmatpush1.msra.mxu0 0.0
        %3629 = vmatprep.subr.mxu0 0.0
        %3630 = vmatpush1.msra.mxu0 0.0
        %3631 = vmatprep.subr.mxu0 0.0
        %3632 = vmatpush1.msra.mxu0 0.0
        %3633 = vmatprep.subr.mxu0 0.0
        %3634 = vmatpush1.msra.mxu0 0.0
        %3635 = vmatprep.subr.mxu0 0.0
        %3636 = vmatpush1.msra.mxu0 0.0
        %3637 = vmatprep.subr.mxu0 0.0
        %3638 = vmatpush1.msra.mxu0 0.0
        %3639 = vmatprep.subr.mxu0 0.0
        %3640 = vmatpush1.msra.mxu0 0.0
        %3641 = vmatprep.subr.mxu0 0.0
        %3642 = vmatpush1.msra.mxu0 0.0
        %3643 = vmatprep.subr.mxu0 0.0
        %3644 = vmatpush1.msra.mxu0 0.0
        %3645 = vmatprep.subr.mxu0 0.0
        %3646 = vmatpush1.msra.mxu0 0.0
        %3647 = vmatprep.subr.mxu0 0.0
        %3648 = vmatpush1.msra.mxu0 0.0
        %3649 = vmatprep.subr.mxu0 0.0
        %3650 = vmatpush1.msra.mxu0 0.0
        %3651 = vmatprep.subr.mxu0 0.0
        %3652 = vmatpush1.msra.mxu0 0.0
        %3653 = vmatprep.subr.mxu0 0.0
        %3654 = vmatpush1.msra.mxu0 0.0
        %3655 = vmatprep.mubr.f32.mxu0 0.0
        %3656 = vmatmul.mubr.f32.gmra.mrb[0].mxu0 %v3586
        %v3657 = vpop.f32.mrb[0].mxu0
        %v3658 = vadd.f32 0.0, %v3657
        %v3659 = vpop.f32.mrb[0].mxu0
        %3660 = vmatprep.mubr.f32.mxu0 0.0
        %3661 = vmatmul.mubr.f32.gmra.mrb[0].mxu0 %v3589
        %v3662 = vpop.f32.mrb[0].mxu0
        %v3663 = vadd.f32 0.0, %v3662
        %v3664 = vpop.f32.mrb[0].mxu0
        %3665 = vdwg.mxu0
        %v3667 = vsel %vm3003, %v3176, 0
        %v3670 = vsel %vm3003, %v3177, 0
        %3672 = vmatprep.subr.mxu0 0.0
        %3673 = vmatpush1.msra.mxu0 %v2223
        %3674 = vmatprep.subr.mxu0 0.0
        %3675 = vmatpush1.msra.mxu0 %v2228
        %3676 = vmatprep.subr.mxu0 0.0
        %3677 = vmatpush1.msra.mxu0 0.0
        %3678 = vmatprep.subr.mxu0 0.0
        %3679 = vmatpush1.msra.mxu0 0.0
        %3680 = vmatprep.subr.mxu0 0.0
        %3681 = vmatpush1.msra.mxu0 0.0
        %3682 = vmatprep.subr.mxu0 0.0
        %3683 = vmatpush1.msra.mxu0 0.0
        %3684 = vmatprep.subr.mxu0 0.0
        %3685 = vmatpush1.msra.mxu0 0.0
        %3686 = vmatprep.subr.mxu0 0.0
        %3687 = vmatpush1.msra.mxu0 0.0
        %3688 = vmatprep.subr.mxu0 0.0
        %3689 = vmatpush1.msra.mxu0 0.0
        %3690 = vmatprep.subr.mxu0 0.0
        %3691 = vmatpush1.msra.mxu0 0.0
        %3692 = vmatprep.subr.mxu0 0.0
        %3693 = vmatpush1.msra.mxu0 0.0
        %3694 = vmatprep.subr.mxu0 0.0
        %3695 = vmatpush1.msra.mxu0 0.0
        %3696 = vmatprep.subr.mxu0 0.0
        %3697 = vmatpush1.msra.mxu0 0.0
        %3698 = vmatprep.subr.mxu0 0.0
        %3699 = vmatpush1.msra.mxu0 0.0
        %3700 = vmatprep.subr.mxu0 0.0
        %3701 = vmatpush1.msra.mxu0 0.0
        %3702 = vmatprep.subr.mxu0 0.0
        %3703 = vmatpush1.msra.mxu0 0.0
        %3704 = vmatprep.subr.mxu0 0.0
        %3705 = vmatpush1.msra.mxu0 0.0
        %3706 = vmatprep.subr.mxu0 0.0
        %3707 = vmatpush1.msra.mxu0 0.0
        %3708 = vmatprep.subr.mxu0 0.0
        %3709 = vmatpush1.msra.mxu0 0.0
        %3710 = vmatprep.subr.mxu0 0.0
        %3711 = vmatpush1.msra.mxu0 0.0
        %3712 = vmatprep.subr.mxu0 0.0
        %3713 = vmatpush1.msra.mxu0 0.0
        %3714 = vmatprep.subr.mxu0 0.0
        %3715 = vmatpush1.msra.mxu0 0.0
        %3716 = vmatprep.subr.mxu0 0.0
        %3717 = vmatpush1.msra.mxu0 0.0
        %3718 = vmatprep.subr.mxu0 0.0
        %3719 = vmatpush1.msra.mxu0 0.0
        %3720 = vmatprep.subr.mxu0 0.0
        %3721 = vmatpush1.msra.mxu0 0.0
        %3722 = vmatprep.subr.mxu0 0.0
        %3723 = vmatpush1.msra.mxu0 0.0
        %3724 = vmatprep.subr.mxu0 0.0
        %3725 = vmatpush1.msra.mxu0 0.0
        %3726 = vmatprep.subr.mxu0 0.0
        %3727 = vmatpush1.msra.mxu0 0.0
        %3728 = vmatprep.subr.mxu0 0.0
        %3729 = vmatpush1.msra.mxu0 0.0
        %3730 = vmatprep.subr.mxu0 0.0
        %3731 = vmatpush1.msra.mxu0 0.0
        %3732 = vmatprep.subr.mxu0 0.0
        %3733 = vmatpush1.msra.mxu0 0.0
        %3734 = vmatprep.subr.mxu0 0.0
        %3735 = vmatpush1.msra.mxu0 0.0
        %3736 = vmatprep.mubr.f32.mxu0 0.0
        %3737 = vmatmul.mubr.f32.gmra.mrb[0].mxu0 %v3667
        %v3738 = vpop.f32.mrb[0].mxu0
        %v3739 = vadd.f32 0.0, %v3738
        %v3740 = vpop.f32.mrb[0].mxu0
        %3741 = vmatprep.mubr.f32.mxu0 0.0
        %3742 = vmatmul.mubr.f32.gmra.mrb[0].mxu0 %v3670
        %v3743 = vpop.f32.mrb[0].mxu0
        %v3744 = vadd.f32 0.0, %v3743
        %v3745 = vpop.f32.mrb[0].mxu0
        %3746 = vdwg.mxu0
        %v3748 = vsel %vm3003, %v3178, 0
        %v3751 = vsel %vm3003, %v3179, 0
        %3753 = vmatprep.subr.mxu0 0.0
        %3754 = vmatpush1.msra.mxu0 %v2298
        %3755 = vmatprep.subr.mxu0 0.0
        %3756 = vmatpush1.msra.mxu0 %v2303
        %3757 = vmatprep.subr.mxu0 0.0
        %3758 = vmatpush1.msra.mxu0 0.0
        %3759 = vmatprep.subr.mxu0 0.0
        %3760 = vmatpush1.msra.mxu0 0.0
        %3761 = vmatprep.subr.mxu0 0.0
        %3762 = vmatpush1.msra.mxu0 0.0
        %3763 = vmatprep.subr.mxu0 0.0
        %3764 = vmatpush1.msra.mxu0 0.0
        %3765 = vmatprep.subr.mxu0 0.0
        %3766 = vmatpush1.msra.mxu0 0.0
        %3767 = vmatprep.subr.mxu0 0.0
        %3768 = vmatpush1.msra.mxu0 0.0
        %3769 = vmatprep.subr.mxu0 0.0
        %3770 = vmatpush1.msra.mxu0 0.0
        %3771 = vmatprep.subr.mxu0 0.0
        %3772 = vmatpush1.msra.mxu0 0.0
        %3773 = vmatprep.subr.mxu0 0.0
        %3774 = vmatpush1.msra.mxu0 0.0
        %3775 = vmatprep.subr.mxu0 0.0
        %3776 = vmatpush1.msra.mxu0 0.0
        %3777 = vmatprep.subr.mxu0 0.0
        %3778 = vmatpush1.msra.mxu0 0.0
        %3779 = vmatprep.subr.mxu0 0.0
        %3780 = vmatpush1.msra.mxu0 0.0
        %3781 = vmatprep.subr.mxu0 0.0
        %3782 = vmatpush1.msra.mxu0 0.0
        %3783 = vmatprep.subr.mxu0 0.0
        %3784 = vmatpush1.msra.mxu0 0.0
        %3785 = vmatprep.subr.mxu0 0.0
        %3786 = vmatpush1.msra.mxu0 0.0
        %3787 = vmatprep.subr.mxu0 0.0
        %3788 = vmatpush1.msra.mxu0 0.0
        %3789 = vmatprep.subr.mxu0 0.0
        %3790 = vmatpush1.msra.mxu0 0.0
        %3791 = vmatprep.subr.mxu0 0.0
        %3792 = vmatpush1.msra.mxu0 0.0
        %3793 = vmatprep.subr.mxu0 0.0
        %3794 = vmatpush1.msra.mxu0 0.0
        %3795 = vmatprep.subr.mxu0 0.0
        %3796 = vmatpush1.msra.mxu0 0.0
        %3797 = vmatprep.subr.mxu0 0.0
        %3798 = vmatpush1.msra.mxu0 0.0
        %3799 = vmatprep.subr.mxu0 0.0
        %3800 = vmatpush1.msra.mxu0 0.0
        %3801 = vmatprep.subr.mxu0 0.0
        %3802 = vmatpush1.msra.mxu0 0.0
        %3803 = vmatprep.subr.mxu0 0.0
        %3804 = vmatpush1.msra.mxu0 0.0
        %3805 = vmatprep.subr.mxu0 0.0
        %3806 = vmatpush1.msra.mxu0 0.0
        %3807 = vmatprep.subr.mxu0 0.0
        %3808 = vmatpush1.msra.mxu0 0.0
        %3809 = vmatprep.subr.mxu0 0.0
        %3810 = vmatpush1.msra.mxu0 0.0
        %3811 = vmatprep.subr.mxu0 0.0
        %3812 = vmatpush1.msra.mxu0 0.0
        %3813 = vmatprep.subr.mxu0 0.0
        %3814 = vmatpush1.msra.mxu0 0.0
        %3815 = vmatprep.subr.mxu0 0.0
        %3816 = vmatpush1.msra.mxu0 0.0
        %3817 = vmatprep.mubr.f32.mxu0 0.0
        %3818 = vmatmul.mubr.f32.gmra.mrb[0].mxu0 %v3748
        %v3819 = vpop.f32.mrb[0].mxu0
        %v3820 = vadd.f32 0.0, %v3819
        %v3821 = vpop.f32.mrb[0].mxu0
        %3822 = vmatprep.mubr.f32.mxu0 0.0
        %3823 = vmatmul.mubr.f32.gmra.mrb[0].mxu0 %v3751
        %v3824 = vpop.f32.mrb[0].mxu0
        %v3825 = vadd.f32 0.0, %v3824
        %v3826 = vpop.f32.mrb[0].mxu0
        %3827 = vdwg.mxu0
        %v3828 = vld [vmem:[%s5] sm:$0xff]
        %v3829 = vld [vmem:[%s5 + $0x8] sm:$0xff]
        %v3830 = vld [vmem:[%s5 + $0x10] sm:$0xff]
        %v3831 = vld [vmem:[%s5 + $0x18] sm:$0xff]
        %v3832 = vld [vmem:[%s5 + $0x20] sm:$0xff]
        %v3833 = vld [vmem:[%s5 + $0x28] sm:$0xff]
        %v3834 = vld [vmem:[%s5 + $0x30] sm:$0xff]
        %v3835 = vld [vmem:[%s5 + $0x38] sm:$0xff]
        %v3837 = vsel %vm2306, %v3253, 0
        %v3840 = vsel %vm2306, %v3258, 0
        %3842 = vmatprep.subr.mxu0 0.0
        %3843 = vmatpush1.msra.mxu0 %v3828
        %3844 = vmatprep.subr.mxu0 0.0
        %3845 = vmatpush1.msra.mxu0 0.0
        %3846 = vmatprep.subr.mxu0 0.0
        %3847 = vmatpush1.msra.mxu0 0.0
        %3848 = vmatprep.subr.mxu0 0.0
        %3849 = vmatpush1.msra.mxu0 0.0
        %3850 = vmatprep.subr.mxu0 0.0
        %3851 = vmatpush1.msra.mxu0 0.0
        %3852 = vmatprep.subr.mxu0 0.0
        %3853 = vmatpush1.msra.mxu0 0.0
        %3854 = vmatprep.subr.mxu0 0.0
        %3855 = vmatpush1.msra.mxu0 0.0
        %3856 = vmatprep.subr.mxu0 0.0
        %3857 = vmatpush1.msra.mxu0 0.0
        %3858 = vmatprep.subr.mxu0 0.0
        %3859 = vmatpush1.msra.mxu0 0.0
        %3860 = vmatprep.subr.mxu0 0.0
        %3861 = vmatpush1.msra.mxu0 0.0
        %3862 = vmatprep.subr.mxu0 0.0
        %3863 = vmatpush1.msra.mxu0 0.0
        %3864 = vmatprep.subr.mxu0 0.0
        %3865 = vmatpush1.msra.mxu0 0.0
        %3866 = vmatprep.subr.mxu0 0.0
        %3867 = vmatpush1.msra.mxu0 0.0
        %3868 = vmatprep.subr.mxu0 0.0
        %3869 = vmatpush1.msra.mxu0 0.0
        %3870 = vmatprep.subr.mxu0 0.0
        %3871 = vmatpush1.msra.mxu0 0.0
        %3872 = vmatprep.subr.mxu0 0.0
        %3873 = vmatpush1.msra.mxu0 0.0
        %3874 = vmatprep.subr.mxu0 0.0
        %3875 = vmatpush1.msra.mxu0 0.0
        %3876 = vmatprep.subr.mxu0 0.0
        %3877 = vmatpush1.msra.mxu0 0.0
        %3878 = vmatprep.subr.mxu0 0.0
        %3879 = vmatpush1.msra.mxu0 0.0
        %3880 = vmatprep.subr.mxu0 0.0
        %3881 = vmatpush1.msra.mxu0 0.0
        %3882 = vmatprep.subr.mxu0 0.0
        %3883 = vmatpush1.msra.mxu0 0.0
        %3884 = vmatprep.subr.mxu0 0.0
        %3885 = vmatpush1.msra.mxu0 0.0
        %3886 = vmatprep.subr.mxu0 0.0
        %3887 = vmatpush1.msra.mxu0 0.0
        %3888 = vmatprep.subr.mxu0 0.0
        %3889 = vmatpush1.msra.mxu0 0.0
        %3890 = vmatprep.subr.mxu0 0.0
        %3891 = vmatpush1.msra.mxu0 0.0
        %3892 = vmatprep.subr.mxu0 0.0
        %3893 = vmatpush1.msra.mxu0 0.0
        %3894 = vmatprep.subr.mxu0 0.0
        %3895 = vmatpush1.msra.mxu0 0.0
        %3896 = vmatprep.subr.mxu0 0.0
        %3897 = vmatpush1.msra.mxu0 0.0
        %3898 = vmatprep.subr.mxu0 0.0
        %3899 = vmatpush1.msra.mxu0 0.0
        %3900 = vmatprep.subr.mxu0 0.0
        %3901 = vmatpush1.msra.mxu0 0.0
        %3902 = vmatprep.subr.mxu0 0.0
        %3903 = vmatpush1.msra.mxu0 0.0
        %3904 = vmatprep.subr.mxu0 0.0
        %3905 = vmatpush1.msra.mxu0 0.0
        %3906 = vmatprep.mubr.f32.mxu0 0.0
        %3907 = vmatmul.mubr.f32.gmra.mrb[0].mxu0 %v3837
        %v3908 = vpop.f32.mrb[0].mxu0
        %v3909 = vadd.f32 0.0, %v3908
        %v3910 = vpop.f32.mrb[0].mxu0
        %3911 = vmatprep.mubr.f32.mxu0 0.0
        %3912 = vmatmul.mubr.f32.gmra.mrb[0].mxu0 %v3840
        %v3913 = vpop.f32.mrb[0].mxu0
        %v3914 = vadd.f32 0.0, %v3913
        %v3915 = vpop.f32.mrb[0].mxu0
        %3916 = vdwg.mxu0
        %v3918 = vsel %vm2306, %v3334, 0
        %v3921 = vsel %vm2306, %v3339, 0
        %3923 = vmatprep.subr.mxu0 0.0
        %3924 = vmatpush1.msra.mxu0 %v3829
        %3925 = vmatprep.subr.mxu0 0.0
        %3926 = vmatpush1.msra.mxu0 0.0
        %3927 = vmatprep.subr.mxu0 0.0
        %3928 = vmatpush1.msra.mxu0 0.0
        %3929 = vmatprep.subr.mxu0 0.0
        %3930 = vmatpush1.msra.mxu0 0.0
        %3931 = vmatprep.subr.mxu0 0.0
        %3932 = vmatpush1.msra.mxu0 0.0
        %3933 = vmatprep.subr.mxu0 0.0
        %3934 = vmatpush1.msra.mxu0 0.0
        %3935 = vmatprep.subr.mxu0 0.0
        %3936 = vmatpush1.msra.mxu0 0.0
        %3937 = vmatprep.subr.mxu0 0.0
        %3938 = vmatpush1.msra.mxu0 0.0
        %3939 = vmatprep.subr.mxu0 0.0
        %3940 = vmatpush1.msra.mxu0 0.0
        %3941 = vmatprep.subr.mxu0 0.0
        %3942 = vmatpush1.msra.mxu0 0.0
        %3943 = vmatprep.subr.mxu0 0.0
        %3944 = vmatpush1.msra.mxu0 0.0
        %3945 = vmatprep.subr.mxu0 0.0
        %3946 = vmatpush1.msra.mxu0 0.0
        %3947 = vmatprep.subr.mxu0 0.0
        %3948 = vmatpush1.msra.mxu0 0.0
        %3949 = vmatprep.subr.mxu0 0.0
        %3950 = vmatpush1.msra.mxu0 0.0
        %3951 = vmatprep.subr.mxu0 0.0
        %3952 = vmatpush1.msra.mxu0 0.0
        %3953 = vmatprep.subr.mxu0 0.0
        %3954 = vmatpush1.msra.mxu0 0.0
        %3955 = vmatprep.subr.mxu0 0.0
        %3956 = vmatpush1.msra.mxu0 0.0
        %3957 = vmatprep.subr.mxu0 0.0
        %3958 = vmatpush1.msra.mxu0 0.0
        %3959 = vmatprep.subr.mxu0 0.0
        %3960 = vmatpush1.msra.mxu0 0.0
        %3961 = vmatprep.subr.mxu0 0.0
        %3962 = vmatpush1.msra.mxu0 0.0
        %3963 = vmatprep.subr.mxu0 0.0
        %3964 = vmatpush1.msra.mxu0 0.0
        %3965 = vmatprep.subr.mxu0 0.0
        %3966 = vmatpush1.msra.mxu0 0.0
        %3967 = vmatprep.subr.mxu0 0.0
        %3968 = vmatpush1.msra.mxu0 0.0
        %3969 = vmatprep.subr.mxu0 0.0
        %3970 = vmatpush1.msra.mxu0 0.0
        %3971 = vmatprep.subr.mxu0 0.0
        %3972 = vmatpush1.msra.mxu0 0.0
        %3973 = vmatprep.subr.mxu0 0.0
        %3974 = vmatpush1.msra.mxu0 0.0
        %3975 = vmatprep.subr.mxu0 0.0
        %3976 = vmatpush1.msra.mxu0 0.0
        %3977 = vmatprep.subr.mxu0 0.0
        %3978 = vmatpush1.msra.mxu0 0.0
        %3979 = vmatprep.subr.mxu0 0.0
        %3980 = vmatpush1.msra.mxu0 0.0
        %3981 = vmatprep.subr.mxu0 0.0
        %3982 = vmatpush1.msra.mxu0 0.0
        %3983 = vmatprep.subr.mxu0 0.0
        %3984 = vmatpush1.msra.mxu0 0.0
        %3985 = vmatprep.subr.mxu0 0.0
        %3986 = vmatpush1.msra.mxu0 0.0
        %3987 = vmatprep.mubr.f32.mxu0 0.0
        %3988 = vmatmul.mubr.f32.gmra.mrb[0].mxu0 %v3918
        %v3989 = vpop.f32.mrb[0].mxu0
        %v3990 = vadd.f32 0.0, %v3989
        %v3991 = vpop.f32.mrb[0].mxu0
        %3992 = vmatprep.mubr.f32.mxu0 0.0
        %3993 = vmatmul.mubr.f32.gmra.mrb[0].mxu0 %v3921
        %v3994 = vpop.f32.mrb[0].mxu0
        %v3995 = vadd.f32 0.0, %v3994
        %v3996 = vpop.f32.mrb[0].mxu0
        %3997 = vdwg.mxu0
        %v3999 = vsel %vm2306, %v3415, 0
        %v4002 = vsel %vm2306, %v3420, 0
        %4004 = vmatprep.subr.mxu0 0.0
        %4005 = vmatpush1.msra.mxu0 %v3830
        %4006 = vmatprep.subr.mxu0 0.0
        %4007 = vmatpush1.msra.mxu0 0.0
        %4008 = vmatprep.subr.mxu0 0.0
        %4009 = vmatpush1.msra.mxu0 0.0
        %4010 = vmatprep.subr.mxu0 0.0
        %4011 = vmatpush1.msra.mxu0 0.0
        %4012 = vmatprep.subr.mxu0 0.0
        %4013 = vmatpush1.msra.mxu0 0.0
        %4014 = vmatprep.subr.mxu0 0.0
        %4015 = vmatpush1.msra.mxu0 0.0
        %4016 = vmatprep.subr.mxu0 0.0
        %4017 = vmatpush1.msra.mxu0 0.0
        %4018 = vmatprep.subr.mxu0 0.0
        %4019 = vmatpush1.msra.mxu0 0.0
        %4020 = vmatprep.subr.mxu0 0.0
        %4021 = vmatpush1.msra.mxu0 0.0
        %4022 = vmatprep.subr.mxu0 0.0
        %4023 = vmatpush1.msra.mxu0 0.0
        %4024 = vmatprep.subr.mxu0 0.0
        %4025 = vmatpush1.msra.mxu0 0.0
        %4026 = vmatprep.subr.mxu0 0.0
        %4027 = vmatpush1.msra.mxu0 0.0
        %4028 = vmatprep.subr.mxu0 0.0
        %4029 = vmatpush1.msra.mxu0 0.0
        %4030 = vmatprep.subr.mxu0 0.0
        %4031 = vmatpush1.msra.mxu0 0.0
        %4032 = vmatprep.subr.mxu0 0.0
        %4033 = vmatpush1.msra.mxu0 0.0
        %4034 = vmatprep.subr.mxu0 0.0
        %4035 = vmatpush1.msra.mxu0 0.0
        %4036 = vmatprep.subr.mxu0 0.0
        %4037 = vmatpush1.msra.mxu0 0.0
        %4038 = vmatprep.subr.mxu0 0.0
        %4039 = vmatpush1.msra.mxu0 0.0
        %4040 = vmatprep.subr.mxu0 0.0
        %4041 = vmatpush1.msra.mxu0 0.0
        %4042 = vmatprep.subr.mxu0 0.0
        %4043 = vmatpush1.msra.mxu0 0.0
        %4044 = vmatprep.subr.mxu0 0.0
        %4045 = vmatpush1.msra.mxu0 0.0
        %4046 = vmatprep.subr.mxu0 0.0
        %4047 = vmatpush1.msra.mxu0 0.0
        %4048 = vmatprep.subr.mxu0 0.0
        %4049 = vmatpush1.msra.mxu0 0.0
        %4050 = vmatprep.subr.mxu0 0.0
        %4051 = vmatpush1.msra.mxu0 0.0
        %4052 = vmatprep.subr.mxu0 0.0
        %4053 = vmatpush1.msra.mxu0 0.0
        %4054 = vmatprep.subr.mxu0 0.0
        %4055 = vmatpush1.msra.mxu0 0.0
        %4056 = vmatprep.subr.mxu0 0.0
        %4057 = vmatpush1.msra.mxu0 0.0
        %4058 = vmatprep.subr.mxu0 0.0
        %4059 = vmatpush1.msra.mxu0 0.0
        %4060 = vmatprep.subr.mxu0 0.0
        %4061 = vmatpush1.msra.mxu0 0.0
        %4062 = vmatprep.subr.mxu0 0.0
        %4063 = vmatpush1.msra.mxu0 0.0
        %4064 = vmatprep.subr.mxu0 0.0
        %4065 = vmatpush1.msra.mxu0 0.0
        %4066 = vmatprep.subr.mxu0 0.0
        %4067 = vmatpush1.msra.mxu0 0.0
        %4068 = vmatprep.mubr.f32.mxu0 0.0
        %4069 = vmatmul.mubr.f32.gmra.mrb[0].mxu0 %v3999
        %v4070 = vpop.f32.mrb[0].mxu0
        %v4071 = vadd.f32 0.0, %v4070
        %v4072 = vpop.f32.mrb[0].mxu0
        %4073 = vmatprep.mubr.f32.mxu0 0.0
        %4074 = vmatmul.mubr.f32.gmra.mrb[0].mxu0 %v4002
        %v4075 = vpop.f32.mrb[0].mxu0
        %v4076 = vadd.f32 0.0, %v4075
        %v4077 = vpop.f32.mrb[0].mxu0
        %4078 = vdwg.mxu0
        %v4080 = vsel %vm2306, %v3496, 0
        %v4083 = vsel %vm2306, %v3501, 0
        %4085 = vmatprep.subr.mxu0 0.0
        %4086 = vmatpush1.msra.mxu0 %v3831
        %4087 = vmatprep.subr.mxu0 0.0
        %4088 = vmatpush1.msra.mxu0 0.0
        %4089 = vmatprep.subr.mxu0 0.0
        %4090 = vmatpush1.msra.mxu0 0.0
        %4091 = vmatprep.subr.mxu0 0.0
        %4092 = vmatpush1.msra.mxu0 0.0
        %4093 = vmatprep.subr.mxu0 0.0
        %4094 = vmatpush1.msra.mxu0 0.0
        %4095 = vmatprep.subr.mxu0 0.0
        %4096 = vmatpush1.msra.mxu0 0.0
        %4097 = vmatprep.subr.mxu0 0.0
        %4098 = vmatpush1.msra.mxu0 0.0
        %4099 = vmatprep.subr.mxu0 0.0
        %4100 = vmatpush1.msra.mxu0 0.0
        %4101 = vmatprep.subr.mxu0 0.0
        %4102 = vmatpush1.msra.mxu0 0.0
        %4103 = vmatprep.subr.mxu0 0.0
        %4104 = vmatpush1.msra.mxu0 0.0
        %4105 = vmatprep.subr.mxu0 0.0
        %4106 = vmatpush1.msra.mxu0 0.0
        %4107 = vmatprep.subr.mxu0 0.0
        %4108 = vmatpush1.msra.mxu0 0.0
        %4109 = vmatprep.subr.mxu0 0.0
        %4110 = vmatpush1.msra.mxu0 0.0
        %4111 = vmatprep.subr.mxu0 0.0
        %4112 = vmatpush1.msra.mxu0 0.0
        %4113 = vmatprep.subr.mxu0 0.0
        %4114 = vmatpush1.msra.mxu0 0.0
        %4115 = vmatprep.subr.mxu0 0.0
        %4116 = vmatpush1.msra.mxu0 0.0
        %4117 = vmatprep.subr.mxu0 0.0
        %4118 = vmatpush1.msra.mxu0 0.0
        %4119 = vmatprep.subr.mxu0 0.0
        %4120 = vmatpush1.msra.mxu0 0.0
        %4121 = vmatprep.subr.mxu0 0.0
        %4122 = vmatpush1.msra.mxu0 0.0
        %4123 = vmatprep.subr.mxu0 0.0
        %4124 = vmatpush1.msra.mxu0 0.0
        %4125 = vmatprep.subr.mxu0 0.0
        %4126 = vmatpush1.msra.mxu0 0.0
        %4127 = vmatprep.subr.mxu0 0.0
        %4128 = vmatpush1.msra.mxu0 0.0
        %4129 = vmatprep.subr.mxu0 0.0
        %4130 = vmatpush1.msra.mxu0 0.0
        %4131 = vmatprep.subr.mxu0 0.0
        %4132 = vmatpush1.msra.mxu0 0.0
        %4133 = vmatprep.subr.mxu0 0.0
        %4134 = vmatpush1.msra.mxu0 0.0
        %4135 = vmatprep.subr.mxu0 0.0
        %4136 = vmatpush1.msra.mxu0 0.0
        %4137 = vmatprep.subr.mxu0 0.0
        %4138 = vmatpush1.msra.mxu0 0.0
        %4139 = vmatprep.subr.mxu0 0.0
        %4140 = vmatpush1.msra.mxu0 0.0
        %4141 = vmatprep.subr.mxu0 0.0
        %4142 = vmatpush1.msra.mxu0 0.0
        %4143 = vmatprep.subr.mxu0 0.0
        %4144 = vmatpush1.msra.mxu0 0.0
        %4145 = vmatprep.subr.mxu0 0.0
        %4146 = vmatpush1.msra.mxu0 0.0
        %4147 = vmatprep.subr.mxu0 0.0
        %4148 = vmatpush1.msra.mxu0 0.0
        %4149 = vmatprep.mubr.f32.mxu0 0.0
        %4150 = vmatmul.mubr.f32.gmra.mrb[0].mxu0 %v4080
        %v4151 = vpop.f32.mrb[0].mxu0
        %v4152 = vadd.f32 0.0, %v4151
        %v4153 = vpop.f32.mrb[0].mxu0
        %4154 = vmatprep.mubr.f32.mxu0 0.0
        %4155 = vmatmul.mubr.f32.gmra.mrb[0].mxu0 %v4083
        %v4156 = vpop.f32.mrb[0].mxu0
        %v4157 = vadd.f32 0.0, %v4156
        %v4158 = vpop.f32.mrb[0].mxu0
        %4159 = vdwg.mxu0
        %v4161 = vsel %vm2306, %v3577, 0
        %v4164 = vsel %vm2306, %v3582, 0
        %4166 = vmatprep.subr.mxu0 0.0
        %4167 = vmatpush1.msra.mxu0 %v3832
        %4168 = vmatprep.subr.mxu0 0.0
        %4169 = vmatpush1.msra.mxu0 0.0
        %4170 = vmatprep.subr.mxu0 0.0
        %4171 = vmatpush1.msra.mxu0 0.0
        %4172 = vmatprep.subr.mxu0 0.0
        %4173 = vmatpush1.msra.mxu0 0.0
        %4174 = vmatprep.subr.mxu0 0.0
        %4175 = vmatpush1.msra.mxu0 0.0
        %4176 = vmatprep.subr.mxu0 0.0
        %4177 = vmatpush1.msra.mxu0 0.0
        %4178 = vmatprep.subr.mxu0 0.0
        %4179 = vmatpush1.msra.mxu0 0.0
        %4180 = vmatprep.subr.mxu0 0.0
        %4181 = vmatpush1.msra.mxu0 0.0
        %4182 = vmatprep.subr.mxu0 0.0
        %4183 = vmatpush1.msra.mxu0 0.0
        %4184 = vmatprep.subr.mxu0 0.0
        %4185 = vmatpush1.msra.mxu0 0.0
        %4186 = vmatprep.subr.mxu0 0.0
        %4187 = vmatpush1.msra.mxu0 0.0
        %4188 = vmatprep.subr.mxu0 0.0
        %4189 = vmatpush1.msra.mxu0 0.0
        %4190 = vmatprep.subr.mxu0 0.0
        %4191 = vmatpush1.msra.mxu0 0.0
        %4192 = vmatprep.subr.mxu0 0.0
        %4193 = vmatpush1.msra.mxu0 0.0
        %4194 = vmatprep.subr.mxu0 0.0
        %4195 = vmatpush1.msra.mxu0 0.0
        %4196 = vmatprep.subr.mxu0 0.0
        %4197 = vmatpush1.msra.mxu0 0.0
        %4198 = vmatprep.subr.mxu0 0.0
        %4199 = vmatpush1.msra.mxu0 0.0
        %4200 = vmatprep.subr.mxu0 0.0
        %4201 = vmatpush1.msra.mxu0 0.0
        %4202 = vmatprep.subr.mxu0 0.0
        %4203 = vmatpush1.msra.mxu0 0.0
        %4204 = vmatprep.subr.mxu0 0.0
        %4205 = vmatpush1.msra.mxu0 0.0
        %4206 = vmatprep.subr.mxu0 0.0
        %4207 = vmatpush1.msra.mxu0 0.0
        %4208 = vmatprep.subr.mxu0 0.0
        %4209 = vmatpush1.msra.mxu0 0.0
        %4210 = vmatprep.subr.mxu0 0.0
        %4211 = vmatpush1.msra.mxu0 0.0
        %4212 = vmatprep.subr.mxu0 0.0
        %4213 = vmatpush1.msra.mxu0 0.0
        %4214 = vmatprep.subr.mxu0 0.0
        %4215 = vmatpush1.msra.mxu0 0.0
        %4216 = vmatprep.subr.mxu0 0.0
        %4217 = vmatpush1.msra.mxu0 0.0
        %4218 = vmatprep.subr.mxu0 0.0
        %4219 = vmatpush1.msra.mxu0 0.0
        %4220 = vmatprep.subr.mxu0 0.0
        %4221 = vmatpush1.msra.mxu0 0.0
        %4222 = vmatprep.subr.mxu0 0.0
        %4223 = vmatpush1.msra.mxu0 0.0
        %4224 = vmatprep.subr.mxu0 0.0
        %4225 = vmatpush1.msra.mxu0 0.0
        %4226 = vmatprep.subr.mxu0 0.0
        %4227 = vmatpush1.msra.mxu0 0.0
        %4228 = vmatprep.subr.mxu0 0.0
        %4229 = vmatpush1.msra.mxu0 0.0
        %4230 = vmatprep.mubr.f32.mxu0 0.0
        %4231 = vmatmul.mubr.f32.gmra.mrb[0].mxu0 %v4161
        %v4232 = vpop.f32.mrb[0].mxu0
        %v4233 = vadd.f32 0.0, %v4232
        %v4234 = vpop.f32.mrb[0].mxu0
        %4235 = vmatprep.mubr.f32.mxu0 0.0
        %4236 = vmatmul.mubr.f32.gmra.mrb[0].mxu0 %v4164
        %v4237 = vpop.f32.mrb[0].mxu0
        %v4238 = vadd.f32 0.0, %v4237
        %v4239 = vpop.f32.mrb[0].mxu0
        %4240 = vdwg.mxu0
        %v4242 = vsel %vm2306, %v3658, 0
        %v4245 = vsel %vm2306, %v3663, 0
        %4247 = vmatprep.subr.mxu0 0.0
        %4248 = vmatpush1.msra.mxu0 %v3833
        %4249 = vmatprep.subr.mxu0 0.0
        %4250 = vmatpush1.msra.mxu0 0.0
        %4251 = vmatprep.subr.mxu0 0.0
        %4252 = vmatpush1.msra.mxu0 0.0
        %4253 = vmatprep.subr.mxu0 0.0
        %4254 = vmatpush1.msra.mxu0 0.0
        %4255 = vmatprep.subr.mxu0 0.0
        %4256 = vmatpush1.msra.mxu0 0.0
        %4257 = vmatprep.subr.mxu0 0.0
        %4258 = vmatpush1.msra.mxu0 0.0
        %4259 = vmatprep.subr.mxu0 0.0
        %4260 = vmatpush1.msra.mxu0 0.0
        %4261 = vmatprep.subr.mxu0 0.0
        %4262 = vmatpush1.msra.mxu0 0.0
        %4263 = vmatprep.subr.mxu0 0.0
        %4264 = vmatpush1.msra.mxu0 0.0
        %4265 = vmatprep.subr.mxu0 0.0
        %4266 = vmatpush1.msra.mxu0 0.0
        %4267 = vmatprep.subr.mxu0 0.0
        %4268 = vmatpush1.msra.mxu0 0.0
        %4269 = vmatprep.subr.mxu0 0.0
        %4270 = vmatpush1.msra.mxu0 0.0
        %4271 = vmatprep.subr.mxu0 0.0
        %4272 = vmatpush1.msra.mxu0 0.0
        %4273 = vmatprep.subr.mxu0 0.0
        %4274 = vmatpush1.msra.mxu0 0.0
        %4275 = vmatprep.subr.mxu0 0.0
        %4276 = vmatpush1.msra.mxu0 0.0
        %4277 = vmatprep.subr.mxu0 0.0
        %4278 = vmatpush1.msra.mxu0 0.0
        %4279 = vmatprep.subr.mxu0 0.0
        %4280 = vmatpush1.msra.mxu0 0.0
        %4281 = vmatprep.subr.mxu0 0.0
        %4282 = vmatpush1.msra.mxu0 0.0
        %4283 = vmatprep.subr.mxu0 0.0
        %4284 = vmatpush1.msra.mxu0 0.0
        %4285 = vmatprep.subr.mxu0 0.0
        %4286 = vmatpush1.msra.mxu0 0.0
        %4287 = vmatprep.subr.mxu0 0.0
        %4288 = vmatpush1.msra.mxu0 0.0
        %4289 = vmatprep.subr.mxu0 0.0
        %4290 = vmatpush1.msra.mxu0 0.0
        %4291 = vmatprep.subr.mxu0 0.0
        %4292 = vmatpush1.msra.mxu0 0.0
        %4293 = vmatprep.subr.mxu0 0.0
        %4294 = vmatpush1.msra.mxu0 0.0
        %4295 = vmatprep.subr.mxu0 0.0
        %4296 = vmatpush1.msra.mxu0 0.0
        %4297 = vmatprep.subr.mxu0 0.0
        %4298 = vmatpush1.msra.mxu0 0.0
        %4299 = vmatprep.subr.mxu0 0.0
        %4300 = vmatpush1.msra.mxu0 0.0
        %4301 = vmatprep.subr.mxu0 0.0
        %4302 = vmatpush1.msra.mxu0 0.0
        %4303 = vmatprep.subr.mxu0 0.0
        %4304 = vmatpush1.msra.mxu0 0.0
        %4305 = vmatprep.subr.mxu0 0.0
        %4306 = vmatpush1.msra.mxu0 0.0
        %4307 = vmatprep.subr.mxu0 0.0
        %4308 = vmatpush1.msra.mxu0 0.0
        %4309 = vmatprep.subr.mxu0 0.0
        %4310 = vmatpush1.msra.mxu0 0.0
        %4311 = vmatprep.mubr.f32.mxu0 0.0
        %4312 = vmatmul.mubr.f32.gmra.mrb[0].mxu0 %v4242
        %v4313 = vpop.f32.mrb[0].mxu0
        %v4314 = vadd.f32 0.0, %v4313
        %v4315 = vpop.f32.mrb[0].mxu0
        %4316 = vmatprep.mubr.f32.mxu0 0.0
        %4317 = vmatmul.mubr.f32.gmra.mrb[0].mxu0 %v4245
        %v4318 = vpop.f32.mrb[0].mxu0
        %v4319 = vadd.f32 0.0, %v4318
        %v4320 = vpop.f32.mrb[0].mxu0
        %4321 = vdwg.mxu0
        %v4323 = vsel %vm2306, %v3739, 0
        %v4326 = vsel %vm2306, %v3744, 0
        %4328 = vmatprep.subr.mxu0 0.0
        %4329 = vmatpush1.msra.mxu0 %v3834
        %4330 = vmatprep.subr.mxu0 0.0
        %4331 = vmatpush1.msra.mxu0 0.0
        %4332 = vmatprep.subr.mxu0 0.0
        %4333 = vmatpush1.msra.mxu0 0.0
        %4334 = vmatprep.subr.mxu0 0.0
        %4335 = vmatpush1.msra.mxu0 0.0
        %4336 = vmatprep.subr.mxu0 0.0
        %4337 = vmatpush1.msra.mxu0 0.0
        %4338 = vmatprep.subr.mxu0 0.0
        %4339 = vmatpush1.msra.mxu0 0.0
        %4340 = vmatprep.subr.mxu0 0.0
        %4341 = vmatpush1.msra.mxu0 0.0
        %4342 = vmatprep.subr.mxu0 0.0
        %4343 = vmatpush1.msra.mxu0 0.0
        %4344 = vmatprep.subr.mxu0 0.0
        %4345 = vmatpush1.msra.mxu0 0.0
        %4346 = vmatprep.subr.mxu0 0.0
        %4347 = vmatpush1.msra.mxu0 0.0
        %4348 = vmatprep.subr.mxu0 0.0
        %4349 = vmatpush1.msra.mxu0 0.0
        %4350 = vmatprep.subr.mxu0 0.0
        %4351 = vmatpush1.msra.mxu0 0.0
        %4352 = vmatprep.subr.mxu0 0.0
        %4353 = vmatpush1.msra.mxu0 0.0
        %4354 = vmatprep.subr.mxu0 0.0
        %4355 = vmatpush1.msra.mxu0 0.0
        %4356 = vmatprep.subr.mxu0 0.0
        %4357 = vmatpush1.msra.mxu0 0.0
        %4358 = vmatprep.subr.mxu0 0.0
        %4359 = vmatpush1.msra.mxu0 0.0
        %4360 = vmatprep.subr.mxu0 0.0
        %4361 = vmatpush1.msra.mxu0 0.0
        %4362 = vmatprep.subr.mxu0 0.0
        %4363 = vmatpush1.msra.mxu0 0.0
        %4364 = vmatprep.subr.mxu0 0.0
        %4365 = vmatpush1.msra.mxu0 0.0
        %4366 = vmatprep.subr.mxu0 0.0
        %4367 = vmatpush1.msra.mxu0 0.0
        %4368 = vmatprep.subr.mxu0 0.0
        %4369 = vmatpush1.msra.mxu0 0.0
        %4370 = vmatprep.subr.mxu0 0.0
        %4371 = vmatpush1.msra.mxu0 0.0
        %4372 = vmatprep.subr.mxu0 0.0
        %4373 = vmatpush1.msra.mxu0 0.0
        %4374 = vmatprep.subr.mxu0 0.0
        %4375 = vmatpush1.msra.mxu0 0.0
        %4376 = vmatprep.subr.mxu0 0.0
        %4377 = vmatpush1.msra.mxu0 0.0
        %4378 = vmatprep.subr.mxu0 0.0
        %4379 = vmatpush1.msra.mxu0 0.0
        %4380 = vmatprep.subr.mxu0 0.0
        %4381 = vmatpush1.msra.mxu0 0.0
        %4382 = vmatprep.subr.mxu0 0.0
        %4383 = vmatpush1.msra.mxu0 0.0
        %4384 = vmatprep.subr.mxu0 0.0
        %4385 = vmatpush1.msra.mxu0 0.0
        %4386 = vmatprep.subr.mxu0 0.0
        %4387 = vmatpush1.msra.mxu0 0.0
        %4388 = vmatprep.subr.mxu0 0.0
        %4389 = vmatpush1.msra.mxu0 0.0
        %4390 = vmatprep.subr.mxu0 0.0
        %4391 = vmatpush1.msra.mxu0 0.0
        %4392 = vmatprep.mubr.f32.mxu0 0.0
        %4393 = vmatmul.mubr.f32.gmra.mrb[0].mxu0 %v4323
        %v4394 = vpop.f32.mrb[0].mxu0
        %v4395 = vadd.f32 0.0, %v4394
        %v4396 = vpop.f32.mrb[0].mxu0
        %4397 = vmatprep.mubr.f32.mxu0 0.0
        %4398 = vmatmul.mubr.f32.gmra.mrb[0].mxu0 %v4326
        %v4399 = vpop.f32.mrb[0].mxu0
        %v4400 = vadd.f32 0.0, %v4399
        %v4401 = vpop.f32.mrb[0].mxu0
        %4402 = vdwg.mxu0
        %v4404 = vsel %vm2306, %v3820, 0
        %v4407 = vsel %vm2306, %v3825, 0
        %4409 = vmatprep.subr.mxu0 0.0
        %4410 = vmatpush1.msra.mxu0 %v3835
        %4411 = vmatprep.subr.mxu0 0.0
        %4412 = vmatpush1.msra.mxu0 0.0
        %4413 = vmatprep.subr.mxu0 0.0
        %4414 = vmatpush1.msra.mxu0 0.0
        %4415 = vmatprep.subr.mxu0 0.0
        %4416 = vmatpush1.msra.mxu0 0.0
        %4417 = vmatprep.subr.mxu0 0.0
        %4418 = vmatpush1.msra.mxu0 0.0
        %4419 = vmatprep.subr.mxu0 0.0
        %4420 = vmatpush1.msra.mxu0 0.0
        %4421 = vmatprep.subr.mxu0 0.0
        %4422 = vmatpush1.msra.mxu0 0.0
        %4423 = vmatprep.subr.mxu0 0.0
        %4424 = vmatpush1.msra.mxu0 0.0
        %4425 = vmatprep.subr.mxu0 0.0
        %4426 = vmatpush1.msra.mxu0 0.0
        %4427 = vmatprep.subr.mxu0 0.0
        %4428 = vmatpush1.msra.mxu0 0.0
        %4429 = vmatprep.subr.mxu0 0.0
        %4430 = vmatpush1.msra.mxu0 0.0
        %4431 = vmatprep.subr.mxu0 0.0
        %4432 = vmatpush1.msra.mxu0 0.0
        %4433 = vmatprep.subr.mxu0 0.0
        %4434 = vmatpush1.msra.mxu0 0.0
        %4435 = vmatprep.subr.mxu0 0.0
        %4436 = vmatpush1.msra.mxu0 0.0
        %4437 = vmatprep.subr.mxu0 0.0
        %4438 = vmatpush1.msra.mxu0 0.0
        %4439 = vmatprep.subr.mxu0 0.0
        %4440 = vmatpush1.msra.mxu0 0.0
        %4441 = vmatprep.subr.mxu0 0.0
        %4442 = vmatpush1.msra.mxu0 0.0
        %4443 = vmatprep.subr.mxu0 0.0
        %4444 = vmatpush1.msra.mxu0 0.0
        %4445 = vmatprep.subr.mxu0 0.0
        %4446 = vmatpush1.msra.mxu0 0.0
        %4447 = vmatprep.subr.mxu0 0.0
        %4448 = vmatpush1.msra.mxu0 0.0
        %4449 = vmatprep.subr.mxu0 0.0
        %4450 = vmatpush1.msra.mxu0 0.0
        %4451 = vmatprep.subr.mxu0 0.0
        %4452 = vmatpush1.msra.mxu0 0.0
        %4453 = vmatprep.subr.mxu0 0.0
        %4454 = vmatpush1.msra.mxu0 0.0
        %4455 = vmatprep.subr.mxu0 0.0
        %4456 = vmatpush1.msra.mxu0 0.0
        %4457 = vmatprep.subr.mxu0 0.0
        %4458 = vmatpush1.msra.mxu0 0.0
        %4459 = vmatprep.subr.mxu0 0.0
        %4460 = vmatpush1.msra.mxu0 0.0
        %4461 = vmatprep.subr.mxu0 0.0
        %4462 = vmatpush1.msra.mxu0 0.0
        %4463 = vmatprep.subr.mxu0 0.0
        %4464 = vmatpush1.msra.mxu0 0.0
        %4465 = vmatprep.subr.mxu0 0.0
        %4466 = vmatpush1.msra.mxu0 0.0
        %4467 = vmatprep.subr.mxu0 0.0
        %4468 = vmatpush1.msra.mxu0 0.0
        %4469 = vmatprep.subr.mxu0 0.0
        %4470 = vmatpush1.msra.mxu0 0.0
        %4471 = vmatprep.subr.mxu0 0.0
        %4472 = vmatpush1.msra.mxu0 0.0
        %4473 = vmatprep.mubr.f32.mxu0 0.0
        %4474 = vmatmul.mubr.f32.gmra.mrb[0].mxu0 %v4404
        %v4475 = vpop.f32.mrb[0].mxu0
        %v4476 = vadd.f32 0.0, %v4475
        %v4477 = vpop.f32.mrb[0].mxu0
        %4478 = vmatprep.mubr.f32.mxu0 0.0
        %4479 = vmatmul.mubr.f32.gmra.mrb[0].mxu0 %v4407
        %v4480 = vpop.f32.mrb[0].mxu0
        %v4481 = vadd.f32 0.0, %v4480
        %v4482 = vpop.f32.mrb[0].mxu0
        %4483 = vdwg.mxu0
        %v4484 = vadd.f32 %v3909, %v3990
        %v4485 = vadd.f32 %v4484, %v4071
        %v4486 = vadd.f32 %v4485, %v4152
        %v4487 = vadd.f32 %v4486, %v4233
        %v4488 = vadd.f32 %v4487, %v4314
        %v4489 = vadd.f32 %v4488, %v4395
        %v4490 = vadd.f32 %v4489, %v4476
        %v4491 = vadd.f32 %v3914, %v3995
        %v4492 = vadd.f32 %v4491, %v4076
        %v4493 = vadd.f32 %v4492, %v4157
        %v4494 = vadd.f32 %v4493, %v4238
        %v4495 = vadd.f32 %v4494, %v4319
        %v4496 = vadd.f32 %v4495, %v4400
        %v4497 = vadd.f32 %v4496, %v4481
        %v4498 = vld [vmem:[%s6] sm:$0x1]
        %v4500 = vlaneseq
        %v4501 = vshrl.u32 %v4500, 7
        %v4502 = vsub.s32 0, %v4501
        %v4503 = vrot.slane %v4498, %v4502
        %v4505 = vadd.f32 %v4490, %v4503
        %v4506 = vadd.f32 %v4497, %v4503
        %4507 = vst [vmem:[%s286] sm:$0xff] %v4505
        %4508 = vst [vmem:[%s286 + $0x8] sm:$0xff] %v4506
        %s4509 = sand.u32 %s186, 1
        %s4510 = scalar_lea.sflag [#allocation3], %s4509
        %s4511 = sand.u32 %s186, 1
        %s4512 = smul.addr %s4511, 16
        %s4513 = scalar_lea.vmem [#allocation2], %s4512
        // Predicated region
        $region49: #{tpu_custom_call.1} parent=47 // pred_check
          %p4514 = pneg %p196
        $region50: #{tpu_custom_call.1} parent=47 // pred_check_branch
          %4516 = sbr.rel (%p4514) target = $region52
        $region51: #{tpu_custom_call.1} parent=47 // pred_region
          %s4518 = ssub.s32 256, 256
          %4519 = vsyncadd %s4510, %s4518
          %s4520 = smul.addr %s21, 2
          %s4521 = smul.addr %s4520, 128
          %s4522 = scalar_lea.hbm %s7, %s4521
          %s4523 = sshll.u32 %s4513, 4
          %s4524 = int_to_ptr.vmem [resolvable:$true] %s4523
          %4529 = dma.vmem_to_hbm [thread:$0]  %s4524, 256, %s4522, %s4510, 128, 128, 8
        $region52: #{tpu_custom_call.1} parent=47 // pred_fallthru
          _
      $region48: #{tpu_custom_call.1} parent=5 // pred_fallthru
        _
      %p4530 = scmp.le.s32.totalorder 2, %s16
      // Predicated region
      $region53: #{tpu_custom_call.1} parent=5 // pred_check
        %p4531 = pneg %p4530
      $region54: #{tpu_custom_call.1} parent=5 // pred_check_branch
        %4533 = sbr.rel (%p4531) target = $region56
      $region55: #{tpu_custom_call.1} parent=5 // pred_region
        %s4534 = ssub.s32 %s16, 2
        // Predicated region
        $region57: #{tpu_custom_call.1} parent=55 // pred_check
          %p4535 = pneg %p202
        $region58: #{tpu_custom_call.1} parent=55 // pred_check_branch
          %4537 = sbr.rel (%p4535) target = $region60
        $region59: #{tpu_custom_call.1} parent=55 // pred_region
          %s4538 = sand.u32 %s187, 1
          %s4539 = scalar_lea.sflag [#allocation3], %s4538
          %s4540 = sand.u32 %s187, 1
          %s4541 = smul.addr %s4540, 16
          %s4542 = scalar_lea.vmem [#allocation2], %s4541
          %4543 = dma.done %s4539, 256
        $region60: #{tpu_custom_call.1} parent=55 // pred_fallthru
          _
      $region56: #{tpu_custom_call.1} parent=5 // pred_fallthru
        _
    $region6: #{tpu_custom_call.1} parent=1 // loop_footer
      %s20 = sadd.s32 1, %s16
    $region7: #{tpu_custom_call.1} parent=1 // loop_footer_branch
      %15 = sbr.rel target = $region3
    $region8: #{tpu_custom_call.1} parent=1 // loop_exit
      _
    %4544 = vsyncpa [#allocation3], 1
    %s4545 = scalar_lea.sflag [#allocation3], 1
    %4546 = vsyncpa %s4545, 1

</llo_original>
